<compile_context>
chip_gen: v5e
topology: v5e:2x2
jax: 0.10.0
libtpu: 0.0.40
codegen_flags: <defaults>
</compile_context>

<pallas_src>
import functools

import jax
import jax.numpy as jnp
import numpy as np
from jax import lax
from jax.experimental import pallas as pl
from jax.experimental.pallas import tpu as pltpu


# ---------------------------------------------------------------------------
# Fused kernel: node_init + all message-passing steps
# ---------------------------------------------------------------------------
def _dmpnn_kernel(src_ref, dst_ref, xattr_ref, eattr_ref,
                  wni_ref, bni_ref, we1_ref, be1_ref,
                  w2a_ref, wroot_ref, bconv_ref,
                  wgx_ref, wgh_ref, bgru_ref,
                  o_ref,
                  outer_sc,
                  *, num_steps, d, n_nodes, n_edges, e_hidden):
    f32, bf16 = jnp.float32, jnp.bfloat16
    hd = e_hidden * d

    # --- node_init: x = relu(node_attr @ W + b) --------------------------------
    # With seq_len == 1 the GRU output equals its new hidden state, so node
    # features and hidden state are identical -> one carried value h.
    x0 = jnp.dot(xattr_ref[...], wni_ref[...],
                 preferred_element_type=f32) + bni_ref[...]
    h = jnp.maximum(x0, 0.0)                                     # [N, d] f32

    # --- step-invariant edge-network first layer (hoisted out of the loop) -----
    e1 = jnp.dot(eattr_ref[...], we1_ref[...],
                 preferred_element_type=f32) + be1_ref[...]
    eh = jnp.maximum(e1, 0.0)                                    # [E, H] f32

    # --- step-invariant one-hot gather / scatter operands (built once) ---------
    # gather:  G[e, n] = (src[e] == n)  ->  x_src = G @ h        (MXU)
    # scatter: S[n, e] = (dst[e] == n)  ->  agg   = S @ msg      (MXU, exact sum
    #                                                             over colliding dst)
    src_ids = src_ref[...]                                       # [E, 1] int32
    gath = jnp.where(
        src_ids == lax.broadcasted_iota(jnp.int32, (n_edges, n_nodes), 1),
        1.0, 0.0).astype(bf16)                                   # [E, N] bf16
    dst_ids = dst_ref[...]                                       # [1, E] int32
    scat = jnp.where(
        dst_ids == lax.broadcasted_iota(jnp.int32, (n_nodes, n_edges), 0),
        1.0, 0.0).astype(bf16)                                   # [N, E] bf16

    # --- message-passing steps (static, fully unrolled: num_steps is small) ----
    for _ in range(num_steps):
        h_bf = h.astype(bf16)

        # ---- gather source-node features: one MXU matmul (no per-edge loop) ----
        x_src = jnp.dot(gath, h_bf, preferred_element_type=f32)  # [E, d]

        # ---- per-edge bilinear message as ONE MXU matmul ----
        #   msg[e,j] = sum_{k,i} eh[e,k]*x_src[e,i]*W2[k, i*d+j]
        #            + sum_i    x_src[e,i]*b2[i*d+j]
        #            = ([eh (x) x_src | x_src] @ W2_aug)[e, j]
        # Flattened outer product built with static lane-chunk stores into a
        # bf16 scratch (multiply in f32 for v5e, cast on store).
        for k in range(e_hidden):
            outer_sc[:, k * d:(k + 1) * d] = (eh[:, k:k + 1] * x_src).astype(bf16)
        outer_sc[:, hd:hd + d] = x_src.astype(bf16)
        msg = jnp.dot(outer_sc[...], w2a_ref[...],
                      preferred_element_type=f32)                # [E, d]

        # ---- scatter-add via one-hot matmul + NNConv root term + bias, ReLU ----
        conv = (jnp.dot(scat, msg.astype(bf16), preferred_element_type=f32)
                + jnp.dot(h_bf, wroot_ref[...], preferred_element_type=f32)
                + bconv_ref[...])
        xin = jnp.maximum(conv, 0.0)                             # [N, d]

        # ---- GRU cell: two accumulated matmuls (no concat buffer) ----
        # g columns: r-pre | z-pre | (W_in x + b_in) | (W_hn h + b_hn)
        g = (jnp.dot(xin.astype(bf16), wgx_ref[...], preferred_element_type=f32)
             + jnp.dot(h_bf, wgh_ref[...], preferred_element_type=f32)
             + bgru_ref[...])                                    # [N, 4d]
        r = jax.nn.sigmoid(g[:, 0:d])
        z = jax.nn.sigmoid(g[:, d:2 * d])
        n = jnp.tanh(g[:, 2 * d:3 * d] + r * g[:, 3 * d:4 * d])
        h = (1.0 - z) * n + z * h

    o_ref[...] = h


# ---------------------------------------------------------------------------
# Host-side parameter preparation (reshapes / fusions / bf16 casts done once)
# ---------------------------------------------------------------------------
def _prep_kernel_params(params, d, e_hidden):
    bf16 = jnp.bfloat16
    hd = e_hidden * d

    # W2_aug[k*d + i, j] = W2[k, i*d + j];  W2_aug[hd + i, j] = b2[i*d + j]
    w2_aug = jnp.concatenate(
        [params["edge_w2"].reshape(hd, d),
         params["edge_b2"].reshape(d, d)], axis=0).astype(bf16)   # [hd + d, d]

    # GRU block weights, columns r | z | gi_n | gh_n  (zero blocks are the
    # price of a single fused gate matmul per operand; fine at small d).
    wih, whh = params["gru_w_ih"], params["gru_w_hh"]             # [d, 3d]
    bih, bhh = params["gru_b_ih"], params["gru_b_hh"]             # [1, 3d]
    zeros = jnp.zeros((d, d), jnp.float32)
    w_gru_x = jnp.concatenate([wih[:, :2 * d], wih[:, 2 * d:], zeros],
                              axis=1).astype(bf16)                # [d, 4d]
    w_gru_h = jnp.concatenate([whh[:, :2 * d], zeros, whh[:, 2 * d:]],
                              axis=1).astype(bf16)                # [d, 4d]
    b_gru = jnp.concatenate(
        [bih[:, :2 * d] + bhh[:, :2 * d], bih[:, 2 * d:], bhh[:, 2 * d:]],
        axis=1)                                                   # [1, 4d]

    return {
        "w_node_init": params["node_init_w"].astype(bf16),
        "b_node_init": params["node_init_b"],
        "w_e1": params["edge_w1"].astype(bf16),
        "b_e1": params["edge_b1"],
        "w2_aug": w2_aug,
        "w_root": params["conv_root_w"].astype(bf16),
        "b_conv": params["conv_bias"],
        "w_gru_x": w_gru_x,
        "w_gru_h": w_gru_h,
        "b_gru": b_gru,
    }


# ---------------------------------------------------------------------------
# Wrapper: one pallas_call for the whole forward pass
# ---------------------------------------------------------------------------
def dmpnn_forward(node_attr, edge_index, edge_attr, params, num_steps, node_out):
    n_nodes = node_attr.shape[0]
    n_edges = edge_attr.shape[0]
    d = node_out
    e_hidden = params["edge_w1"].shape[1]
    hd = e_hidden * d

    kp = _prep_kernel_params(params, d, e_hidden)
    src2d = edge_index[0].astype(jnp.int32).reshape(n_edges, 1)   # [E, 1]
    dst2d = edge_index[1].astype(jnp.int32).reshape(1, n_edges)   # [1, E]

    kernel = functools.partial(_dmpnn_kernel, num_steps=num_steps, d=d,
                               n_nodes=n_nodes, n_edges=n_edges,
                               e_hidden=e_hidden)

    vmem = pl.BlockSpec(memory_space=pltpu.MemorySpace.VMEM)
    args = (src2d, dst2d,
            node_attr.astype(jnp.bfloat16), edge_attr.astype(jnp.bfloat16),
            kp["w_node_init"], kp["b_node_init"],
            kp["w_e1"], kp["b_e1"],
            kp["w2_aug"], kp["w_root"], kp["b_conv"],
            kp["w_gru_x"], kp["w_gru_h"], kp["b_gru"])

    return pl.pallas_call(
        kernel,
        out_shape=jax.ShapeDtypeStruct((n_nodes, d), jnp.float32),
        in_specs=[vmem] * len(args),
        out_specs=vmem,
        scratch_shapes=[
            # bf16 flattened outer product [eh (x) x_src | x_src]
            pltpu.VMEM((n_edges, hd + d), jnp.bfloat16),
        ],
        compiler_params=pltpu.CompilerParams(
            vmem_limit_bytes=32 * 1024 * 1024),
    )(*args)


# ---------------------------------------------------------------------------
# Pure-JAX reference (same math, f32, no Pallas) for a sanity check.
# ---------------------------------------------------------------------------
def dmpnn_reference(node_attr, edge_index, edge_attr, params, num_steps, node_out):
    d = node_out
    src, dst = edge_index[0], edge_index[1]
    x = jnp.maximum(node_attr @ params["node_init_w"] + params["node_init_b"], 0.0)
    h = x
    for _ in range(num_steps):
        eh = jnp.maximum(edge_attr @ params["edge_w1"] + params["edge_b1"], 0.0)
        w_edge = (eh @ params["edge_w2"] + params["edge_b2"]).reshape(-1, d, d)
        x_src = x[src]
        msg = jnp.einsum("ei,eij->ej", x_src, w_edge)
        agg = jnp.zeros((x.shape[0], d), jnp.float32).at[dst].add(msg)
        xin = jnp.maximum(agg + x @ params["conv_root_w"] + params["conv_bias"], 0.0)
        gi = xin @ params["gru_w_ih"] + params["gru_b_ih"]
        gh = h @ params["gru_w_hh"] + params["gru_b_hh"]
        r = jax.nn.sigmoid(gi[:, 0:d] + gh[:, 0:d])
        z = jax.nn.sigmoid(gi[:, d:2 * d] + gh[:, d:2 * d])
        nn_ = jnp.tanh(gi[:, 2 * d:3 * d] + r * gh[:, 2 * d:3 * d])
        h = (1.0 - z) * nn_ + z * h
        x = h
    return x


# ---------------------------------------------------------------------------
# Deterministic parameter construction
# ---------------------------------------------------------------------------
def make_params(key, node_in, edge_in, node_out, edge_hidden):
    ks = jax.random.split(key, 16)

    def xavier(k, fan_in, fan_out):
        std = (2.0 / (fan_in + fan_out)) ** 0.5
        return std * jax.random.normal(k, (fan_in, fan_out), jnp.float32)

    def unif(k, shape, fan_in):
        bound = 1.0 / (fan_in ** 0.5)
        return jax.random.uniform(k, shape, jnp.float32, -bound, bound)

    d2 = node_out * node_out
    return {
        # node_init (xavier_normal_ weight, default bias)
        "node_init_w": xavier(ks[0], node_in, node_out),
        "node_init_b": unif(ks[1], (1, node_out), node_in),
        # edge network: Linear(edge_in, H) -> ReLU -> Linear(H, d*d)
        "edge_w1": unif(ks[2], (edge_in, edge_hidden), edge_in),
        "edge_b1": unif(ks[3], (1, edge_hidden), edge_in),
        "edge_w2": unif(ks[4], (edge_hidden, d2), edge_hidden),
        "edge_b2": unif(ks[5], (1, d2), edge_hidden),
        # NNConv root linear (no bias) + conv bias
        "conv_root_w": unif(ks[6], (node_out, node_out), node_out),
        "conv_bias": unif(ks[7], (1, node_out), node_out),
        # GRU (transposed to [in, 3*hidden], gate order r|z|n)
        "gru_w_ih": unif(ks[8], (node_out, 3 * node_out), node_out),
        "gru_b_ih": unif(ks[9], (1, 3 * node_out), node_out),
        "gru_w_hh": unif(ks[10], (node_out, 3 * node_out), node_out),
        "gru_b_hh": unif(ks[11], (1, 3 * node_out), node_out),
    }


if __name__ == "__main__":
    node_in_feats = 16
    edge_in_feats = 8
    node_out_feats = 32
    edge_hidden_feats = 32
    num_step_message_passing = 3

    n_nodes = 8
    n_edges = 16

    key = jax.random.PRNGKey(0)
    k_params, k_x, k_e, k_src, k_dst = jax.random.split(key, 5)

    params = make_params(k_params, node_in_feats, edge_in_feats,
                         node_out_feats, edge_hidden_feats)

    node_attr = jax.random.normal(k_x, (n_nodes, node_in_feats), jnp.float32)
    edge_attr = jax.random.normal(k_e, (n_edges, edge_in_feats), jnp.float32)
    edge_index = jnp.stack([
        jax.random.randint(k_src, (n_edges,), 0, n_nodes),
        jax.random.randint(k_dst, (n_edges,), 0, n_nodes),
    ], axis=0)

    out = dmpnn_forward(node_attr, edge_index, edge_attr, params,
                        num_step_message_passing, node_out_feats)
    out = jax.block_until_ready(out)

    ref = dmpnn_reference(node_attr, edge_index, edge_attr, params,
                          num_step_message_passing, node_out_feats)
    # bf16 MXU operands with f32 accumulation -> looser tolerance vs f32 reference.
    np.testing.assert_allclose(np.asarray(out), np.asarray(ref),
                               rtol=5e-2, atol=5e-2)

    print("KERNEL_OK")
</pallas_src>

<mosaic_0001>
module attributes {stable_mosaic.version = 11 : i64} {
  func.func @_dmpnn_kernel(%arg0: memref<16x1xi32, #tpu.memory_space<vmem>>, %arg1: memref<1x16xi32, #tpu.memory_space<vmem>>, %arg2: memref<8x16xbf16, #tpu.memory_space<vmem>>, %arg3: memref<16x8xbf16, #tpu.memory_space<vmem>>, %arg4: memref<16x32xbf16, #tpu.memory_space<vmem>>, %arg5: memref<1x32xf32, #tpu.memory_space<vmem>>, %arg6: memref<8x32xbf16, #tpu.memory_space<vmem>>, %arg7: memref<1x32xf32, #tpu.memory_space<vmem>>, %arg8: memref<1056x32xbf16, #tpu.memory_space<vmem>>, %arg9: memref<32x32xbf16, #tpu.memory_space<vmem>>, %arg10: memref<1x32xf32, #tpu.memory_space<vmem>>, %arg11: memref<32x128xbf16, #tpu.memory_space<vmem>>, %arg12: memref<32x128xbf16, #tpu.memory_space<vmem>>, %arg13: memref<1x128xf32, #tpu.memory_space<vmem>>, %arg14: memref<8x32xf32, #tpu.memory_space<vmem>>, %arg15: memref<16x1056xbf16, #tpu.memory_space<vmem>>) attributes {dimension_semantics = [], scalar_prefetch = 0 : i64, scratch_operands = 1 : i64, tpu.core_type = #tpu.core_type<tc>} {
    %c0 = arith.constant 0 : index
    %c0_0 = arith.constant 0 : index
    %0 = vector.load %arg2[%c0, %c0_0] : memref<8x16xbf16, #tpu.memory_space<vmem>>, vector<8x16xbf16>
    %c0_1 = arith.constant 0 : index
    %c0_2 = arith.constant 0 : index
    %1 = vector.load %arg4[%c0_1, %c0_2] : memref<16x32xbf16, #tpu.memory_space<vmem>>, vector<16x32xbf16>
    %cst = arith.constant dense<0.000000e+00> : vector<8x32xf32>
    %2 = tpu.matmul %0, %1, %cst {dimension_numbers = #tpu.dot_dimension_numbers<[1], [0], [0], [1], [0, 0, 1, 1], [], []>} : vector<8x16xbf16>, vector<16x32xbf16>, vector<8x32xf32> -> vector<8x32xf32>
    %c0_3 = arith.constant 0 : index
    %c0_4 = arith.constant 0 : index
    %3 = vector.load %arg5[%c0_3, %c0_4] : memref<1x32xf32, #tpu.memory_space<vmem>>, vector<1x32xf32>
    %4 = vector.broadcast %3 : vector<1x32xf32> to vector<8x32xf32>
    %5 = arith.addf %2, %4 : vector<8x32xf32>
    %cst_5 = arith.constant 0.000000e+00 : f32
    %6 = vector.broadcast %cst_5 : f32 to vector<8x32xf32>
    %7 = arith.maximumf %5, %6 : vector<8x32xf32>
    %c0_6 = arith.constant 0 : index
    %c0_7 = arith.constant 0 : index
    %8 = vector.load %arg3[%c0_6, %c0_7] : memref<16x8xbf16, #tpu.memory_space<vmem>>, vector<16x8xbf16>
    %c0_8 = arith.constant 0 : index
    %c0_9 = arith.constant 0 : index
    %9 = vector.load %arg6[%c0_8, %c0_9] : memref<8x32xbf16, #tpu.memory_space<vmem>>, vector<8x32xbf16>
    %cst_10 = arith.constant dense<0.000000e+00> : vector<16x32xf32>
    %10 = tpu.matmul %8, %9, %cst_10 {dimension_numbers = #tpu.dot_dimension_numbers<[1], [0], [0], [1], [0, 0, 1, 1], [], []>} : vector<16x8xbf16>, vector<8x32xbf16>, vector<16x32xf32> -> vector<16x32xf32>
    %c0_11 = arith.constant 0 : index
    %c0_12 = arith.constant 0 : index
    %11 = vector.load %arg7[%c0_11, %c0_12] : memref<1x32xf32, #tpu.memory_space<vmem>>, vector<1x32xf32>
    %12 = vector.broadcast %11 : vector<1x32xf32> to vector<16x32xf32>
    %13 = arith.addf %10, %12 : vector<16x32xf32>
    %cst_13 = arith.constant 0.000000e+00 : f32
    %14 = vector.broadcast %cst_13 : f32 to vector<16x32xf32>
    %15 = arith.maximumf %13, %14 : vector<16x32xf32>
    %c0_14 = arith.constant 0 : index
    %c0_15 = arith.constant 0 : index
    %16 = vector.load %arg0[%c0_14, %c0_15] : memref<16x1xi32, #tpu.memory_space<vmem>>, vector<16x1xi32>
    %17 = tpu.iota {dimensions = array<i32: 1>} : vector<16x8xi32>
    %18 = vector.broadcast %16 : vector<16x1xi32> to vector<16x8xi32>
    %19 = arith.cmpi eq, %18, %17 : vector<16x8xi32>
    %cst_16 = arith.constant 1.000000e+00 : f32
    %cst_17 = arith.constant 0.000000e+00 : f32
    %20 = vector.broadcast %cst_16 : f32 to vector<16x8xf32>
    %21 = vector.broadcast %cst_17 : f32 to vector<16x8xf32>
    %22 = arith.select %19, %20, %21 : vector<16x8xi1>, vector<16x8xf32>
    %23 = arith.truncf %22 : vector<16x8xf32> to vector<16x8xbf16>
    %c0_18 = arith.constant 0 : index
    %c0_19 = arith.constant 0 : index
    %24 = vector.load %arg1[%c0_18, %c0_19] : memref<1x16xi32, #tpu.memory_space<vmem>>, vector<1x16xi32>
    %25 = tpu.iota {dimensions = array<i32: 0>} : vector<8x16xi32>
    %26 = vector.broadcast %24 : vector<1x16xi32> to vector<8x16xi32>
    %27 = arith.cmpi eq, %26, %25 : vector<8x16xi32>
    %cst_20 = arith.constant 1.000000e+00 : f32
    %cst_21 = arith.constant 0.000000e+00 : f32
    %28 = vector.broadcast %cst_20 : f32 to vector<8x16xf32>
    %29 = vector.broadcast %cst_21 : f32 to vector<8x16xf32>
    %30 = arith.select %27, %28, %29 : vector<8x16xi1>, vector<8x16xf32>
    %31 = arith.truncf %30 : vector<8x16xf32> to vector<8x16xbf16>
    %32 = arith.truncf %7 : vector<8x32xf32> to vector<8x32xbf16>
    %cst_22 = arith.constant dense<0.000000e+00> : vector<16x32xf32>
    %33 = tpu.matmul %23, %32, %cst_22 {dimension_numbers = #tpu.dot_dimension_numbers<[1], [0], [0], [1], [0, 0, 1, 1], [], []>} : vector<16x8xbf16>, vector<8x32xbf16>, vector<16x32xf32> -> vector<16x32xf32>
    %34 = vector.extract_strided_slice %15 {offsets = [0, 0], sizes = [16, 1], strides = [1, 1]} : vector<16x32xf32> to vector<16x1xf32>
    %35 = vector.broadcast %34 : vector<16x1xf32> to vector<16x32xf32>
    %36 = arith.mulf %35, %33 : vector<16x32xf32>
    %37 = arith.truncf %36 : vector<16x32xf32> to vector<16x32xbf16>
    %c0_23 = arith.constant 0 : index
    %c0_24 = arith.constant 0 : index
    %38 = vector.load %arg15[%c0_23, %c0_24] : memref<16x1056xbf16, #tpu.memory_space<vmem>>, vector<16x32xbf16>
    tpu.vector_store %arg15[%c0_23, %c0_24], %37 {strides = array<i32>} : memref<16x1056xbf16, #tpu.memory_space<vmem>>, vector<16x32xbf16>,
    %39 = vector.extract_strided_slice %15 {offsets = [0, 1], sizes = [16, 1], strides = [1, 1]} : vector<16x32xf32> to vector<16x1xf32>
    %40 = vector.broadcast %39 : vector<16x1xf32> to vector<16x32xf32>
    %41 = arith.mulf %40, %33 : vector<16x32xf32>
    %42 = arith.truncf %41 : vector<16x32xf32> to vector<16x32xbf16>
    %c0_25 = arith.constant 0 : index
    %c32 = arith.constant 32 : index
    %43 = vector.load %arg15[%c0_25, %c32] : memref<16x1056xbf16, #tpu.memory_space<vmem>>, vector<16x32xbf16>
    tpu.vector_store %arg15[%c0_25, %c32], %42 {strides = array<i32>} : memref<16x1056xbf16, #tpu.memory_space<vmem>>, vector<16x32xbf16>,
    %44 = vector.extract_strided_slice %15 {offsets = [0, 2], sizes = [16, 1], strides = [1, 1]} : vector<16x32xf32> to vector<16x1xf32>
    %45 = vector.broadcast %44 : vector<16x1xf32> to vector<16x32xf32>
    %46 = arith.mulf %45, %33 : vector<16x32xf32>
    %47 = arith.truncf %46 : vector<16x32xf32> to vector<16x32xbf16>
    %c0_26 = arith.constant 0 : index
    %c64 = arith.constant 64 : index
    %48 = vector.load %arg15[%c0_26, %c64] : memref<16x1056xbf16, #tpu.memory_space<vmem>>, vector<16x32xbf16>
    tpu.vector_store %arg15[%c0_26, %c64], %47 {strides = array<i32>} : memref<16x1056xbf16, #tpu.memory_space<vmem>>, vector<16x32xbf16>,
    %49 = vector.extract_strided_slice %15 {offsets = [0, 3], sizes = [16, 1], strides = [1, 1]} : vector<16x32xf32> to vector<16x1xf32>
    %50 = vector.broadcast %49 : vector<16x1xf32> to vector<16x32xf32>
    %51 = arith.mulf %50, %33 : vector<16x32xf32>
    %52 = arith.truncf %51 : vector<16x32xf32> to vector<16x32xbf16>
    %c0_27 = arith.constant 0 : index
    %c96 = arith.constant 96 : index
    %53 = vector.load %arg15[%c0_27, %c96] : memref<16x1056xbf16, #tpu.memory_space<vmem>>, vector<16x32xbf16>
    tpu.vector_store %arg15[%c0_27, %c96], %52 {strides = array<i32>} : memref<16x1056xbf16, #tpu.memory_space<vmem>>, vector<16x32xbf16>,
    %54 = vector.extract_strided_slice %15 {offsets = [0, 4], sizes = [16, 1], strides = [1, 1]} : vector<16x32xf32> to vector<16x1xf32>
    %55 = vector.broadcast %54 : vector<16x1xf32> to vector<16x32xf32>
    %56 = arith.mulf %55, %33 : vector<16x32xf32>
    %57 = arith.truncf %56 : vector<16x32xf32> to vector<16x32xbf16>
    %c0_28 = arith.constant 0 : index
    %c128 = arith.constant 128 : index
    %58 = vector.load %arg15[%c0_28, %c128] : memref<16x1056xbf16, #tpu.memory_space<vmem>>, vector<16x32xbf16>
    tpu.vector_store %arg15[%c0_28, %c128], %57 {strides = array<i32>} : memref<16x1056xbf16, #tpu.memory_space<vmem>>, vector<16x32xbf16>,
    %59 = vector.extract_strided_slice %15 {offsets = [0, 5], sizes = [16, 1], strides = [1, 1]} : vector<16x32xf32> to vector<16x1xf32>
    %60 = vector.broadcast %59 : vector<16x1xf32> to vector<16x32xf32>
    %61 = arith.mulf %60, %33 : vector<16x32xf32>
    %62 = arith.truncf %61 : vector<16x32xf32> to vector<16x32xbf16>
    %c0_29 = arith.constant 0 : index
    %c160 = arith.constant 160 : index
    %63 = vector.load %arg15[%c0_29, %c160] : memref<16x1056xbf16, #tpu.memory_space<vmem>>, vector<16x32xbf16>
    tpu.vector_store %arg15[%c0_29, %c160], %62 {strides = array<i32>} : memref<16x1056xbf16, #tpu.memory_space<vmem>>, vector<16x32xbf16>,
    %64 = vector.extract_strided_slice %15 {offsets = [0, 6], sizes = [16, 1], strides = [1, 1]} : vector<16x32xf32> to vector<16x1xf32>
    %65 = vector.broadcast %64 : vector<16x1xf32> to vector<16x32xf32>
    %66 = arith.mulf %65, %33 : vector<16x32xf32>
    %67 = arith.truncf %66 : vector<16x32xf32> to vector<16x32xbf16>
    %c0_30 = arith.constant 0 : index
    %c192 = arith.constant 192 : index
    %68 = vector.load %arg15[%c0_30, %c192] : memref<16x1056xbf16, #tpu.memory_space<vmem>>, vector<16x32xbf16>
    tpu.vector_store %arg15[%c0_30, %c192], %67 {strides = array<i32>} : memref<16x1056xbf16, #tpu.memory_space<vmem>>, vector<16x32xbf16>,
    %69 = vector.extract_strided_slice %15 {offsets = [0, 7], sizes = [16, 1], strides = [1, 1]} : vector<16x32xf32> to vector<16x1xf32>
    %70 = vector.broadcast %69 : vector<16x1xf32> to vector<16x32xf32>
    %71 = arith.mulf %70, %33 : vector<16x32xf32>
    %72 = arith.truncf %71 : vector<16x32xf32> to vector<16x32xbf16>
    %c0_31 = arith.constant 0 : index
    %c224 = arith.constant 224 : index
    %73 = vector.load %arg15[%c0_31, %c224] : memref<16x1056xbf16, #tpu.memory_space<vmem>>, vector<16x32xbf16>
    tpu.vector_store %arg15[%c0_31, %c224], %72 {strides = array<i32>} : memref<16x1056xbf16, #tpu.memory_space<vmem>>, vector<16x32xbf16>,
    %74 = vector.extract_strided_slice %15 {offsets = [0, 8], sizes = [16, 1], strides = [1, 1]} : vector<16x32xf32> to vector<16x1xf32>
    %75 = vector.broadcast %74 : vector<16x1xf32> to vector<16x32xf32>
    %76 = arith.mulf %75, %33 : vector<16x32xf32>
    %77 = arith.truncf %76 : vector<16x32xf32> to vector<16x32xbf16>
    %c0_32 = arith.constant 0 : index
    %c256 = arith.constant 256 : index
    %78 = vector.load %arg15[%c0_32, %c256] : memref<16x1056xbf16, #tpu.memory_space<vmem>>, vector<16x32xbf16>
    tpu.vector_store %arg15[%c0_32, %c256], %77 {strides = array<i32>} : memref<16x1056xbf16, #tpu.memory_space<vmem>>, vector<16x32xbf16>,
    %79 = vector.extract_strided_slice %15 {offsets = [0, 9], sizes = [16, 1], strides = [1, 1]} : vector<16x32xf32> to vector<16x1xf32>
    %80 = vector.broadcast %79 : vector<16x1xf32> to vector<16x32xf32>
    %81 = arith.mulf %80, %33 : vector<16x32xf32>
    %82 = arith.truncf %81 : vector<16x32xf32> to vector<16x32xbf16>
    %c0_33 = arith.constant 0 : index
    %c288 = arith.constant 288 : index
    %83 = vector.load %arg15[%c0_33, %c288] : memref<16x1056xbf16, #tpu.memory_space<vmem>>, vector<16x32xbf16>
    tpu.vector_store %arg15[%c0_33, %c288], %82 {strides = array<i32>} : memref<16x1056xbf16, #tpu.memory_space<vmem>>, vector<16x32xbf16>,
    %84 = vector.extract_strided_slice %15 {offsets = [0, 10], sizes = [16, 1], strides = [1, 1]} : vector<16x32xf32> to vector<16x1xf32>
    %85 = vector.broadcast %84 : vector<16x1xf32> to vector<16x32xf32>
    %86 = arith.mulf %85, %33 : vector<16x32xf32>
    %87 = arith.truncf %86 : vector<16x32xf32> to vector<16x32xbf16>
    %c0_34 = arith.constant 0 : index
    %c320 = arith.constant 320 : index
    %88 = vector.load %arg15[%c0_34, %c320] : memref<16x1056xbf16, #tpu.memory_space<vmem>>, vector<16x32xbf16>
    tpu.vector_store %arg15[%c0_34, %c320], %87 {strides = array<i32>} : memref<16x1056xbf16, #tpu.memory_space<vmem>>, vector<16x32xbf16>,
    %89 = vector.extract_strided_slice %15 {offsets = [0, 11], sizes = [16, 1], strides = [1, 1]} : vector<16x32xf32> to vector<16x1xf32>
    %90 = vector.broadcast %89 : vector<16x1xf32> to vector<16x32xf32>
    %91 = arith.mulf %90, %33 : vector<16x32xf32>
    %92 = arith.truncf %91 : vector<16x32xf32> to vector<16x32xbf16>
    %c0_35 = arith.constant 0 : index
    %c352 = arith.constant 352 : index
    %93 = vector.load %arg15[%c0_35, %c352] : memref<16x1056xbf16, #tpu.memory_space<vmem>>, vector<16x32xbf16>
    tpu.vector_store %arg15[%c0_35, %c352], %92 {strides = array<i32>} : memref<16x1056xbf16, #tpu.memory_space<vmem>>, vector<16x32xbf16>,
    %94 = vector.extract_strided_slice %15 {offsets = [0, 12], sizes = [16, 1], strides = [1, 1]} : vector<16x32xf32> to vector<16x1xf32>
    %95 = vector.broadcast %94 : vector<16x1xf32> to vector<16x32xf32>
    %96 = arith.mulf %95, %33 : vector<16x32xf32>
    %97 = arith.truncf %96 : vector<16x32xf32> to vector<16x32xbf16>
    %c0_36 = arith.constant 0 : index
    %c384 = arith.constant 384 : index
    %98 = vector.load %arg15[%c0_36, %c384] : memref<16x1056xbf16, #tpu.memory_space<vmem>>, vector<16x32xbf16>
    tpu.vector_store %arg15[%c0_36, %c384], %97 {strides = array<i32>} : memref<16x1056xbf16, #tpu.memory_space<vmem>>, vector<16x32xbf16>,
    %99 = vector.extract_strided_slice %15 {offsets = [0, 13], sizes = [16, 1], strides = [1, 1]} : vector<16x32xf32> to vector<16x1xf32>
    %100 = vector.broadcast %99 : vector<16x1xf32> to vector<16x32xf32>
    %101 = arith.mulf %100, %33 : vector<16x32xf32>
    %102 = arith.truncf %101 : vector<16x32xf32> to vector<16x32xbf16>
    %c0_37 = arith.constant 0 : index
    %c416 = arith.constant 416 : index
    %103 = vector.load %arg15[%c0_37, %c416] : memref<16x1056xbf16, #tpu.memory_space<vmem>>, vector<16x32xbf16>
    tpu.vector_store %arg15[%c0_37, %c416], %102 {strides = array<i32>} : memref<16x1056xbf16, #tpu.memory_space<vmem>>, vector<16x32xbf16>,
    %104 = vector.extract_strided_slice %15 {offsets = [0, 14], sizes = [16, 1], strides = [1, 1]} : vector<16x32xf32> to vector<16x1xf32>
    %105 = vector.broadcast %104 : vector<16x1xf32> to vector<16x32xf32>
    %106 = arith.mulf %105, %33 : vector<16x32xf32>
    %107 = arith.truncf %106 : vector<16x32xf32> to vector<16x32xbf16>
    %c0_38 = arith.constant 0 : index
    %c448 = arith.constant 448 : index
    %108 = vector.load %arg15[%c0_38, %c448] : memref<16x1056xbf16, #tpu.memory_space<vmem>>, vector<16x32xbf16>
    tpu.vector_store %arg15[%c0_38, %c448], %107 {strides = array<i32>} : memref<16x1056xbf16, #tpu.memory_space<vmem>>, vector<16x32xbf16>,
    %109 = vector.extract_strided_slice %15 {offsets = [0, 15], sizes = [16, 1], strides = [1, 1]} : vector<16x32xf32> to vector<16x1xf32>
    %110 = vector.broadcast %109 : vector<16x1xf32> to vector<16x32xf32>
    %111 = arith.mulf %110, %33 : vector<16x32xf32>
    %112 = arith.truncf %111 : vector<16x32xf32> to vector<16x32xbf16>
    %c0_39 = arith.constant 0 : index
    %c480 = arith.constant 480 : index
    %113 = vector.load %arg15[%c0_39, %c480] : memref<16x1056xbf16, #tpu.memory_space<vmem>>, vector<16x32xbf16>
    tpu.vector_store %arg15[%c0_39, %c480], %112 {strides = array<i32>} : memref<16x1056xbf16, #tpu.memory_space<vmem>>, vector<16x32xbf16>,
    %114 = vector.extract_strided_slice %15 {offsets = [0, 16], sizes = [16, 1], strides = [1, 1]} : vector<16x32xf32> to vector<16x1xf32>
    %115 = vector.broadcast %114 : vector<16x1xf32> to vector<16x32xf32>
    %116 = arith.mulf %115, %33 : vector<16x32xf32>
    %117 = arith.truncf %116 : vector<16x32xf32> to vector<16x32xbf16>
    %c0_40 = arith.constant 0 : index
    %c512 = arith.constant 512 : index
    %118 = vector.load %arg15[%c0_40, %c512] : memref<16x1056xbf16, #tpu.memory_space<vmem>>, vector<16x32xbf16>
    tpu.vector_store %arg15[%c0_40, %c512], %117 {strides = array<i32>} : memref<16x1056xbf16, #tpu.memory_space<vmem>>, vector<16x32xbf16>,
    %119 = vector.extract_strided_slice %15 {offsets = [0, 17], sizes = [16, 1], strides = [1, 1]} : vector<16x32xf32> to vector<16x1xf32>
    %120 = vector.broadcast %119 : vector<16x1xf32> to vector<16x32xf32>
    %121 = arith.mulf %120, %33 : vector<16x32xf32>
    %122 = arith.truncf %121 : vector<16x32xf32> to vector<16x32xbf16>
    %c0_41 = arith.constant 0 : index
    %c544 = arith.constant 544 : index
    %123 = vector.load %arg15[%c0_41, %c544] : memref<16x1056xbf16, #tpu.memory_space<vmem>>, vector<16x32xbf16>
    tpu.vector_store %arg15[%c0_41, %c544], %122 {strides = array<i32>} : memref<16x1056xbf16, #tpu.memory_space<vmem>>, vector<16x32xbf16>,
    %124 = vector.extract_strided_slice %15 {offsets = [0, 18], sizes = [16, 1], strides = [1, 1]} : vector<16x32xf32> to vector<16x1xf32>
    %125 = vector.broadcast %124 : vector<16x1xf32> to vector<16x32xf32>
    %126 = arith.mulf %125, %33 : vector<16x32xf32>
    %127 = arith.truncf %126 : vector<16x32xf32> to vector<16x32xbf16>
    %c0_42 = arith.constant 0 : index
    %c576 = arith.constant 576 : index
    %128 = vector.load %arg15[%c0_42, %c576] : memref<16x1056xbf16, #tpu.memory_space<vmem>>, vector<16x32xbf16>
    tpu.vector_store %arg15[%c0_42, %c576], %127 {strides = array<i32>} : memref<16x1056xbf16, #tpu.memory_space<vmem>>, vector<16x32xbf16>,
    %129 = vector.extract_strided_slice %15 {offsets = [0, 19], sizes = [16, 1], strides = [1, 1]} : vector<16x32xf32> to vector<16x1xf32>
    %130 = vector.broadcast %129 : vector<16x1xf32> to vector<16x32xf32>
    %131 = arith.mulf %130, %33 : vector<16x32xf32>
    %132 = arith.truncf %131 : vector<16x32xf32> to vector<16x32xbf16>
    %c0_43 = arith.constant 0 : index
    %c608 = arith.constant 608 : index
    %133 = vector.load %arg15[%c0_43, %c608] : memref<16x1056xbf16, #tpu.memory_space<vmem>>, vector<16x32xbf16>
    tpu.vector_store %arg15[%c0_43, %c608], %132 {strides = array<i32>} : memref<16x1056xbf16, #tpu.memory_space<vmem>>, vector<16x32xbf16>,
    %134 = vector.extract_strided_slice %15 {offsets = [0, 20], sizes = [16, 1], strides = [1, 1]} : vector<16x32xf32> to vector<16x1xf32>
    %135 = vector.broadcast %134 : vector<16x1xf32> to vector<16x32xf32>
    %136 = arith.mulf %135, %33 : vector<16x32xf32>
    %137 = arith.truncf %136 : vector<16x32xf32> to vector<16x32xbf16>
    %c0_44 = arith.constant 0 : index
    %c640 = arith.constant 640 : index
    %138 = vector.load %arg15[%c0_44, %c640] : memref<16x1056xbf16, #tpu.memory_space<vmem>>, vector<16x32xbf16>
    tpu.vector_store %arg15[%c0_44, %c640], %137 {strides = array<i32>} : memref<16x1056xbf16, #tpu.memory_space<vmem>>, vector<16x32xbf16>,
    %139 = vector.extract_strided_slice %15 {offsets = [0, 21], sizes = [16, 1], strides = [1, 1]} : vector<16x32xf32> to vector<16x1xf32>
    %140 = vector.broadcast %139 : vector<16x1xf32> to vector<16x32xf32>
    %141 = arith.mulf %140, %33 : vector<16x32xf32>
    %142 = arith.truncf %141 : vector<16x32xf32> to vector<16x32xbf16>
    %c0_45 = arith.constant 0 : index
    %c672 = arith.constant 672 : index
    %143 = vector.load %arg15[%c0_45, %c672] : memref<16x1056xbf16, #tpu.memory_space<vmem>>, vector<16x32xbf16>
    tpu.vector_store %arg15[%c0_45, %c672], %142 {strides = array<i32>} : memref<16x1056xbf16, #tpu.memory_space<vmem>>, vector<16x32xbf16>,
    %144 = vector.extract_strided_slice %15 {offsets = [0, 22], sizes = [16, 1], strides = [1, 1]} : vector<16x32xf32> to vector<16x1xf32>
    %145 = vector.broadcast %144 : vector<16x1xf32> to vector<16x32xf32>
    %146 = arith.mulf %145, %33 : vector<16x32xf32>
    %147 = arith.truncf %146 : vector<16x32xf32> to vector<16x32xbf16>
    %c0_46 = arith.constant 0 : index
    %c704 = arith.constant 704 : index
    %148 = vector.load %arg15[%c0_46, %c704] : memref<16x1056xbf16, #tpu.memory_space<vmem>>, vector<16x32xbf16>
    tpu.vector_store %arg15[%c0_46, %c704], %147 {strides = array<i32>} : memref<16x1056xbf16, #tpu.memory_space<vmem>>, vector<16x32xbf16>,
    %149 = vector.extract_strided_slice %15 {offsets = [0, 23], sizes = [16, 1], strides = [1, 1]} : vector<16x32xf32> to vector<16x1xf32>
    %150 = vector.broadcast %149 : vector<16x1xf32> to vector<16x32xf32>
    %151 = arith.mulf %150, %33 : vector<16x32xf32>
    %152 = arith.truncf %151 : vector<16x32xf32> to vector<16x32xbf16>
    %c0_47 = arith.constant 0 : index
    %c736 = arith.constant 736 : index
    %153 = vector.load %arg15[%c0_47, %c736] : memref<16x1056xbf16, #tpu.memory_space<vmem>>, vector<16x32xbf16>
    tpu.vector_store %arg15[%c0_47, %c736], %152 {strides = array<i32>} : memref<16x1056xbf16, #tpu.memory_space<vmem>>, vector<16x32xbf16>,
    %154 = vector.extract_strided_slice %15 {offsets = [0, 24], sizes = [16, 1], strides = [1, 1]} : vector<16x32xf32> to vector<16x1xf32>
    %155 = vector.broadcast %154 : vector<16x1xf32> to vector<16x32xf32>
    %156 = arith.mulf %155, %33 : vector<16x32xf32>
    %157 = arith.truncf %156 : vector<16x32xf32> to vector<16x32xbf16>
    %c0_48 = arith.constant 0 : index
    %c768 = arith.constant 768 : index
    %158 = vector.load %arg15[%c0_48, %c768] : memref<16x1056xbf16, #tpu.memory_space<vmem>>, vector<16x32xbf16>
    tpu.vector_store %arg15[%c0_48, %c768], %157 {strides = array<i32>} : memref<16x1056xbf16, #tpu.memory_space<vmem>>, vector<16x32xbf16>,
    %159 = vector.extract_strided_slice %15 {offsets = [0, 25], sizes = [16, 1], strides = [1, 1]} : vector<16x32xf32> to vector<16x1xf32>
    %160 = vector.broadcast %159 : vector<16x1xf32> to vector<16x32xf32>
    %161 = arith.mulf %160, %33 : vector<16x32xf32>
    %162 = arith.truncf %161 : vector<16x32xf32> to vector<16x32xbf16>
    %c0_49 = arith.constant 0 : index
    %c800 = arith.constant 800 : index
    %163 = vector.load %arg15[%c0_49, %c800] : memref<16x1056xbf16, #tpu.memory_space<vmem>>, vector<16x32xbf16>
    tpu.vector_store %arg15[%c0_49, %c800], %162 {strides = array<i32>} : memref<16x1056xbf16, #tpu.memory_space<vmem>>, vector<16x32xbf16>,
    %164 = vector.extract_strided_slice %15 {offsets = [0, 26], sizes = [16, 1], strides = [1, 1]} : vector<16x32xf32> to vector<16x1xf32>
    %165 = vector.broadcast %164 : vector<16x1xf32> to vector<16x32xf32>
    %166 = arith.mulf %165, %33 : vector<16x32xf32>
    %167 = arith.truncf %166 : vector<16x32xf32> to vector<16x32xbf16>
    %c0_50 = arith.constant 0 : index
    %c832 = arith.constant 832 : index
    %168 = vector.load %arg15[%c0_50, %c832] : memref<16x1056xbf16, #tpu.memory_space<vmem>>, vector<16x32xbf16>
    tpu.vector_store %arg15[%c0_50, %c832], %167 {strides = array<i32>} : memref<16x1056xbf16, #tpu.memory_space<vmem>>, vector<16x32xbf16>,
    %169 = vector.extract_strided_slice %15 {offsets = [0, 27], sizes = [16, 1], strides = [1, 1]} : vector<16x32xf32> to vector<16x1xf32>
    %170 = vector.broadcast %169 : vector<16x1xf32> to vector<16x32xf32>
    %171 = arith.mulf %170, %33 : vector<16x32xf32>
    %172 = arith.truncf %171 : vector<16x32xf32> to vector<16x32xbf16>
    %c0_51 = arith.constant 0 : index
    %c864 = arith.constant 864 : index
    %173 = vector.load %arg15[%c0_51, %c864] : memref<16x1056xbf16, #tpu.memory_space<vmem>>, vector<16x32xbf16>
    tpu.vector_store %arg15[%c0_51, %c864], %172 {strides = array<i32>} : memref<16x1056xbf16, #tpu.memory_space<vmem>>, vector<16x32xbf16>,
    %174 = vector.extract_strided_slice %15 {offsets = [0, 28], sizes = [16, 1], strides = [1, 1]} : vector<16x32xf32> to vector<16x1xf32>
    %175 = vector.broadcast %174 : vector<16x1xf32> to vector<16x32xf32>
    %176 = arith.mulf %175, %33 : vector<16x32xf32>
    %177 = arith.truncf %176 : vector<16x32xf32> to vector<16x32xbf16>
    %c0_52 = arith.constant 0 : index
    %c896 = arith.constant 896 : index
    %178 = vector.load %arg15[%c0_52, %c896] : memref<16x1056xbf16, #tpu.memory_space<vmem>>, vector<16x32xbf16>
    tpu.vector_store %arg15[%c0_52, %c896], %177 {strides = array<i32>} : memref<16x1056xbf16, #tpu.memory_space<vmem>>, vector<16x32xbf16>,
    %179 = vector.extract_strided_slice %15 {offsets = [0, 29], sizes = [16, 1], strides = [1, 1]} : vector<16x32xf32> to vector<16x1xf32>
    %180 = vector.broadcast %179 : vector<16x1xf32> to vector<16x32xf32>
    %181 = arith.mulf %180, %33 : vector<16x32xf32>
    %182 = arith.truncf %181 : vector<16x32xf32> to vector<16x32xbf16>
    %c0_53 = arith.constant 0 : index
    %c928 = arith.constant 928 : index
    %183 = vector.load %arg15[%c0_53, %c928] : memref<16x1056xbf16, #tpu.memory_space<vmem>>, vector<16x32xbf16>
    tpu.vector_store %arg15[%c0_53, %c928], %182 {strides = array<i32>} : memref<16x1056xbf16, #tpu.memory_space<vmem>>, vector<16x32xbf16>,
    %184 = vector.extract_strided_slice %15 {offsets = [0, 30], sizes = [16, 1], strides = [1, 1]} : vector<16x32xf32> to vector<16x1xf32>
    %185 = vector.broadcast %184 : vector<16x1xf32> to vector<16x32xf32>
    %186 = arith.mulf %185, %33 : vector<16x32xf32>
    %187 = arith.truncf %186 : vector<16x32xf32> to vector<16x32xbf16>
    %c0_54 = arith.constant 0 : index
    %c960 = arith.constant 960 : index
    %188 = vector.load %arg15[%c0_54, %c960] : memref<16x1056xbf16, #tpu.memory_space<vmem>>, vector<16x32xbf16>
    tpu.vector_store %arg15[%c0_54, %c960], %187 {strides = array<i32>} : memref<16x1056xbf16, #tpu.memory_space<vmem>>, vector<16x32xbf16>,
    %189 = vector.extract_strided_slice %15 {offsets = [0, 31], sizes = [16, 1], strides = [1, 1]} : vector<16x32xf32> to vector<16x1xf32>
    %190 = vector.broadcast %189 : vector<16x1xf32> to vector<16x32xf32>
    %191 = arith.mulf %190, %33 : vector<16x32xf32>
    %192 = arith.truncf %191 : vector<16x32xf32> to vector<16x32xbf16>
    %c0_55 = arith.constant 0 : index
    %c992 = arith.constant 992 : index
    %193 = vector.load %arg15[%c0_55, %c992] : memref<16x1056xbf16, #tpu.memory_space<vmem>>, vector<16x32xbf16>
    tpu.vector_store %arg15[%c0_55, %c992], %192 {strides = array<i32>} : memref<16x1056xbf16, #tpu.memory_space<vmem>>, vector<16x32xbf16>,
    %194 = arith.truncf %33 : vector<16x32xf32> to vector<16x32xbf16>
    %c0_56 = arith.constant 0 : index
    %c1024 = arith.constant 1024 : index
    %195 = vector.load %arg15[%c0_56, %c1024] : memref<16x1056xbf16, #tpu.memory_space<vmem>>, vector<16x32xbf16>
    tpu.vector_store %arg15[%c0_56, %c1024], %194 {strides = array<i32>} : memref<16x1056xbf16, #tpu.memory_space<vmem>>, vector<16x32xbf16>,
    %c0_57 = arith.constant 0 : index
    %c0_58 = arith.constant 0 : index
    %196 = vector.load %arg15[%c0_57, %c0_58] : memref<16x1056xbf16, #tpu.memory_space<vmem>>, vector<16x1056xbf16>
    %c0_59 = arith.constant 0 : index
    %c0_60 = arith.constant 0 : index
    %197 = vector.load %arg8[%c0_59, %c0_60] : memref<1056x32xbf16, #tpu.memory_space<vmem>>, vector<1056x32xbf16>
    %cst_61 = arith.constant dense<0.000000e+00> : vector<16x32xf32>
    %198 = tpu.matmul %196, %197, %cst_61 {dimension_numbers = #tpu.dot_dimension_numbers<[1], [0], [0], [1], [0, 0, 1, 1], [], []>} : vector<16x1056xbf16>, vector<1056x32xbf16>, vector<16x32xf32> -> vector<16x32xf32>
    %199 = arith.truncf %198 : vector<16x32xf32> to vector<16x32xbf16>
    %cst_62 = arith.constant dense<0.000000e+00> : vector<8x32xf32>
    %200 = tpu.matmul %31, %199, %cst_62 {dimension_numbers = #tpu.dot_dimension_numbers<[1], [0], [0], [1], [0, 0, 1, 1], [], []>} : vector<8x16xbf16>, vector<16x32xbf16>, vector<8x32xf32> -> vector<8x32xf32>
    %c0_63 = arith.constant 0 : index
    %c0_64 = arith.constant 0 : index
    %201 = vector.load %arg9[%c0_63, %c0_64] : memref<32x32xbf16, #tpu.memory_space<vmem>>, vector<32x32xbf16>
    %cst_65 = arith.constant dense<0.000000e+00> : vector<8x32xf32>
    %202 = tpu.matmul %32, %201, %cst_65 {dimension_numbers = #tpu.dot_dimension_numbers<[1], [0], [0], [1], [0, 0, 1, 1], [], []>} : vector<8x32xbf16>, vector<32x32xbf16>, vector<8x32xf32> -> vector<8x32xf32>
    %203 = arith.addf %200, %202 : vector<8x32xf32>
    %c0_66 = arith.constant 0 : index
    %c0_67 = arith.constant 0 : index
    %204 = vector.load %arg10[%c0_66, %c0_67] : memref<1x32xf32, #tpu.memory_space<vmem>>, vector<1x32xf32>
    %205 = vector.broadcast %204 : vector<1x32xf32> to vector<8x32xf32>
    %206 = arith.addf %203, %205 : vector<8x32xf32>
    %cst_68 = arith.constant 0.000000e+00 : f32
    %207 = vector.broadcast %cst_68 : f32 to vector<8x32xf32>
    %208 = arith.maximumf %206, %207 : vector<8x32xf32>
    %209 = arith.truncf %208 : vector<8x32xf32> to vector<8x32xbf16>
    %c0_69 = arith.constant 0 : index
    %c0_70 = arith.constant 0 : index
    %210 = vector.load %arg11[%c0_69, %c0_70] : memref<32x128xbf16, #tpu.memory_space<vmem>>, vector<32x128xbf16>
    %cst_71 = arith.constant dense<0.000000e+00> : vector<8x128xf32>
    %211 = tpu.matmul %209, %210, %cst_71 {dimension_numbers = #tpu.dot_dimension_numbers<[1], [0], [0], [1], [0, 0, 1, 1], [], []>} : vector<8x32xbf16>, vector<32x128xbf16>, vector<8x128xf32> -> vector<8x128xf32>
    %c0_72 = arith.constant 0 : index
    %c0_73 = arith.constant 0 : index
    %212 = vector.load %arg12[%c0_72, %c0_73] : memref<32x128xbf16, #tpu.memory_space<vmem>>, vector<32x128xbf16>
    %cst_74 = arith.constant dense<0.000000e+00> : vector<8x128xf32>
    %213 = tpu.matmul %32, %212, %cst_74 {dimension_numbers = #tpu.dot_dimension_numbers<[1], [0], [0], [1], [0, 0, 1, 1], [], []>} : vector<8x32xbf16>, vector<32x128xbf16>, vector<8x128xf32> -> vector<8x128xf32>
    %214 = arith.addf %211, %213 : vector<8x128xf32>
    %c0_75 = arith.constant 0 : index
    %c0_76 = arith.constant 0 : index
    %215 = vector.load %arg13[%c0_75, %c0_76] : memref<1x128xf32, #tpu.memory_space<vmem>>, vector<1x128xf32>
    %216 = vector.broadcast %215 : vector<1x128xf32> to vector<8x128xf32>
    %217 = arith.addf %214, %216 : vector<8x128xf32>
    %218 = vector.extract_strided_slice %217 {offsets = [0, 0], sizes = [8, 32], strides = [1, 1]} : vector<8x128xf32> to vector<8x32xf32>
    %219 = arith.negf %218 : vector<8x32xf32>
    %220 = math.exp %219 : vector<8x32xf32>
    %cst_77 = arith.constant 1.000000e+00 : f32
    %221 = vector.broadcast %cst_77 : f32 to vector<8x32xf32>
    %222 = arith.addf %221, %220 : vector<8x32xf32>
    %223 = arith.divf %221, %222 : vector<8x32xf32>
    %224 = vector.extract_strided_slice %217 {offsets = [0, 32], sizes = [8, 32], strides = [1, 1]} : vector<8x128xf32> to vector<8x32xf32>
    %225 = arith.negf %224 : vector<8x32xf32>
    %226 = math.exp %225 : vector<8x32xf32>
    %cst_78 = arith.constant 1.000000e+00 : f32
    %227 = vector.broadcast %cst_78 : f32 to vector<8x32xf32>
    %228 = arith.addf %227, %226 : vector<8x32xf32>
    %229 = arith.divf %227, %228 : vector<8x32xf32>
    %230 = vector.extract_strided_slice %217 {offsets = [0, 64], sizes = [8, 32], strides = [1, 1]} : vector<8x128xf32> to vector<8x32xf32>
    %231 = vector.extract_strided_slice %217 {offsets = [0, 96], sizes = [8, 32], strides = [1, 1]} : vector<8x128xf32> to vector<8x32xf32>
    %232 = arith.mulf %223, %231 : vector<8x32xf32>
    %233 = arith.addf %230, %232 : vector<8x32xf32>
    %234 = math.tanh %233 : vector<8x32xf32>
    %cst_79 = arith.constant 1.000000e+00 : f32
    %235 = vector.broadcast %cst_79 : f32 to vector<8x32xf32>
    %236 = arith.subf %235, %229 : vector<8x32xf32>
    %237 = arith.mulf %236, %234 : vector<8x32xf32>
    %238 = arith.mulf %229, %7 : vector<8x32xf32>
    %239 = arith.addf %237, %238 : vector<8x32xf32>
    %240 = arith.truncf %239 : vector<8x32xf32> to vector<8x32xbf16>
    %cst_80 = arith.constant dense<0.000000e+00> : vector<16x32xf32>
    %241 = tpu.matmul %23, %240, %cst_80 {dimension_numbers = #tpu.dot_dimension_numbers<[1], [0], [0], [1], [0, 0, 1, 1], [], []>} : vector<16x8xbf16>, vector<8x32xbf16>, vector<16x32xf32> -> vector<16x32xf32>
    %242 = vector.extract_strided_slice %15 {offsets = [0, 0], sizes = [16, 1], strides = [1, 1]} : vector<16x32xf32> to vector<16x1xf32>
    %243 = vector.broadcast %242 : vector<16x1xf32> to vector<16x32xf32>
    %244 = arith.mulf %243, %241 : vector<16x32xf32>
    %245 = arith.truncf %244 : vector<16x32xf32> to vector<16x32xbf16>
    %c0_81 = arith.constant 0 : index
    %c0_82 = arith.constant 0 : index
    %246 = vector.load %arg15[%c0_81, %c0_82] : memref<16x1056xbf16, #tpu.memory_space<vmem>>, vector<16x32xbf16>
    tpu.vector_store %arg15[%c0_81, %c0_82], %245 {strides = array<i32>} : memref<16x1056xbf16, #tpu.memory_space<vmem>>, vector<16x32xbf16>,
    %247 = vector.extract_strided_slice %15 {offsets = [0, 1], sizes = [16, 1], strides = [1, 1]} : vector<16x32xf32> to vector<16x1xf32>
    %248 = vector.broadcast %247 : vector<16x1xf32> to vector<16x32xf32>
    %249 = arith.mulf %248, %241 : vector<16x32xf32>
    %250 = arith.truncf %249 : vector<16x32xf32> to vector<16x32xbf16>
    %c0_83 = arith.constant 0 : index
    %c32_84 = arith.constant 32 : index
    %251 = vector.load %arg15[%c0_83, %c32_84] : memref<16x1056xbf16, #tpu.memory_space<vmem>>, vector<16x32xbf16>
    tpu.vector_store %arg15[%c0_83, %c32_84], %250 {strides = array<i32>} : memref<16x1056xbf16, #tpu.memory_space<vmem>>, vector<16x32xbf16>,
    %252 = vector.extract_strided_slice %15 {offsets = [0, 2], sizes = [16, 1], strides = [1, 1]} : vector<16x32xf32> to vector<16x1xf32>
    %253 = vector.broadcast %252 : vector<16x1xf32> to vector<16x32xf32>
    %254 = arith.mulf %253, %241 : vector<16x32xf32>
    %255 = arith.truncf %254 : vector<16x32xf32> to vector<16x32xbf16>
    %c0_85 = arith.constant 0 : index
    %c64_86 = arith.constant 64 : index
    %256 = vector.load %arg15[%c0_85, %c64_86] : memref<16x1056xbf16, #tpu.memory_space<vmem>>, vector<16x32xbf16>
    tpu.vector_store %arg15[%c0_85, %c64_86], %255 {strides = array<i32>} : memref<16x1056xbf16, #tpu.memory_space<vmem>>, vector<16x32xbf16>,
    %257 = vector.extract_strided_slice %15 {offsets = [0, 3], sizes = [16, 1], strides = [1, 1]} : vector<16x32xf32> to vector<16x1xf32>
    %258 = vector.broadcast %257 : vector<16x1xf32> to vector<16x32xf32>
    %259 = arith.mulf %258, %241 : vector<16x32xf32>
    %260 = arith.truncf %259 : vector<16x32xf32> to vector<16x32xbf16>
    %c0_87 = arith.constant 0 : index
    %c96_88 = arith.constant 96 : index
    %261 = vector.load %arg15[%c0_87, %c96_88] : memref<16x1056xbf16, #tpu.memory_space<vmem>>, vector<16x32xbf16>
    tpu.vector_store %arg15[%c0_87, %c96_88], %260 {strides = array<i32>} : memref<16x1056xbf16, #tpu.memory_space<vmem>>, vector<16x32xbf16>,
    %262 = vector.extract_strided_slice %15 {offsets = [0, 4], sizes = [16, 1], strides = [1, 1]} : vector<16x32xf32> to vector<16x1xf32>
    %263 = vector.broadcast %262 : vector<16x1xf32> to vector<16x32xf32>
    %264 = arith.mulf %263, %241 : vector<16x32xf32>
    %265 = arith.truncf %264 : vector<16x32xf32> to vector<16x32xbf16>
    %c0_89 = arith.constant 0 : index
    %c128_90 = arith.constant 128 : index
    %266 = vector.load %arg15[%c0_89, %c128_90] : memref<16x1056xbf16, #tpu.memory_space<vmem>>, vector<16x32xbf16>
    tpu.vector_store %arg15[%c0_89, %c128_90], %265 {strides = array<i32>} : memref<16x1056xbf16, #tpu.memory_space<vmem>>, vector<16x32xbf16>,
    %267 = vector.extract_strided_slice %15 {offsets = [0, 5], sizes = [16, 1], strides = [1, 1]} : vector<16x32xf32> to vector<16x1xf32>
    %268 = vector.broadcast %267 : vector<16x1xf32> to vector<16x32xf32>
    %269 = arith.mulf %268, %241 : vector<16x32xf32>
    %270 = arith.truncf %269 : vector<16x32xf32> to vector<16x32xbf16>
    %c0_91 = arith.constant 0 : index
    %c160_92 = arith.constant 160 : index
    %271 = vector.load %arg15[%c0_91, %c160_92] : memref<16x1056xbf16, #tpu.memory_space<vmem>>, vector<16x32xbf16>
    tpu.vector_store %arg15[%c0_91, %c160_92], %270 {strides = array<i32>} : memref<16x1056xbf16, #tpu.memory_space<vmem>>, vector<16x32xbf16>,
    %272 = vector.extract_strided_slice %15 {offsets = [0, 6], sizes = [16, 1], strides = [1, 1]} : vector<16x32xf32> to vector<16x1xf32>
    %273 = vector.broadcast %272 : vector<16x1xf32> to vector<16x32xf32>
    %274 = arith.mulf %273, %241 : vector<16x32xf32>
    %275 = arith.truncf %274 : vector<16x32xf32> to vector<16x32xbf16>
    %c0_93 = arith.constant 0 : index
    %c192_94 = arith.constant 192 : index
    %276 = vector.load %arg15[%c0_93, %c192_94] : memref<16x1056xbf16, #tpu.memory_space<vmem>>, vector<16x32xbf16>
    tpu.vector_store %arg15[%c0_93, %c192_94], %275 {strides = array<i32>} : memref<16x1056xbf16, #tpu.memory_space<vmem>>, vector<16x32xbf16>,
    %277 = vector.extract_strided_slice %15 {offsets = [0, 7], sizes = [16, 1], strides = [1, 1]} : vector<16x32xf32> to vector<16x1xf32>
    %278 = vector.broadcast %277 : vector<16x1xf32> to vector<16x32xf32>
    %279 = arith.mulf %278, %241 : vector<16x32xf32>
    %280 = arith.truncf %279 : vector<16x32xf32> to vector<16x32xbf16>
    %c0_95 = arith.constant 0 : index
    %c224_96 = arith.constant 224 : index
    %281 = vector.load %arg15[%c0_95, %c224_96] : memref<16x1056xbf16, #tpu.memory_space<vmem>>, vector<16x32xbf16>
    tpu.vector_store %arg15[%c0_95, %c224_96], %280 {strides = array<i32>} : memref<16x1056xbf16, #tpu.memory_space<vmem>>, vector<16x32xbf16>,
    %282 = vector.extract_strided_slice %15 {offsets = [0, 8], sizes = [16, 1], strides = [1, 1]} : vector<16x32xf32> to vector<16x1xf32>
    %283 = vector.broadcast %282 : vector<16x1xf32> to vector<16x32xf32>
    %284 = arith.mulf %283, %241 : vector<16x32xf32>
    %285 = arith.truncf %284 : vector<16x32xf32> to vector<16x32xbf16>
    %c0_97 = arith.constant 0 : index
    %c256_98 = arith.constant 256 : index
    %286 = vector.load %arg15[%c0_97, %c256_98] : memref<16x1056xbf16, #tpu.memory_space<vmem>>, vector<16x32xbf16>
    tpu.vector_store %arg15[%c0_97, %c256_98], %285 {strides = array<i32>} : memref<16x1056xbf16, #tpu.memory_space<vmem>>, vector<16x32xbf16>,
    %287 = vector.extract_strided_slice %15 {offsets = [0, 9], sizes = [16, 1], strides = [1, 1]} : vector<16x32xf32> to vector<16x1xf32>
    %288 = vector.broadcast %287 : vector<16x1xf32> to vector<16x32xf32>
    %289 = arith.mulf %288, %241 : vector<16x32xf32>
    %290 = arith.truncf %289 : vector<16x32xf32> to vector<16x32xbf16>
    %c0_99 = arith.constant 0 : index
    %c288_100 = arith.constant 288 : index
    %291 = vector.load %arg15[%c0_99, %c288_100] : memref<16x1056xbf16, #tpu.memory_space<vmem>>, vector<16x32xbf16>
    tpu.vector_store %arg15[%c0_99, %c288_100], %290 {strides = array<i32>} : memref<16x1056xbf16, #tpu.memory_space<vmem>>, vector<16x32xbf16>,
    %292 = vector.extract_strided_slice %15 {offsets = [0, 10], sizes = [16, 1], strides = [1, 1]} : vector<16x32xf32> to vector<16x1xf32>
    %293 = vector.broadcast %292 : vector<16x1xf32> to vector<16x32xf32>
    %294 = arith.mulf %293, %241 : vector<16x32xf32>
    %295 = arith.truncf %294 : vector<16x32xf32> to vector<16x32xbf16>
    %c0_101 = arith.constant 0 : index
    %c320_102 = arith.constant 320 : index
    %296 = vector.load %arg15[%c0_101, %c320_102] : memref<16x1056xbf16, #tpu.memory_space<vmem>>, vector<16x32xbf16>
    tpu.vector_store %arg15[%c0_101, %c320_102], %295 {strides = array<i32>} : memref<16x1056xbf16, #tpu.memory_space<vmem>>, vector<16x32xbf16>,
    %297 = vector.extract_strided_slice %15 {offsets = [0, 11], sizes = [16, 1], strides = [1, 1]} : vector<16x32xf32> to vector<16x1xf32>
    %298 = vector.broadcast %297 : vector<16x1xf32> to vector<16x32xf32>
    %299 = arith.mulf %298, %241 : vector<16x32xf32>
    %300 = arith.truncf %299 : vector<16x32xf32> to vector<16x32xbf16>
    %c0_103 = arith.constant 0 : index
    %c352_104 = arith.constant 352 : index
    %301 = vector.load %arg15[%c0_103, %c352_104] : memref<16x1056xbf16, #tpu.memory_space<vmem>>, vector<16x32xbf16>
    tpu.vector_store %arg15[%c0_103, %c352_104], %300 {strides = array<i32>} : memref<16x1056xbf16, #tpu.memory_space<vmem>>, vector<16x32xbf16>,
    %302 = vector.extract_strided_slice %15 {offsets = [0, 12], sizes = [16, 1], strides = [1, 1]} : vector<16x32xf32> to vector<16x1xf32>
    %303 = vector.broadcast %302 : vector<16x1xf32> to vector<16x32xf32>
    %304 = arith.mulf %303, %241 : vector<16x32xf32>
    %305 = arith.truncf %304 : vector<16x32xf32> to vector<16x32xbf16>
    %c0_105 = arith.constant 0 : index
    %c384_106 = arith.constant 384 : index
    %306 = vector.load %arg15[%c0_105, %c384_106] : memref<16x1056xbf16, #tpu.memory_space<vmem>>, vector<16x32xbf16>
    tpu.vector_store %arg15[%c0_105, %c384_106], %305 {strides = array<i32>} : memref<16x1056xbf16, #tpu.memory_space<vmem>>, vector<16x32xbf16>,
    %307 = vector.extract_strided_slice %15 {offsets = [0, 13], sizes = [16, 1], strides = [1, 1]} : vector<16x32xf32> to vector<16x1xf32>
    %308 = vector.broadcast %307 : vector<16x1xf32> to vector<16x32xf32>
    %309 = arith.mulf %308, %241 : vector<16x32xf32>
    %310 = arith.truncf %309 : vector<16x32xf32> to vector<16x32xbf16>
    %c0_107 = arith.constant 0 : index
    %c416_108 = arith.constant 416 : index
    %311 = vector.load %arg15[%c0_107, %c416_108] : memref<16x1056xbf16, #tpu.memory_space<vmem>>, vector<16x32xbf16>
    tpu.vector_store %arg15[%c0_107, %c416_108], %310 {strides = array<i32>} : memref<16x1056xbf16, #tpu.memory_space<vmem>>, vector<16x32xbf16>,
    %312 = vector.extract_strided_slice %15 {offsets = [0, 14], sizes = [16, 1], strides = [1, 1]} : vector<16x32xf32> to vector<16x1xf32>
    %313 = vector.broadcast %312 : vector<16x1xf32> to vector<16x32xf32>
    %314 = arith.mulf %313, %241 : vector<16x32xf32>
    %315 = arith.truncf %314 : vector<16x32xf32> to vector<16x32xbf16>
    %c0_109 = arith.constant 0 : index
    %c448_110 = arith.constant 448 : index
    %316 = vector.load %arg15[%c0_109, %c448_110] : memref<16x1056xbf16, #tpu.memory_space<vmem>>, vector<16x32xbf16>
    tpu.vector_store %arg15[%c0_109, %c448_110], %315 {strides = array<i32>} : memref<16x1056xbf16, #tpu.memory_space<vmem>>, vector<16x32xbf16>,
    %317 = vector.extract_strided_slice %15 {offsets = [0, 15], sizes = [16, 1], strides = [1, 1]} : vector<16x32xf32> to vector<16x1xf32>
    %318 = vector.broadcast %317 : vector<16x1xf32> to vector<16x32xf32>
    %319 = arith.mulf %318, %241 : vector<16x32xf32>
    %320 = arith.truncf %319 : vector<16x32xf32> to vector<16x32xbf16>
    %c0_111 = arith.constant 0 : index
    %c480_112 = arith.constant 480 : index
    %321 = vector.load %arg15[%c0_111, %c480_112] : memref<16x1056xbf16, #tpu.memory_space<vmem>>, vector<16x32xbf16>
    tpu.vector_store %arg15[%c0_111, %c480_112], %320 {strides = array<i32>} : memref<16x1056xbf16, #tpu.memory_space<vmem>>, vector<16x32xbf16>,
    %322 = vector.extract_strided_slice %15 {offsets = [0, 16], sizes = [16, 1], strides = [1, 1]} : vector<16x32xf32> to vector<16x1xf32>
    %323 = vector.broadcast %322 : vector<16x1xf32> to vector<16x32xf32>
    %324 = arith.mulf %323, %241 : vector<16x32xf32>
    %325 = arith.truncf %324 : vector<16x32xf32> to vector<16x32xbf16>
    %c0_113 = arith.constant 0 : index
    %c512_114 = arith.constant 512 : index
    %326 = vector.load %arg15[%c0_113, %c512_114] : memref<16x1056xbf16, #tpu.memory_space<vmem>>, vector<16x32xbf16>
    tpu.vector_store %arg15[%c0_113, %c512_114], %325 {strides = array<i32>} : memref<16x1056xbf16, #tpu.memory_space<vmem>>, vector<16x32xbf16>,
    %327 = vector.extract_strided_slice %15 {offsets = [0, 17], sizes = [16, 1], strides = [1, 1]} : vector<16x32xf32> to vector<16x1xf32>
    %328 = vector.broadcast %327 : vector<16x1xf32> to vector<16x32xf32>
    %329 = arith.mulf %328, %241 : vector<16x32xf32>
    %330 = arith.truncf %329 : vector<16x32xf32> to vector<16x32xbf16>
    %c0_115 = arith.constant 0 : index
    %c544_116 = arith.constant 544 : index
    %331 = vector.load %arg15[%c0_115, %c544_116] : memref<16x1056xbf16, #tpu.memory_space<vmem>>, vector<16x32xbf16>
    tpu.vector_store %arg15[%c0_115, %c544_116], %330 {strides = array<i32>} : memref<16x1056xbf16, #tpu.memory_space<vmem>>, vector<16x32xbf16>,
    %332 = vector.extract_strided_slice %15 {offsets = [0, 18], sizes = [16, 1], strides = [1, 1]} : vector<16x32xf32> to vector<16x1xf32>
    %333 = vector.broadcast %332 : vector<16x1xf32> to vector<16x32xf32>
    %334 = arith.mulf %333, %241 : vector<16x32xf32>
    %335 = arith.truncf %334 : vector<16x32xf32> to vector<16x32xbf16>
    %c0_117 = arith.constant 0 : index
    %c576_118 = arith.constant 576 : index
    %336 = vector.load %arg15[%c0_117, %c576_118] : memref<16x1056xbf16, #tpu.memory_space<vmem>>, vector<16x32xbf16>
    tpu.vector_store %arg15[%c0_117, %c576_118], %335 {strides = array<i32>} : memref<16x1056xbf16, #tpu.memory_space<vmem>>, vector<16x32xbf16>,
    %337 = vector.extract_strided_slice %15 {offsets = [0, 19], sizes = [16, 1], strides = [1, 1]} : vector<16x32xf32> to vector<16x1xf32>
    %338 = vector.broadcast %337 : vector<16x1xf32> to vector<16x32xf32>
    %339 = arith.mulf %338, %241 : vector<16x32xf32>
    %340 = arith.truncf %339 : vector<16x32xf32> to vector<16x32xbf16>
    %c0_119 = arith.constant 0 : index
    %c608_120 = arith.constant 608 : index
    %341 = vector.load %arg15[%c0_119, %c608_120] : memref<16x1056xbf16, #tpu.memory_space<vmem>>, vector<16x32xbf16>
    tpu.vector_store %arg15[%c0_119, %c608_120], %340 {strides = array<i32>} : memref<16x1056xbf16, #tpu.memory_space<vmem>>, vector<16x32xbf16>,
    %342 = vector.extract_strided_slice %15 {offsets = [0, 20], sizes = [16, 1], strides = [1, 1]} : vector<16x32xf32> to vector<16x1xf32>
    %343 = vector.broadcast %342 : vector<16x1xf32> to vector<16x32xf32>
    %344 = arith.mulf %343, %241 : vector<16x32xf32>
    %345 = arith.truncf %344 : vector<16x32xf32> to vector<16x32xbf16>
    %c0_121 = arith.constant 0 : index
    %c640_122 = arith.constant 640 : index
    %346 = vector.load %arg15[%c0_121, %c640_122] : memref<16x1056xbf16, #tpu.memory_space<vmem>>, vector<16x32xbf16>
    tpu.vector_store %arg15[%c0_121, %c640_122], %345 {strides = array<i32>} : memref<16x1056xbf16, #tpu.memory_space<vmem>>, vector<16x32xbf16>,
    %347 = vector.extract_strided_slice %15 {offsets = [0, 21], sizes = [16, 1], strides = [1, 1]} : vector<16x32xf32> to vector<16x1xf32>
    %348 = vector.broadcast %347 : vector<16x1xf32> to vector<16x32xf32>
    %349 = arith.mulf %348, %241 : vector<16x32xf32>
    %350 = arith.truncf %349 : vector<16x32xf32> to vector<16x32xbf16>
    %c0_123 = arith.constant 0 : index
    %c672_124 = arith.constant 672 : index
    %351 = vector.load %arg15[%c0_123, %c672_124] : memref<16x1056xbf16, #tpu.memory_space<vmem>>, vector<16x32xbf16>
    tpu.vector_store %arg15[%c0_123, %c672_124], %350 {strides = array<i32>} : memref<16x1056xbf16, #tpu.memory_space<vmem>>, vector<16x32xbf16>,
    %352 = vector.extract_strided_slice %15 {offsets = [0, 22], sizes = [16, 1], strides = [1, 1]} : vector<16x32xf32> to vector<16x1xf32>
    %353 = vector.broadcast %352 : vector<16x1xf32> to vector<16x32xf32>
    %354 = arith.mulf %353, %241 : vector<16x32xf32>
    %355 = arith.truncf %354 : vector<16x32xf32> to vector<16x32xbf16>
    %c0_125 = arith.constant 0 : index
    %c704_126 = arith.constant 704 : index
    %356 = vector.load %arg15[%c0_125, %c704_126] : memref<16x1056xbf16, #tpu.memory_space<vmem>>, vector<16x32xbf16>
    tpu.vector_store %arg15[%c0_125, %c704_126], %355 {strides = array<i32>} : memref<16x1056xbf16, #tpu.memory_space<vmem>>, vector<16x32xbf16>,
    %357 = vector.extract_strided_slice %15 {offsets = [0, 23], sizes = [16, 1], strides = [1, 1]} : vector<16x32xf32> to vector<16x1xf32>
    %358 = vector.broadcast %357 : vector<16x1xf32> to vector<16x32xf32>
    %359 = arith.mulf %358, %241 : vector<16x32xf32>
    %360 = arith.truncf %359 : vector<16x32xf32> to vector<16x32xbf16>
    %c0_127 = arith.constant 0 : index
    %c736_128 = arith.constant 736 : index
    %361 = vector.load %arg15[%c0_127, %c736_128] : memref<16x1056xbf16, #tpu.memory_space<vmem>>, vector<16x32xbf16>
    tpu.vector_store %arg15[%c0_127, %c736_128], %360 {strides = array<i32>} : memref<16x1056xbf16, #tpu.memory_space<vmem>>, vector<16x32xbf16>,
    %362 = vector.extract_strided_slice %15 {offsets = [0, 24], sizes = [16, 1], strides = [1, 1]} : vector<16x32xf32> to vector<16x1xf32>
    %363 = vector.broadcast %362 : vector<16x1xf32> to vector<16x32xf32>
    %364 = arith.mulf %363, %241 : vector<16x32xf32>
    %365 = arith.truncf %364 : vector<16x32xf32> to vector<16x32xbf16>
    %c0_129 = arith.constant 0 : index
    %c768_130 = arith.constant 768 : index
    %366 = vector.load %arg15[%c0_129, %c768_130] : memref<16x1056xbf16, #tpu.memory_space<vmem>>, vector<16x32xbf16>
    tpu.vector_store %arg15[%c0_129, %c768_130], %365 {strides = array<i32>} : memref<16x1056xbf16, #tpu.memory_space<vmem>>, vector<16x32xbf16>,
    %367 = vector.extract_strided_slice %15 {offsets = [0, 25], sizes = [16, 1], strides = [1, 1]} : vector<16x32xf32> to vector<16x1xf32>
    %368 = vector.broadcast %367 : vector<16x1xf32> to vector<16x32xf32>
    %369 = arith.mulf %368, %241 : vector<16x32xf32>
    %370 = arith.truncf %369 : vector<16x32xf32> to vector<16x32xbf16>
    %c0_131 = arith.constant 0 : index
    %c800_132 = arith.constant 800 : index
    %371 = vector.load %arg15[%c0_131, %c800_132] : memref<16x1056xbf16, #tpu.memory_space<vmem>>, vector<16x32xbf16>
    tpu.vector_store %arg15[%c0_131, %c800_132], %370 {strides = array<i32>} : memref<16x1056xbf16, #tpu.memory_space<vmem>>, vector<16x32xbf16>,
    %372 = vector.extract_strided_slice %15 {offsets = [0, 26], sizes = [16, 1], strides = [1, 1]} : vector<16x32xf32> to vector<16x1xf32>
    %373 = vector.broadcast %372 : vector<16x1xf32> to vector<16x32xf32>
    %374 = arith.mulf %373, %241 : vector<16x32xf32>
    %375 = arith.truncf %374 : vector<16x32xf32> to vector<16x32xbf16>
    %c0_133 = arith.constant 0 : index
    %c832_134 = arith.constant 832 : index
    %376 = vector.load %arg15[%c0_133, %c832_134] : memref<16x1056xbf16, #tpu.memory_space<vmem>>, vector<16x32xbf16>
    tpu.vector_store %arg15[%c0_133, %c832_134], %375 {strides = array<i32>} : memref<16x1056xbf16, #tpu.memory_space<vmem>>, vector<16x32xbf16>,
    %377 = vector.extract_strided_slice %15 {offsets = [0, 27], sizes = [16, 1], strides = [1, 1]} : vector<16x32xf32> to vector<16x1xf32>
    %378 = vector.broadcast %377 : vector<16x1xf32> to vector<16x32xf32>
    %379 = arith.mulf %378, %241 : vector<16x32xf32>
    %380 = arith.truncf %379 : vector<16x32xf32> to vector<16x32xbf16>
    %c0_135 = arith.constant 0 : index
    %c864_136 = arith.constant 864 : index
    %381 = vector.load %arg15[%c0_135, %c864_136] : memref<16x1056xbf16, #tpu.memory_space<vmem>>, vector<16x32xbf16>
    tpu.vector_store %arg15[%c0_135, %c864_136], %380 {strides = array<i32>} : memref<16x1056xbf16, #tpu.memory_space<vmem>>, vector<16x32xbf16>,
    %382 = vector.extract_strided_slice %15 {offsets = [0, 28], sizes = [16, 1], strides = [1, 1]} : vector<16x32xf32> to vector<16x1xf32>
    %383 = vector.broadcast %382 : vector<16x1xf32> to vector<16x32xf32>
    %384 = arith.mulf %383, %241 : vector<16x32xf32>
    %385 = arith.truncf %384 : vector<16x32xf32> to vector<16x32xbf16>
    %c0_137 = arith.constant 0 : index
    %c896_138 = arith.constant 896 : index
    %386 = vector.load %arg15[%c0_137, %c896_138] : memref<16x1056xbf16, #tpu.memory_space<vmem>>, vector<16x32xbf16>
    tpu.vector_store %arg15[%c0_137, %c896_138], %385 {strides = array<i32>} : memref<16x1056xbf16, #tpu.memory_space<vmem>>, vector<16x32xbf16>,
    %387 = vector.extract_strided_slice %15 {offsets = [0, 29], sizes = [16, 1], strides = [1, 1]} : vector<16x32xf32> to vector<16x1xf32>
    %388 = vector.broadcast %387 : vector<16x1xf32> to vector<16x32xf32>
    %389 = arith.mulf %388, %241 : vector<16x32xf32>
    %390 = arith.truncf %389 : vector<16x32xf32> to vector<16x32xbf16>
    %c0_139 = arith.constant 0 : index
    %c928_140 = arith.constant 928 : index
    %391 = vector.load %arg15[%c0_139, %c928_140] : memref<16x1056xbf16, #tpu.memory_space<vmem>>, vector<16x32xbf16>
    tpu.vector_store %arg15[%c0_139, %c928_140], %390 {strides = array<i32>} : memref<16x1056xbf16, #tpu.memory_space<vmem>>, vector<16x32xbf16>,
    %392 = vector.extract_strided_slice %15 {offsets = [0, 30], sizes = [16, 1], strides = [1, 1]} : vector<16x32xf32> to vector<16x1xf32>
    %393 = vector.broadcast %392 : vector<16x1xf32> to vector<16x32xf32>
    %394 = arith.mulf %393, %241 : vector<16x32xf32>
    %395 = arith.truncf %394 : vector<16x32xf32> to vector<16x32xbf16>
    %c0_141 = arith.constant 0 : index
    %c960_142 = arith.constant 960 : index
    %396 = vector.load %arg15[%c0_141, %c960_142] : memref<16x1056xbf16, #tpu.memory_space<vmem>>, vector<16x32xbf16>
    tpu.vector_store %arg15[%c0_141, %c960_142], %395 {strides = array<i32>} : memref<16x1056xbf16, #tpu.memory_space<vmem>>, vector<16x32xbf16>,
    %397 = vector.extract_strided_slice %15 {offsets = [0, 31], sizes = [16, 1], strides = [1, 1]} : vector<16x32xf32> to vector<16x1xf32>
    %398 = vector.broadcast %397 : vector<16x1xf32> to vector<16x32xf32>
    %399 = arith.mulf %398, %241 : vector<16x32xf32>
    %400 = arith.truncf %399 : vector<16x32xf32> to vector<16x32xbf16>
    %c0_143 = arith.constant 0 : index
    %c992_144 = arith.constant 992 : index
    %401 = vector.load %arg15[%c0_143, %c992_144] : memref<16x1056xbf16, #tpu.memory_space<vmem>>, vector<16x32xbf16>
    tpu.vector_store %arg15[%c0_143, %c992_144], %400 {strides = array<i32>} : memref<16x1056xbf16, #tpu.memory_space<vmem>>, vector<16x32xbf16>,
    %402 = arith.truncf %241 : vector<16x32xf32> to vector<16x32xbf16>
    %c0_145 = arith.constant 0 : index
    %c1024_146 = arith.constant 1024 : index
    %403 = vector.load %arg15[%c0_145, %c1024_146] : memref<16x1056xbf16, #tpu.memory_space<vmem>>, vector<16x32xbf16>
    tpu.vector_store %arg15[%c0_145, %c1024_146], %402 {strides = array<i32>} : memref<16x1056xbf16, #tpu.memory_space<vmem>>, vector<16x32xbf16>,
    %c0_147 = arith.constant 0 : index
    %c0_148 = arith.constant 0 : index
    %404 = vector.load %arg15[%c0_147, %c0_148] : memref<16x1056xbf16, #tpu.memory_space<vmem>>, vector<16x1056xbf16>
    %c0_149 = arith.constant 0 : index
    %c0_150 = arith.constant 0 : index
    %405 = vector.load %arg8[%c0_149, %c0_150] : memref<1056x32xbf16, #tpu.memory_space<vmem>>, vector<1056x32xbf16>
    %cst_151 = arith.constant dense<0.000000e+00> : vector<16x32xf32>
    %406 = tpu.matmul %404, %405, %cst_151 {dimension_numbers = #tpu.dot_dimension_numbers<[1], [0], [0], [1], [0, 0, 1, 1], [], []>} : vector<16x1056xbf16>, vector<1056x32xbf16>, vector<16x32xf32> -> vector<16x32xf32>
    %407 = arith.truncf %406 : vector<16x32xf32> to vector<16x32xbf16>
    %cst_152 = arith.constant dense<0.000000e+00> : vector<8x32xf32>
    %408 = tpu.matmul %31, %407, %cst_152 {dimension_numbers = #tpu.dot_dimension_numbers<[1], [0], [0], [1], [0, 0, 1, 1], [], []>} : vector<8x16xbf16>, vector<16x32xbf16>, vector<8x32xf32> -> vector<8x32xf32>
    %c0_153 = arith.constant 0 : index
    %c0_154 = arith.constant 0 : index
    %409 = vector.load %arg9[%c0_153, %c0_154] : memref<32x32xbf16, #tpu.memory_space<vmem>>, vector<32x32xbf16>
    %cst_155 = arith.constant dense<0.000000e+00> : vector<8x32xf32>
    %410 = tpu.matmul %240, %409, %cst_155 {dimension_numbers = #tpu.dot_dimension_numbers<[1], [0], [0], [1], [0, 0, 1, 1], [], []>} : vector<8x32xbf16>, vector<32x32xbf16>, vector<8x32xf32> -> vector<8x32xf32>
    %411 = arith.addf %408, %410 : vector<8x32xf32>
    %c0_156 = arith.constant 0 : index
    %c0_157 = arith.constant 0 : index
    %412 = vector.load %arg10[%c0_156, %c0_157] : memref<1x32xf32, #tpu.memory_space<vmem>>, vector<1x32xf32>
    %413 = vector.broadcast %412 : vector<1x32xf32> to vector<8x32xf32>
    %414 = arith.addf %411, %413 : vector<8x32xf32>
    %cst_158 = arith.constant 0.000000e+00 : f32
    %415 = vector.broadcast %cst_158 : f32 to vector<8x32xf32>
    %416 = arith.maximumf %414, %415 : vector<8x32xf32>
    %417 = arith.truncf %416 : vector<8x32xf32> to vector<8x32xbf16>
    %c0_159 = arith.constant 0 : index
    %c0_160 = arith.constant 0 : index
    %418 = vector.load %arg11[%c0_159, %c0_160] : memref<32x128xbf16, #tpu.memory_space<vmem>>, vector<32x128xbf16>
    %cst_161 = arith.constant dense<0.000000e+00> : vector<8x128xf32>
    %419 = tpu.matmul %417, %418, %cst_161 {dimension_numbers = #tpu.dot_dimension_numbers<[1], [0], [0], [1], [0, 0, 1, 1], [], []>} : vector<8x32xbf16>, vector<32x128xbf16>, vector<8x128xf32> -> vector<8x128xf32>
    %c0_162 = arith.constant 0 : index
    %c0_163 = arith.constant 0 : index
    %420 = vector.load %arg12[%c0_162, %c0_163] : memref<32x128xbf16, #tpu.memory_space<vmem>>, vector<32x128xbf16>
    %cst_164 = arith.constant dense<0.000000e+00> : vector<8x128xf32>
    %421 = tpu.matmul %240, %420, %cst_164 {dimension_numbers = #tpu.dot_dimension_numbers<[1], [0], [0], [1], [0, 0, 1, 1], [], []>} : vector<8x32xbf16>, vector<32x128xbf16>, vector<8x128xf32> -> vector<8x128xf32>
    %422 = arith.addf %419, %421 : vector<8x128xf32>
    %c0_165 = arith.constant 0 : index
    %c0_166 = arith.constant 0 : index
    %423 = vector.load %arg13[%c0_165, %c0_166] : memref<1x128xf32, #tpu.memory_space<vmem>>, vector<1x128xf32>
    %424 = vector.broadcast %423 : vector<1x128xf32> to vector<8x128xf32>
    %425 = arith.addf %422, %424 : vector<8x128xf32>
    %426 = vector.extract_strided_slice %425 {offsets = [0, 0], sizes = [8, 32], strides = [1, 1]} : vector<8x128xf32> to vector<8x32xf32>
    %427 = arith.negf %426 : vector<8x32xf32>
    %428 = math.exp %427 : vector<8x32xf32>
    %cst_167 = arith.constant 1.000000e+00 : f32
    %429 = vector.broadcast %cst_167 : f32 to vector<8x32xf32>
    %430 = arith.addf %429, %428 : vector<8x32xf32>
    %431 = arith.divf %429, %430 : vector<8x32xf32>
    %432 = vector.extract_strided_slice %425 {offsets = [0, 32], sizes = [8, 32], strides = [1, 1]} : vector<8x128xf32> to vector<8x32xf32>
    %433 = arith.negf %432 : vector<8x32xf32>
    %434 = math.exp %433 : vector<8x32xf32>
    %cst_168 = arith.constant 1.000000e+00 : f32
    %435 = vector.broadcast %cst_168 : f32 to vector<8x32xf32>
    %436 = arith.addf %435, %434 : vector<8x32xf32>
    %437 = arith.divf %435, %436 : vector<8x32xf32>
    %438 = vector.extract_strided_slice %425 {offsets = [0, 64], sizes = [8, 32], strides = [1, 1]} : vector<8x128xf32> to vector<8x32xf32>
    %439 = vector.extract_strided_slice %425 {offsets = [0, 96], sizes = [8, 32], strides = [1, 1]} : vector<8x128xf32> to vector<8x32xf32>
    %440 = arith.mulf %431, %439 : vector<8x32xf32>
    %441 = arith.addf %438, %440 : vector<8x32xf32>
    %442 = math.tanh %441 : vector<8x32xf32>
    %cst_169 = arith.constant 1.000000e+00 : f32
    %443 = vector.broadcast %cst_169 : f32 to vector<8x32xf32>
    %444 = arith.subf %443, %437 : vector<8x32xf32>
    %445 = arith.mulf %444, %442 : vector<8x32xf32>
    %446 = arith.mulf %437, %239 : vector<8x32xf32>
    %447 = arith.addf %445, %446 : vector<8x32xf32>
    %448 = arith.truncf %447 : vector<8x32xf32> to vector<8x32xbf16>
    %cst_170 = arith.constant dense<0.000000e+00> : vector<16x32xf32>
    %449 = tpu.matmul %23, %448, %cst_170 {dimension_numbers = #tpu.dot_dimension_numbers<[1], [0], [0], [1], [0, 0, 1, 1], [], []>} : vector<16x8xbf16>, vector<8x32xbf16>, vector<16x32xf32> -> vector<16x32xf32>
    %450 = vector.extract_strided_slice %15 {offsets = [0, 0], sizes = [16, 1], strides = [1, 1]} : vector<16x32xf32> to vector<16x1xf32>
    %451 = vector.broadcast %450 : vector<16x1xf32> to vector<16x32xf32>
    %452 = arith.mulf %451, %449 : vector<16x32xf32>
    %453 = arith.truncf %452 : vector<16x32xf32> to vector<16x32xbf16>
    %c0_171 = arith.constant 0 : index
    %c0_172 = arith.constant 0 : index
    %454 = vector.load %arg15[%c0_171, %c0_172] : memref<16x1056xbf16, #tpu.memory_space<vmem>>, vector<16x32xbf16>
    tpu.vector_store %arg15[%c0_171, %c0_172], %453 {strides = array<i32>} : memref<16x1056xbf16, #tpu.memory_space<vmem>>, vector<16x32xbf16>,
    %455 = vector.extract_strided_slice %15 {offsets = [0, 1], sizes = [16, 1], strides = [1, 1]} : vector<16x32xf32> to vector<16x1xf32>
    %456 = vector.broadcast %455 : vector<16x1xf32> to vector<16x32xf32>
    %457 = arith.mulf %456, %449 : vector<16x32xf32>
    %458 = arith.truncf %457 : vector<16x32xf32> to vector<16x32xbf16>
    %c0_173 = arith.constant 0 : index
    %c32_174 = arith.constant 32 : index
    %459 = vector.load %arg15[%c0_173, %c32_174] : memref<16x1056xbf16, #tpu.memory_space<vmem>>, vector<16x32xbf16>
    tpu.vector_store %arg15[%c0_173, %c32_174], %458 {strides = array<i32>} : memref<16x1056xbf16, #tpu.memory_space<vmem>>, vector<16x32xbf16>,
    %460 = vector.extract_strided_slice %15 {offsets = [0, 2], sizes = [16, 1], strides = [1, 1]} : vector<16x32xf32> to vector<16x1xf32>
    %461 = vector.broadcast %460 : vector<16x1xf32> to vector<16x32xf32>
    %462 = arith.mulf %461, %449 : vector<16x32xf32>
    %463 = arith.truncf %462 : vector<16x32xf32> to vector<16x32xbf16>
    %c0_175 = arith.constant 0 : index
    %c64_176 = arith.constant 64 : index
    %464 = vector.load %arg15[%c0_175, %c64_176] : memref<16x1056xbf16, #tpu.memory_space<vmem>>, vector<16x32xbf16>
    tpu.vector_store %arg15[%c0_175, %c64_176], %463 {strides = array<i32>} : memref<16x1056xbf16, #tpu.memory_space<vmem>>, vector<16x32xbf16>,
    %465 = vector.extract_strided_slice %15 {offsets = [0, 3], sizes = [16, 1], strides = [1, 1]} : vector<16x32xf32> to vector<16x1xf32>
    %466 = vector.broadcast %465 : vector<16x1xf32> to vector<16x32xf32>
    %467 = arith.mulf %466, %449 : vector<16x32xf32>
    %468 = arith.truncf %467 : vector<16x32xf32> to vector<16x32xbf16>
    %c0_177 = arith.constant 0 : index
    %c96_178 = arith.constant 96 : index
    %469 = vector.load %arg15[%c0_177, %c96_178] : memref<16x1056xbf16, #tpu.memory_space<vmem>>, vector<16x32xbf16>
    tpu.vector_store %arg15[%c0_177, %c96_178], %468 {strides = array<i32>} : memref<16x1056xbf16, #tpu.memory_space<vmem>>, vector<16x32xbf16>,
    %470 = vector.extract_strided_slice %15 {offsets = [0, 4], sizes = [16, 1], strides = [1, 1]} : vector<16x32xf32> to vector<16x1xf32>
    %471 = vector.broadcast %470 : vector<16x1xf32> to vector<16x32xf32>
    %472 = arith.mulf %471, %449 : vector<16x32xf32>
    %473 = arith.truncf %472 : vector<16x32xf32> to vector<16x32xbf16>
    %c0_179 = arith.constant 0 : index
    %c128_180 = arith.constant 128 : index
    %474 = vector.load %arg15[%c0_179, %c128_180] : memref<16x1056xbf16, #tpu.memory_space<vmem>>, vector<16x32xbf16>
    tpu.vector_store %arg15[%c0_179, %c128_180], %473 {strides = array<i32>} : memref<16x1056xbf16, #tpu.memory_space<vmem>>, vector<16x32xbf16>,
    %475 = vector.extract_strided_slice %15 {offsets = [0, 5], sizes = [16, 1], strides = [1, 1]} : vector<16x32xf32> to vector<16x1xf32>
    %476 = vector.broadcast %475 : vector<16x1xf32> to vector<16x32xf32>
    %477 = arith.mulf %476, %449 : vector<16x32xf32>
    %478 = arith.truncf %477 : vector<16x32xf32> to vector<16x32xbf16>
    %c0_181 = arith.constant 0 : index
    %c160_182 = arith.constant 160 : index
    %479 = vector.load %arg15[%c0_181, %c160_182] : memref<16x1056xbf16, #tpu.memory_space<vmem>>, vector<16x32xbf16>
    tpu.vector_store %arg15[%c0_181, %c160_182], %478 {strides = array<i32>} : memref<16x1056xbf16, #tpu.memory_space<vmem>>, vector<16x32xbf16>,
    %480 = vector.extract_strided_slice %15 {offsets = [0, 6], sizes = [16, 1], strides = [1, 1]} : vector<16x32xf32> to vector<16x1xf32>
    %481 = vector.broadcast %480 : vector<16x1xf32> to vector<16x32xf32>
    %482 = arith.mulf %481, %449 : vector<16x32xf32>
    %483 = arith.truncf %482 : vector<16x32xf32> to vector<16x32xbf16>
    %c0_183 = arith.constant 0 : index
    %c192_184 = arith.constant 192 : index
    %484 = vector.load %arg15[%c0_183, %c192_184] : memref<16x1056xbf16, #tpu.memory_space<vmem>>, vector<16x32xbf16>
    tpu.vector_store %arg15[%c0_183, %c192_184], %483 {strides = array<i32>} : memref<16x1056xbf16, #tpu.memory_space<vmem>>, vector<16x32xbf16>,
    %485 = vector.extract_strided_slice %15 {offsets = [0, 7], sizes = [16, 1], strides = [1, 1]} : vector<16x32xf32> to vector<16x1xf32>
    %486 = vector.broadcast %485 : vector<16x1xf32> to vector<16x32xf32>
    %487 = arith.mulf %486, %449 : vector<16x32xf32>
    %488 = arith.truncf %487 : vector<16x32xf32> to vector<16x32xbf16>
    %c0_185 = arith.constant 0 : index
    %c224_186 = arith.constant 224 : index
    %489 = vector.load %arg15[%c0_185, %c224_186] : memref<16x1056xbf16, #tpu.memory_space<vmem>>, vector<16x32xbf16>
    tpu.vector_store %arg15[%c0_185, %c224_186], %488 {strides = array<i32>} : memref<16x1056xbf16, #tpu.memory_space<vmem>>, vector<16x32xbf16>,
    %490 = vector.extract_strided_slice %15 {offsets = [0, 8], sizes = [16, 1], strides = [1, 1]} : vector<16x32xf32> to vector<16x1xf32>
    %491 = vector.broadcast %490 : vector<16x1xf32> to vector<16x32xf32>
    %492 = arith.mulf %491, %449 : vector<16x32xf32>
    %493 = arith.truncf %492 : vector<16x32xf32> to vector<16x32xbf16>
    %c0_187 = arith.constant 0 : index
    %c256_188 = arith.constant 256 : index
    %494 = vector.load %arg15[%c0_187, %c256_188] : memref<16x1056xbf16, #tpu.memory_space<vmem>>, vector<16x32xbf16>
    tpu.vector_store %arg15[%c0_187, %c256_188], %493 {strides = array<i32>} : memref<16x1056xbf16, #tpu.memory_space<vmem>>, vector<16x32xbf16>,
    %495 = vector.extract_strided_slice %15 {offsets = [0, 9], sizes = [16, 1], strides = [1, 1]} : vector<16x32xf32> to vector<16x1xf32>
    %496 = vector.broadcast %495 : vector<16x1xf32> to vector<16x32xf32>
    %497 = arith.mulf %496, %449 : vector<16x32xf32>
    %498 = arith.truncf %497 : vector<16x32xf32> to vector<16x32xbf16>
    %c0_189 = arith.constant 0 : index
    %c288_190 = arith.constant 288 : index
    %499 = vector.load %arg15[%c0_189, %c288_190] : memref<16x1056xbf16, #tpu.memory_space<vmem>>, vector<16x32xbf16>
    tpu.vector_store %arg15[%c0_189, %c288_190], %498 {strides = array<i32>} : memref<16x1056xbf16, #tpu.memory_space<vmem>>, vector<16x32xbf16>,
    %500 = vector.extract_strided_slice %15 {offsets = [0, 10], sizes = [16, 1], strides = [1, 1]} : vector<16x32xf32> to vector<16x1xf32>
    %501 = vector.broadcast %500 : vector<16x1xf32> to vector<16x32xf32>
    %502 = arith.mulf %501, %449 : vector<16x32xf32>
    %503 = arith.truncf %502 : vector<16x32xf32> to vector<16x32xbf16>
    %c0_191 = arith.constant 0 : index
    %c320_192 = arith.constant 320 : index
    %504 = vector.load %arg15[%c0_191, %c320_192] : memref<16x1056xbf16, #tpu.memory_space<vmem>>, vector<16x32xbf16>
    tpu.vector_store %arg15[%c0_191, %c320_192], %503 {strides = array<i32>} : memref<16x1056xbf16, #tpu.memory_space<vmem>>, vector<16x32xbf16>,
    %505 = vector.extract_strided_slice %15 {offsets = [0, 11], sizes = [16, 1], strides = [1, 1]} : vector<16x32xf32> to vector<16x1xf32>
    %506 = vector.broadcast %505 : vector<16x1xf32> to vector<16x32xf32>
    %507 = arith.mulf %506, %449 : vector<16x32xf32>
    %508 = arith.truncf %507 : vector<16x32xf32> to vector<16x32xbf16>
    %c0_193 = arith.constant 0 : index
    %c352_194 = arith.constant 352 : index
    %509 = vector.load %arg15[%c0_193, %c352_194] : memref<16x1056xbf16, #tpu.memory_space<vmem>>, vector<16x32xbf16>
    tpu.vector_store %arg15[%c0_193, %c352_194], %508 {strides = array<i32>} : memref<16x1056xbf16, #tpu.memory_space<vmem>>, vector<16x32xbf16>,
    %510 = vector.extract_strided_slice %15 {offsets = [0, 12], sizes = [16, 1], strides = [1, 1]} : vector<16x32xf32> to vector<16x1xf32>
    %511 = vector.broadcast %510 : vector<16x1xf32> to vector<16x32xf32>
    %512 = arith.mulf %511, %449 : vector<16x32xf32>
    %513 = arith.truncf %512 : vector<16x32xf32> to vector<16x32xbf16>
    %c0_195 = arith.constant 0 : index
    %c384_196 = arith.constant 384 : index
    %514 = vector.load %arg15[%c0_195, %c384_196] : memref<16x1056xbf16, #tpu.memory_space<vmem>>, vector<16x32xbf16>
    tpu.vector_store %arg15[%c0_195, %c384_196], %513 {strides = array<i32>} : memref<16x1056xbf16, #tpu.memory_space<vmem>>, vector<16x32xbf16>,
    %515 = vector.extract_strided_slice %15 {offsets = [0, 13], sizes = [16, 1], strides = [1, 1]} : vector<16x32xf32> to vector<16x1xf32>
    %516 = vector.broadcast %515 : vector<16x1xf32> to vector<16x32xf32>
    %517 = arith.mulf %516, %449 : vector<16x32xf32>
    %518 = arith.truncf %517 : vector<16x32xf32> to vector<16x32xbf16>
    %c0_197 = arith.constant 0 : index
    %c416_198 = arith.constant 416 : index
    %519 = vector.load %arg15[%c0_197, %c416_198] : memref<16x1056xbf16, #tpu.memory_space<vmem>>, vector<16x32xbf16>
    tpu.vector_store %arg15[%c0_197, %c416_198], %518 {strides = array<i32>} : memref<16x1056xbf16, #tpu.memory_space<vmem>>, vector<16x32xbf16>,
    %520 = vector.extract_strided_slice %15 {offsets = [0, 14], sizes = [16, 1], strides = [1, 1]} : vector<16x32xf32> to vector<16x1xf32>
    %521 = vector.broadcast %520 : vector<16x1xf32> to vector<16x32xf32>
    %522 = arith.mulf %521, %449 : vector<16x32xf32>
    %523 = arith.truncf %522 : vector<16x32xf32> to vector<16x32xbf16>
    %c0_199 = arith.constant 0 : index
    %c448_200 = arith.constant 448 : index
    %524 = vector.load %arg15[%c0_199, %c448_200] : memref<16x1056xbf16, #tpu.memory_space<vmem>>, vector<16x32xbf16>
    tpu.vector_store %arg15[%c0_199, %c448_200], %523 {strides = array<i32>} : memref<16x1056xbf16, #tpu.memory_space<vmem>>, vector<16x32xbf16>,
    %525 = vector.extract_strided_slice %15 {offsets = [0, 15], sizes = [16, 1], strides = [1, 1]} : vector<16x32xf32> to vector<16x1xf32>
    %526 = vector.broadcast %525 : vector<16x1xf32> to vector<16x32xf32>
    %527 = arith.mulf %526, %449 : vector<16x32xf32>
    %528 = arith.truncf %527 : vector<16x32xf32> to vector<16x32xbf16>
    %c0_201 = arith.constant 0 : index
    %c480_202 = arith.constant 480 : index
    %529 = vector.load %arg15[%c0_201, %c480_202] : memref<16x1056xbf16, #tpu.memory_space<vmem>>, vector<16x32xbf16>
    tpu.vector_store %arg15[%c0_201, %c480_202], %528 {strides = array<i32>} : memref<16x1056xbf16, #tpu.memory_space<vmem>>, vector<16x32xbf16>,
    %530 = vector.extract_strided_slice %15 {offsets = [0, 16], sizes = [16, 1], strides = [1, 1]} : vector<16x32xf32> to vector<16x1xf32>
    %531 = vector.broadcast %530 : vector<16x1xf32> to vector<16x32xf32>
    %532 = arith.mulf %531, %449 : vector<16x32xf32>
    %533 = arith.truncf %532 : vector<16x32xf32> to vector<16x32xbf16>
    %c0_203 = arith.constant 0 : index
    %c512_204 = arith.constant 512 : index
    %534 = vector.load %arg15[%c0_203, %c512_204] : memref<16x1056xbf16, #tpu.memory_space<vmem>>, vector<16x32xbf16>
    tpu.vector_store %arg15[%c0_203, %c512_204], %533 {strides = array<i32>} : memref<16x1056xbf16, #tpu.memory_space<vmem>>, vector<16x32xbf16>,
    %535 = vector.extract_strided_slice %15 {offsets = [0, 17], sizes = [16, 1], strides = [1, 1]} : vector<16x32xf32> to vector<16x1xf32>
    %536 = vector.broadcast %535 : vector<16x1xf32> to vector<16x32xf32>
    %537 = arith.mulf %536, %449 : vector<16x32xf32>
    %538 = arith.truncf %537 : vector<16x32xf32> to vector<16x32xbf16>
    %c0_205 = arith.constant 0 : index
    %c544_206 = arith.constant 544 : index
    %539 = vector.load %arg15[%c0_205, %c544_206] : memref<16x1056xbf16, #tpu.memory_space<vmem>>, vector<16x32xbf16>
    tpu.vector_store %arg15[%c0_205, %c544_206], %538 {strides = array<i32>} : memref<16x1056xbf16, #tpu.memory_space<vmem>>, vector<16x32xbf16>,
    %540 = vector.extract_strided_slice %15 {offsets = [0, 18], sizes = [16, 1], strides = [1, 1]} : vector<16x32xf32> to vector<16x1xf32>
    %541 = vector.broadcast %540 : vector<16x1xf32> to vector<16x32xf32>
    %542 = arith.mulf %541, %449 : vector<16x32xf32>
    %543 = arith.truncf %542 : vector<16x32xf32> to vector<16x32xbf16>
    %c0_207 = arith.constant 0 : index
    %c576_208 = arith.constant 576 : index
    %544 = vector.load %arg15[%c0_207, %c576_208] : memref<16x1056xbf16, #tpu.memory_space<vmem>>, vector<16x32xbf16>
    tpu.vector_store %arg15[%c0_207, %c576_208], %543 {strides = array<i32>} : memref<16x1056xbf16, #tpu.memory_space<vmem>>, vector<16x32xbf16>,
    %545 = vector.extract_strided_slice %15 {offsets = [0, 19], sizes = [16, 1], strides = [1, 1]} : vector<16x32xf32> to vector<16x1xf32>
    %546 = vector.broadcast %545 : vector<16x1xf32> to vector<16x32xf32>
    %547 = arith.mulf %546, %449 : vector<16x32xf32>
    %548 = arith.truncf %547 : vector<16x32xf32> to vector<16x32xbf16>
    %c0_209 = arith.constant 0 : index
    %c608_210 = arith.constant 608 : index
    %549 = vector.load %arg15[%c0_209, %c608_210] : memref<16x1056xbf16, #tpu.memory_space<vmem>>, vector<16x32xbf16>
    tpu.vector_store %arg15[%c0_209, %c608_210], %548 {strides = array<i32>} : memref<16x1056xbf16, #tpu.memory_space<vmem>>, vector<16x32xbf16>,
    %550 = vector.extract_strided_slice %15 {offsets = [0, 20], sizes = [16, 1], strides = [1, 1]} : vector<16x32xf32> to vector<16x1xf32>
    %551 = vector.broadcast %550 : vector<16x1xf32> to vector<16x32xf32>
    %552 = arith.mulf %551, %449 : vector<16x32xf32>
    %553 = arith.truncf %552 : vector<16x32xf32> to vector<16x32xbf16>
    %c0_211 = arith.constant 0 : index
    %c640_212 = arith.constant 640 : index
    %554 = vector.load %arg15[%c0_211, %c640_212] : memref<16x1056xbf16, #tpu.memory_space<vmem>>, vector<16x32xbf16>
    tpu.vector_store %arg15[%c0_211, %c640_212], %553 {strides = array<i32>} : memref<16x1056xbf16, #tpu.memory_space<vmem>>, vector<16x32xbf16>,
    %555 = vector.extract_strided_slice %15 {offsets = [0, 21], sizes = [16, 1], strides = [1, 1]} : vector<16x32xf32> to vector<16x1xf32>
    %556 = vector.broadcast %555 : vector<16x1xf32> to vector<16x32xf32>
    %557 = arith.mulf %556, %449 : vector<16x32xf32>
    %558 = arith.truncf %557 : vector<16x32xf32> to vector<16x32xbf16>
    %c0_213 = arith.constant 0 : index
    %c672_214 = arith.constant 672 : index
    %559 = vector.load %arg15[%c0_213, %c672_214] : memref<16x1056xbf16, #tpu.memory_space<vmem>>, vector<16x32xbf16>
    tpu.vector_store %arg15[%c0_213, %c672_214], %558 {strides = array<i32>} : memref<16x1056xbf16, #tpu.memory_space<vmem>>, vector<16x32xbf16>,
    %560 = vector.extract_strided_slice %15 {offsets = [0, 22], sizes = [16, 1], strides = [1, 1]} : vector<16x32xf32> to vector<16x1xf32>
    %561 = vector.broadcast %560 : vector<16x1xf32> to vector<16x32xf32>
    %562 = arith.mulf %561, %449 : vector<16x32xf32>
    %563 = arith.truncf %562 : vector<16x32xf32> to vector<16x32xbf16>
    %c0_215 = arith.constant 0 : index
    %c704_216 = arith.constant 704 : index
    %564 = vector.load %arg15[%c0_215, %c704_216] : memref<16x1056xbf16, #tpu.memory_space<vmem>>, vector<16x32xbf16>
    tpu.vector_store %arg15[%c0_215, %c704_216], %563 {strides = array<i32>} : memref<16x1056xbf16, #tpu.memory_space<vmem>>, vector<16x32xbf16>,
    %565 = vector.extract_strided_slice %15 {offsets = [0, 23], sizes = [16, 1], strides = [1, 1]} : vector<16x32xf32> to vector<16x1xf32>
    %566 = vector.broadcast %565 : vector<16x1xf32> to vector<16x32xf32>
    %567 = arith.mulf %566, %449 : vector<16x32xf32>
    %568 = arith.truncf %567 : vector<16x32xf32> to vector<16x32xbf16>
    %c0_217 = arith.constant 0 : index
    %c736_218 = arith.constant 736 : index
    %569 = vector.load %arg15[%c0_217, %c736_218] : memref<16x1056xbf16, #tpu.memory_space<vmem>>, vector<16x32xbf16>
    tpu.vector_store %arg15[%c0_217, %c736_218], %568 {strides = array<i32>} : memref<16x1056xbf16, #tpu.memory_space<vmem>>, vector<16x32xbf16>,
    %570 = vector.extract_strided_slice %15 {offsets = [0, 24], sizes = [16, 1], strides = [1, 1]} : vector<16x32xf32> to vector<16x1xf32>
    %571 = vector.broadcast %570 : vector<16x1xf32> to vector<16x32xf32>
    %572 = arith.mulf %571, %449 : vector<16x32xf32>
    %573 = arith.truncf %572 : vector<16x32xf32> to vector<16x32xbf16>
    %c0_219 = arith.constant 0 : index
    %c768_220 = arith.constant 768 : index
    %574 = vector.load %arg15[%c0_219, %c768_220] : memref<16x1056xbf16, #tpu.memory_space<vmem>>, vector<16x32xbf16>
    tpu.vector_store %arg15[%c0_219, %c768_220], %573 {strides = array<i32>} : memref<16x1056xbf16, #tpu.memory_space<vmem>>, vector<16x32xbf16>,
    %575 = vector.extract_strided_slice %15 {offsets = [0, 25], sizes = [16, 1], strides = [1, 1]} : vector<16x32xf32> to vector<16x1xf32>
    %576 = vector.broadcast %575 : vector<16x1xf32> to vector<16x32xf32>
    %577 = arith.mulf %576, %449 : vector<16x32xf32>
    %578 = arith.truncf %577 : vector<16x32xf32> to vector<16x32xbf16>
    %c0_221 = arith.constant 0 : index
    %c800_222 = arith.constant 800 : index
    %579 = vector.load %arg15[%c0_221, %c800_222] : memref<16x1056xbf16, #tpu.memory_space<vmem>>, vector<16x32xbf16>
    tpu.vector_store %arg15[%c0_221, %c800_222], %578 {strides = array<i32>} : memref<16x1056xbf16, #tpu.memory_space<vmem>>, vector<16x32xbf16>,
    %580 = vector.extract_strided_slice %15 {offsets = [0, 26], sizes = [16, 1], strides = [1, 1]} : vector<16x32xf32> to vector<16x1xf32>
    %581 = vector.broadcast %580 : vector<16x1xf32> to vector<16x32xf32>
    %582 = arith.mulf %581, %449 : vector<16x32xf32>
    %583 = arith.truncf %582 : vector<16x32xf32> to vector<16x32xbf16>
    %c0_223 = arith.constant 0 : index
    %c832_224 = arith.constant 832 : index
    %584 = vector.load %arg15[%c0_223, %c832_224] : memref<16x1056xbf16, #tpu.memory_space<vmem>>, vector<16x32xbf16>
    tpu.vector_store %arg15[%c0_223, %c832_224], %583 {strides = array<i32>} : memref<16x1056xbf16, #tpu.memory_space<vmem>>, vector<16x32xbf16>,
    %585 = vector.extract_strided_slice %15 {offsets = [0, 27], sizes = [16, 1], strides = [1, 1]} : vector<16x32xf32> to vector<16x1xf32>
    %586 = vector.broadcast %585 : vector<16x1xf32> to vector<16x32xf32>
    %587 = arith.mulf %586, %449 : vector<16x32xf32>
    %588 = arith.truncf %587 : vector<16x32xf32> to vector<16x32xbf16>
    %c0_225 = arith.constant 0 : index
    %c864_226 = arith.constant 864 : index
    %589 = vector.load %arg15[%c0_225, %c864_226] : memref<16x1056xbf16, #tpu.memory_space<vmem>>, vector<16x32xbf16>
    tpu.vector_store %arg15[%c0_225, %c864_226], %588 {strides = array<i32>} : memref<16x1056xbf16, #tpu.memory_space<vmem>>, vector<16x32xbf16>,
    %590 = vector.extract_strided_slice %15 {offsets = [0, 28], sizes = [16, 1], strides = [1, 1]} : vector<16x32xf32> to vector<16x1xf32>
    %591 = vector.broadcast %590 : vector<16x1xf32> to vector<16x32xf32>
    %592 = arith.mulf %591, %449 : vector<16x32xf32>
    %593 = arith.truncf %592 : vector<16x32xf32> to vector<16x32xbf16>
    %c0_227 = arith.constant 0 : index
    %c896_228 = arith.constant 896 : index
    %594 = vector.load %arg15[%c0_227, %c896_228] : memref<16x1056xbf16, #tpu.memory_space<vmem>>, vector<16x32xbf16>
    tpu.vector_store %arg15[%c0_227, %c896_228], %593 {strides = array<i32>} : memref<16x1056xbf16, #tpu.memory_space<vmem>>, vector<16x32xbf16>,
    %595 = vector.extract_strided_slice %15 {offsets = [0, 29], sizes = [16, 1], strides = [1, 1]} : vector<16x32xf32> to vector<16x1xf32>
    %596 = vector.broadcast %595 : vector<16x1xf32> to vector<16x32xf32>
    %597 = arith.mulf %596, %449 : vector<16x32xf32>
    %598 = arith.truncf %597 : vector<16x32xf32> to vector<16x32xbf16>
    %c0_229 = arith.constant 0 : index
    %c928_230 = arith.constant 928 : index
    %599 = vector.load %arg15[%c0_229, %c928_230] : memref<16x1056xbf16, #tpu.memory_space<vmem>>, vector<16x32xbf16>
    tpu.vector_store %arg15[%c0_229, %c928_230], %598 {strides = array<i32>} : memref<16x1056xbf16, #tpu.memory_space<vmem>>, vector<16x32xbf16>,
    %600 = vector.extract_strided_slice %15 {offsets = [0, 30], sizes = [16, 1], strides = [1, 1]} : vector<16x32xf32> to vector<16x1xf32>
    %601 = vector.broadcast %600 : vector<16x1xf32> to vector<16x32xf32>
    %602 = arith.mulf %601, %449 : vector<16x32xf32>
    %603 = arith.truncf %602 : vector<16x32xf32> to vector<16x32xbf16>
    %c0_231 = arith.constant 0 : index
    %c960_232 = arith.constant 960 : index
    %604 = vector.load %arg15[%c0_231, %c960_232] : memref<16x1056xbf16, #tpu.memory_space<vmem>>, vector<16x32xbf16>
    tpu.vector_store %arg15[%c0_231, %c960_232], %603 {strides = array<i32>} : memref<16x1056xbf16, #tpu.memory_space<vmem>>, vector<16x32xbf16>,
    %605 = vector.extract_strided_slice %15 {offsets = [0, 31], sizes = [16, 1], strides = [1, 1]} : vector<16x32xf32> to vector<16x1xf32>
    %606 = vector.broadcast %605 : vector<16x1xf32> to vector<16x32xf32>
    %607 = arith.mulf %606, %449 : vector<16x32xf32>
    %608 = arith.truncf %607 : vector<16x32xf32> to vector<16x32xbf16>
    %c0_233 = arith.constant 0 : index
    %c992_234 = arith.constant 992 : index
    %609 = vector.load %arg15[%c0_233, %c992_234] : memref<16x1056xbf16, #tpu.memory_space<vmem>>, vector<16x32xbf16>
    tpu.vector_store %arg15[%c0_233, %c992_234], %608 {strides = array<i32>} : memref<16x1056xbf16, #tpu.memory_space<vmem>>, vector<16x32xbf16>,
    %610 = arith.truncf %449 : vector<16x32xf32> to vector<16x32xbf16>
    %c0_235 = arith.constant 0 : index
    %c1024_236 = arith.constant 1024 : index
    %611 = vector.load %arg15[%c0_235, %c1024_236] : memref<16x1056xbf16, #tpu.memory_space<vmem>>, vector<16x32xbf16>
    tpu.vector_store %arg15[%c0_235, %c1024_236], %610 {strides = array<i32>} : memref<16x1056xbf16, #tpu.memory_space<vmem>>, vector<16x32xbf16>,
    %c0_237 = arith.constant 0 : index
    %c0_238 = arith.constant 0 : index
    %612 = vector.load %arg15[%c0_237, %c0_238] : memref<16x1056xbf16, #tpu.memory_space<vmem>>, vector<16x1056xbf16>
    %c0_239 = arith.constant 0 : index
    %c0_240 = arith.constant 0 : index
    %613 = vector.load %arg8[%c0_239, %c0_240] : memref<1056x32xbf16, #tpu.memory_space<vmem>>, vector<1056x32xbf16>
    %cst_241 = arith.constant dense<0.000000e+00> : vector<16x32xf32>
    %614 = tpu.matmul %612, %613, %cst_241 {dimension_numbers = #tpu.dot_dimension_numbers<[1], [0], [0], [1], [0, 0, 1, 1], [], []>} : vector<16x1056xbf16>, vector<1056x32xbf16>, vector<16x32xf32> -> vector<16x32xf32>
    %615 = arith.truncf %614 : vector<16x32xf32> to vector<16x32xbf16>
    %cst_242 = arith.constant dense<0.000000e+00> : vector<8x32xf32>
    %616 = tpu.matmul %31, %615, %cst_242 {dimension_numbers = #tpu.dot_dimension_numbers<[1], [0], [0], [1], [0, 0, 1, 1], [], []>} : vector<8x16xbf16>, vector<16x32xbf16>, vector<8x32xf32> -> vector<8x32xf32>
    %c0_243 = arith.constant 0 : index
    %c0_244 = arith.constant 0 : index
    %617 = vector.load %arg9[%c0_243, %c0_244] : memref<32x32xbf16, #tpu.memory_space<vmem>>, vector<32x32xbf16>
    %cst_245 = arith.constant dense<0.000000e+00> : vector<8x32xf32>
    %618 = tpu.matmul %448, %617, %cst_245 {dimension_numbers = #tpu.dot_dimension_numbers<[1], [0], [0], [1], [0, 0, 1, 1], [], []>} : vector<8x32xbf16>, vector<32x32xbf16>, vector<8x32xf32> -> vector<8x32xf32>
    %619 = arith.addf %616, %618 : vector<8x32xf32>
    %c0_246 = arith.constant 0 : index
    %c0_247 = arith.constant 0 : index
    %620 = vector.load %arg10[%c0_246, %c0_247] : memref<1x32xf32, #tpu.memory_space<vmem>>, vector<1x32xf32>
    %621 = vector.broadcast %620 : vector<1x32xf32> to vector<8x32xf32>
    %622 = arith.addf %619, %621 : vector<8x32xf32>
    %cst_248 = arith.constant 0.000000e+00 : f32
    %623 = vector.broadcast %cst_248 : f32 to vector<8x32xf32>
    %624 = arith.maximumf %622, %623 : vector<8x32xf32>
    %625 = arith.truncf %624 : vector<8x32xf32> to vector<8x32xbf16>
    %c0_249 = arith.constant 0 : index
    %c0_250 = arith.constant 0 : index
    %626 = vector.load %arg11[%c0_249, %c0_250] : memref<32x128xbf16, #tpu.memory_space<vmem>>, vector<32x128xbf16>
    %cst_251 = arith.constant dense<0.000000e+00> : vector<8x128xf32>
    %627 = tpu.matmul %625, %626, %cst_251 {dimension_numbers = #tpu.dot_dimension_numbers<[1], [0], [0], [1], [0, 0, 1, 1], [], []>} : vector<8x32xbf16>, vector<32x128xbf16>, vector<8x128xf32> -> vector<8x128xf32>
    %c0_252 = arith.constant 0 : index
    %c0_253 = arith.constant 0 : index
    %628 = vector.load %arg12[%c0_252, %c0_253] : memref<32x128xbf16, #tpu.memory_space<vmem>>, vector<32x128xbf16>
    %cst_254 = arith.constant dense<0.000000e+00> : vector<8x128xf32>
    %629 = tpu.matmul %448, %628, %cst_254 {dimension_numbers = #tpu.dot_dimension_numbers<[1], [0], [0], [1], [0, 0, 1, 1], [], []>} : vector<8x32xbf16>, vector<32x128xbf16>, vector<8x128xf32> -> vector<8x128xf32>
    %630 = arith.addf %627, %629 : vector<8x128xf32>
    %c0_255 = arith.constant 0 : index
    %c0_256 = arith.constant 0 : index
    %631 = vector.load %arg13[%c0_255, %c0_256] : memref<1x128xf32, #tpu.memory_space<vmem>>, vector<1x128xf32>
    %632 = vector.broadcast %631 : vector<1x128xf32> to vector<8x128xf32>
    %633 = arith.addf %630, %632 : vector<8x128xf32>
    %634 = vector.extract_strided_slice %633 {offsets = [0, 0], sizes = [8, 32], strides = [1, 1]} : vector<8x128xf32> to vector<8x32xf32>
    %635 = arith.negf %634 : vector<8x32xf32>
    %636 = math.exp %635 : vector<8x32xf32>
    %cst_257 = arith.constant 1.000000e+00 : f32
    %637 = vector.broadcast %cst_257 : f32 to vector<8x32xf32>
    %638 = arith.addf %637, %636 : vector<8x32xf32>
    %639 = arith.divf %637, %638 : vector<8x32xf32>
    %640 = vector.extract_strided_slice %633 {offsets = [0, 32], sizes = [8, 32], strides = [1, 1]} : vector<8x128xf32> to vector<8x32xf32>
    %641 = arith.negf %640 : vector<8x32xf32>
    %642 = math.exp %641 : vector<8x32xf32>
    %cst_258 = arith.constant 1.000000e+00 : f32
    %643 = vector.broadcast %cst_258 : f32 to vector<8x32xf32>
    %644 = arith.addf %643, %642 : vector<8x32xf32>
    %645 = arith.divf %643, %644 : vector<8x32xf32>
    %646 = vector.extract_strided_slice %633 {offsets = [0, 64], sizes = [8, 32], strides = [1, 1]} : vector<8x128xf32> to vector<8x32xf32>
    %647 = vector.extract_strided_slice %633 {offsets = [0, 96], sizes = [8, 32], strides = [1, 1]} : vector<8x128xf32> to vector<8x32xf32>
    %648 = arith.mulf %639, %647 : vector<8x32xf32>
    %649 = arith.addf %646, %648 : vector<8x32xf32>
    %650 = math.tanh %649 : vector<8x32xf32>
    %cst_259 = arith.constant 1.000000e+00 : f32
    %651 = vector.broadcast %cst_259 : f32 to vector<8x32xf32>
    %652 = arith.subf %651, %645 : vector<8x32xf32>
    %653 = arith.mulf %652, %650 : vector<8x32xf32>
    %654 = arith.mulf %645, %447 : vector<8x32xf32>
    %655 = arith.addf %653, %654 : vector<8x32xf32>
    %c0_260 = arith.constant 0 : index
    %c0_261 = arith.constant 0 : index
    %656 = vector.load %arg14[%c0_260, %c0_261] : memref<8x32xf32, #tpu.memory_space<vmem>>, vector<8x32xf32>
    tpu.vector_store %arg14[%c0_260, %c0_261], %655 {strides = array<i32>} : memref<8x32xf32, #tpu.memory_space<vmem>>, vector<8x32xf32>,
    return
  }
}

</mosaic_0001>

<llo_original>
// kernel: tpu_custom_call.1
$region0: #{tpu_custom_call.1}
  #allocation0 [shape = 'u32[]', space=smem, size = 0x4, offset = 0x4, fixed_abs, tag = 'smem constant byte address 0x4 - core index']
  #allocation1 [shape = 'u32[72,128]{1,0:T(1,128)}', space=vmem, size = 0x9000, scoped, tag = 'internal scratch']
  #allocation2 [shape = 'bf16[16,1056]{1,0:T(8,128)(2,1)}', space=vmem, size = 0x9000, scoped, tag = 'scratch operand']
  %s0 = inlined_call_operand.vmem [shape: s32[16,1], index: 0, kind: input, shape index: {}]
  %s1 = inlined_call_operand.vmem [shape: s32[1,16], index: 1, kind: input, shape index: {}]
  %s2 = inlined_call_operand.vmem [shape: bf16[8,16], index: 2, kind: input, shape index: {}]
  %s3 = inlined_call_operand.vmem [shape: bf16[16,8], index: 3, kind: input, shape index: {}]
  %s4 = inlined_call_operand.vmem [shape: bf16[16,32], index: 4, kind: input, shape index: {}]
  %s5 = inlined_call_operand.vmem [shape: f32[1,32], index: 5, kind: input, shape index: {}]
  %s6 = inlined_call_operand.vmem [shape: bf16[8,32], index: 6, kind: input, shape index: {}]
  %s7 = inlined_call_operand.vmem [shape: f32[1,32], index: 7, kind: input, shape index: {}]
  %s8 = inlined_call_operand.vmem [shape: bf16[1056,32], index: 8, kind: input, shape index: {}]
  %s9 = inlined_call_operand.vmem [shape: bf16[32,32], index: 9, kind: input, shape index: {}]
  %s10 = inlined_call_operand.vmem [shape: f32[1,32], index: 10, kind: input, shape index: {}]
  %s11 = inlined_call_operand.vmem [shape: bf16[32,128], index: 11, kind: input, shape index: {}]
  %s12 = inlined_call_operand.vmem [shape: bf16[32,128], index: 12, kind: input, shape index: {}]
  %s13 = inlined_call_operand.vmem [shape: f32[1,128], index: 13, kind: input, shape index: {}]
  %s14 = inlined_call_operand.hbm [shape: f32[8,32], index: 14, kind: output, shape index: {}]
  %s15 = sld [smem:[#allocation0]]
  $region66: #{tpu_custom_call.1} parent=0
    _
  %s17 = ssub.s32 1, %s15
  %s18 = scalar_select 0, %s17, %s15
  $region1: #{tpu_custom_call.1} parent=0
    #allocation3 [shape = 'u8[4096]{0}', space=vmem, size = 0x1000, scoped, tag = 'output window, operand 0, single buffered']
    #allocation4 [shape = 's32[1]{0}', space=sflag, size = 0x4, scoped, tag = 'scoped memory for tpu_custom_call.1']
    %19 = vsyncpa [#allocation4], 0
    // Predicated region
    $region2: #{tpu_custom_call.1} parent=1 // pred_check
      _
    $region3: #{tpu_custom_call.1} parent=1 // pred_check_branch
      %21 = sbr.rel (0) target = $region5
    $region4: #{tpu_custom_call.1} parent=1 // pred_region
      _
    $region5: #{tpu_custom_call.1} parent=1 // pred_fallthru
      _
    // Predicated region
    $region6: #{tpu_custom_call.1} parent=1 // pred_check
      _
    $region7: #{tpu_custom_call.1} parent=1 // pred_check_branch
      %23 = sbr.rel (0) target = $region9
    $region8: #{tpu_custom_call.1} parent=1 // pred_region
      _
    $region9: #{tpu_custom_call.1} parent=1 // pred_fallthru
      _
    // Predicated region
    $region10: #{tpu_custom_call.1} parent=1 // pred_check
      _
    $region11: #{tpu_custom_call.1} parent=1 // pred_check_branch
      %25 = sbr.rel (0) target = $region13
    $region12: #{tpu_custom_call.1} parent=1 // pred_region
      _
    $region13: #{tpu_custom_call.1} parent=1 // pred_fallthru
      _
    // Predicated region
    $region14: #{tpu_custom_call.1} parent=1 // pred_check
      _
    $region15: #{tpu_custom_call.1} parent=1 // pred_check_branch
      %27 = sbr.rel (0) target = $region17
    $region16: #{tpu_custom_call.1} parent=1 // pred_region
      _
    $region17: #{tpu_custom_call.1} parent=1 // pred_fallthru
      _
    // Predicated region
    $region18: #{tpu_custom_call.1} parent=1 // pred_check
      _
    $region19: #{tpu_custom_call.1} parent=1 // pred_check_branch
      %29 = sbr.rel (0) target = $region21
    $region20: #{tpu_custom_call.1} parent=1 // pred_region
      _
    $region21: #{tpu_custom_call.1} parent=1 // pred_fallthru
      _
    // Predicated region
    $region22: #{tpu_custom_call.1} parent=1 // pred_check
      _
    $region23: #{tpu_custom_call.1} parent=1 // pred_check_branch
      %31 = sbr.rel (0) target = $region25
    $region24: #{tpu_custom_call.1} parent=1 // pred_region
      _
    $region25: #{tpu_custom_call.1} parent=1 // pred_fallthru
      _
    // Predicated region
    $region26: #{tpu_custom_call.1} parent=1 // pred_check
      _
    $region27: #{tpu_custom_call.1} parent=1 // pred_check_branch
      %33 = sbr.rel (0) target = $region29
    $region28: #{tpu_custom_call.1} parent=1 // pred_region
      _
    $region29: #{tpu_custom_call.1} parent=1 // pred_fallthru
      _
    // Predicated region
    $region30: #{tpu_custom_call.1} parent=1 // pred_check
      _
    $region31: #{tpu_custom_call.1} parent=1 // pred_check_branch
      %35 = sbr.rel (0) target = $region33
    $region32: #{tpu_custom_call.1} parent=1 // pred_region
      _
    $region33: #{tpu_custom_call.1} parent=1 // pred_fallthru
      _
    // Predicated region
    $region34: #{tpu_custom_call.1} parent=1 // pred_check
      _
    $region35: #{tpu_custom_call.1} parent=1 // pred_check_branch
      %37 = sbr.rel (0) target = $region37
    $region36: #{tpu_custom_call.1} parent=1 // pred_region
      _
    $region37: #{tpu_custom_call.1} parent=1 // pred_fallthru
      _
    // Predicated region
    $region38: #{tpu_custom_call.1} parent=1 // pred_check
      _
    $region39: #{tpu_custom_call.1} parent=1 // pred_check_branch
      %39 = sbr.rel (0) target = $region41
    $region40: #{tpu_custom_call.1} parent=1 // pred_region
      _
    $region41: #{tpu_custom_call.1} parent=1 // pred_fallthru
      _
    // Predicated region
    $region42: #{tpu_custom_call.1} parent=1 // pred_check
      _
    $region43: #{tpu_custom_call.1} parent=1 // pred_check_branch
      %41 = sbr.rel (0) target = $region45
    $region44: #{tpu_custom_call.1} parent=1 // pred_region
      _
    $region45: #{tpu_custom_call.1} parent=1 // pred_fallthru
      _
    // Predicated region
    $region46: #{tpu_custom_call.1} parent=1 // pred_check
      _
    $region47: #{tpu_custom_call.1} parent=1 // pred_check_branch
      %43 = sbr.rel (0) target = $region49
    $region48: #{tpu_custom_call.1} parent=1 // pred_region
      _
    $region49: #{tpu_custom_call.1} parent=1 // pred_fallthru
      _
    // Predicated region
    $region50: #{tpu_custom_call.1} parent=1 // pred_check
      _
    $region51: #{tpu_custom_call.1} parent=1 // pred_check_branch
      %45 = sbr.rel (0) target = $region53
    $region52: #{tpu_custom_call.1} parent=1 // pred_region
      _
    $region53: #{tpu_custom_call.1} parent=1 // pred_fallthru
      _
    // Predicated region
    $region54: #{tpu_custom_call.1} parent=1 // pred_check
      _
    $region55: #{tpu_custom_call.1} parent=1 // pred_check_branch
      %47 = sbr.rel (0) target = $region57
    $region56: #{tpu_custom_call.1} parent=1 // pred_region
      _
    $region57: #{tpu_custom_call.1} parent=1 // pred_fallthru
      _
    %v49 = vld [vmem:[%s2] sm:$0xf]
    %v50 = vld [vmem:[%s4] sm:$0xf]
    %v51 = vld [vmem:[%s4 + $0x4] sm:$0xf]
    %v52 = vld [vmem:[%s5] sm:$0x1]
    %v54 = vperm.slane %v52, 0
    %v58 = vunpack.c.l.b16 %v50
    %v59 = vunpack.c.l.b16 %v51
    %v60 = vpack.c.b16 %v59, %v58
    %vm62 = vcmask 130048
    %v64 = vsel %vm62, %v49, 0
    %66 = vmatpush.bf16.msra.mxu0 0
    %67 = vmatpush.bf16.msra.mxu0 0
    %68 = vmatpush.bf16.msra.mxu0 0
    %69 = vmatpush.bf16.msra.mxu0 0
    %70 = vmatpush.bf16.msra.mxu0 0
    %71 = vmatpush.bf16.msra.mxu0 0
    %72 = vmatpush.bf16.msra.mxu0 0
    %73 = vmatpush.bf16.msra.mxu0 %v60
    %74 = vmatmul.bf16.gmra.mxu0 %v64
    %v75 = vpop.f32.mrf.mxu0
    %v76 = vadd.f32 %v54, %v75
    %v77 = vpop.f32.mrf.mxu0
    %78 = vdwg.mxu0
    %v79 = vmax.f32 %v76, 0.0
    %v80 = vld [vmem:[%s3] sm:$0xf]
    %v81 = vld [vmem:[%s3 + $0x4] sm:$0xf]
    %v82 = vld [vmem:[%s6] sm:$0xf]
    %v83 = vld [vmem:[%s7] sm:$0x1]
    %v85 = vperm.slane %v83, 0
    %v89 = vunpack.c.l.b16 %v80
    %v90 = vunpack.c.l.b16 %v81
    %v91 = vpack.c.b16 %v90, %v89
    %vm92 = vcmask 64512
    %v94 = vsel %vm92, %v91, 0
    %vm96 = vcmask 1043456
    %v98 = vsel %vm96, %v82, 0
    %100 = vmatpush.bf16.msra.mxu0 0
    %101 = vmatpush.bf16.msra.mxu0 0
    %102 = vmatpush.bf16.msra.mxu0 0
    %103 = vmatpush.bf16.msra.mxu0 0
    %104 = vmatpush.bf16.msra.mxu0 0
    %105 = vmatpush.bf16.msra.mxu0 0
    %106 = vmatpush.bf16.msra.mxu0 0
    %107 = vmatpush.bf16.msra.mxu0 %v98
    %108 = vmatmul.bf16.gmra.mxu0 %v94
    %v109 = vpop.f32.mrf.mxu0
    %v110 = vadd.f32 %v85, %v109
    %v111 = vpop.f32.mrf.mxu0
    %v112 = vadd.f32 %v85, %v111
    %113 = vdwg.mxu0
    %v114 = vmax.f32 %v110, 0.0
    %v115 = vmax.f32 %v112, 0.0
    %v116 = vld [vmem:[%s0] sm:$0xff]
    %v117 = vld [vmem:[%s0 + $0x8] sm:$0xff]
    %v118 = vlaneseq
    %v119 = vand.u32 %v118, 127
    %120 = vset.pattern.permute.xlu0 0
    %121 = vperm.xlu0 %120, %v116
    %v122 = vpop.permute.xlu0 %121
    %123 = vset.pattern.permute.xlu0 0
    %124 = vperm.xlu0 %123, %v117
    %v125 = vpop.permute.xlu0 %124
    %vm126 = vcmp.eq.s32.totalorder %v122, %v119
    %vm127 = vcmp.eq.s32.totalorder %v125, %v119
    %v128 = vsel %vm126, 1.0, 0.0
    %v129 = vsel %vm127, 1.0, 0.0
    %v130 = vpack.c.bf16 %v129, %v128
    %v131 = vld [vmem:[%s1] sm:$0x1]
    %v132 = vlaneseq
    %v133 = vshrl.u32 %v132, 7
    %v134 = vperm.slane %v131, 0
    %vm135 = vcmp.eq.s32.totalorder %v134, %v133
    %v136 = vsel %vm135, 1.0, 0.0
    %v137 = vpack.c.bf16 %v136, %v136
    %v138 = vpack.c.bf16 %v79, %v79
    %v140 = vsel %vm92, %v130, 0
    %v143 = vsel %vm96, %v138, 0
    %145 = vmatpush.bf16.msra.mxu0 0
    %146 = vmatpush.bf16.msra.mxu0 0
    %147 = vmatpush.bf16.msra.mxu0 0
    %148 = vmatpush.bf16.msra.mxu0 0
    %149 = vmatpush.bf16.msra.mxu0 0
    %150 = vmatpush.bf16.msra.mxu0 0
    %151 = vmatpush.bf16.msra.mxu0 0
    %152 = vmatpush.bf16.msra.mxu0 %v143
    %153 = vmatmul.bf16.gmra.mxu0 %v140
    %v154 = vpop.f32.mrf.mxu0
    %v155 = vadd.f32 0.0, %v154
    %v156 = vpop.f32.mrf.mxu0
    %v157 = vadd.f32 0.0, %v156
    %158 = vdwg.mxu0
    %160 = vset.pattern.permute.xlu0 0
    %161 = vperm.xlu0 %160, %v114
    %v162 = vpop.permute.xlu0 %161
    %165 = vset.pattern.permute.xlu0 0
    %166 = vperm.xlu0 %165, %v115
    %v167 = vpop.permute.xlu0 %166
    %v169 = vmul.f32 %v162, %v155
    %v170 = vmul.f32 %v167, %v157
    %v171 = vpack.c.bf16 %v169, %v169
    %v172 = vpack.c.bf16 %v170, %v170
    %vm173 = vcmask 257024
    %174 = vst.msk [vmem:[#allocation2] sm:$0xf] %vm173, %v171
    %175 = vst.msk [vmem:[#allocation2 + $0x24] sm:$0xf] %vm173, %v172
    %176 = vset.pattern.permute.xlu0 1
    %177 = vperm.xlu0 %176, %v114
    %v178 = vpop.permute.xlu0 %177
    %180 = vset.pattern.permute.xlu0 1
    %181 = vperm.xlu0 %180, %v115
    %v182 = vpop.permute.xlu0 %181
    %v184 = vmul.f32 %v178, %v155
    %v185 = vmul.f32 %v182, %v157
    %v186 = vpack.c.bf16 %v184, %v184
    %v187 = vpack.c.bf16 %v185, %v185
    %190 = vrot.lane.b32.xlu0 %v186, 32
    %v191 = vpop.permute.xlu0 %190
    %192 = vrot.lane.b32.xlu0 %v187, 32
    %v193 = vpop.permute.xlu0 %192
    %vm196 = vcmask 519424
    %197 = vst.msk [vmem:[#allocation2] sm:$0xf] %vm196, %v191
    %198 = vst.msk [vmem:[#allocation2 + $0x24] sm:$0xf] %vm196, %v193
    %199 = vset.pattern.permute.xlu0 2
    %200 = vperm.xlu0 %199, %v114
    %v201 = vpop.permute.xlu0 %200
    %203 = vset.pattern.permute.xlu0 2
    %204 = vperm.xlu0 %203, %v115
    %v205 = vpop.permute.xlu0 %204
    %v207 = vmul.f32 %v201, %v155
    %v208 = vmul.f32 %v205, %v157
    %v209 = vpack.c.bf16 %v207, %v207
    %v210 = vpack.c.bf16 %v208, %v208
    %213 = vrot.lane.b32.xlu0 %v209, 64
    %v214 = vpop.permute.xlu0 %213
    %215 = vrot.lane.b32.xlu0 %v210, 64
    %v216 = vpop.permute.xlu0 %215
    %vm219 = vcmask 781824
    %220 = vst.msk [vmem:[#allocation2] sm:$0xf] %vm219, %v214
    %221 = vst.msk [vmem:[#allocation2 + $0x24] sm:$0xf] %vm219, %v216
    %222 = vset.pattern.permute.xlu0 3
    %223 = vperm.xlu0 %222, %v114
    %v224 = vpop.permute.xlu0 %223
    %226 = vset.pattern.permute.xlu0 3
    %227 = vperm.xlu0 %226, %v115
    %v228 = vpop.permute.xlu0 %227
    %v230 = vmul.f32 %v224, %v155
    %v231 = vmul.f32 %v228, %v157
    %v232 = vpack.c.bf16 %v230, %v230
    %v233 = vpack.c.bf16 %v231, %v231
    %236 = vrot.lane.b32.xlu0 %v232, 96
    %v237 = vpop.permute.xlu0 %236
    %238 = vrot.lane.b32.xlu0 %v233, 96
    %v239 = vpop.permute.xlu0 %238
    %vm242 = vcmask 1044224
    %243 = vst.msk [vmem:[#allocation2] sm:$0xf] %vm242, %v237
    %244 = vst.msk [vmem:[#allocation2 + $0x24] sm:$0xf] %vm242, %v239
    %245 = vset.pattern.permute.xlu0 4
    %246 = vperm.xlu0 %245, %v114
    %v247 = vpop.permute.xlu0 %246
    %249 = vset.pattern.permute.xlu0 4
    %250 = vperm.xlu0 %249, %v115
    %v251 = vpop.permute.xlu0 %250
    %v253 = vmul.f32 %v247, %v155
    %v254 = vmul.f32 %v251, %v157
    %v255 = vpack.c.bf16 %v253, %v253
    %v256 = vpack.c.bf16 %v254, %v254
    %257 = vst.msk [vmem:[#allocation2 + $0x4] sm:$0xf] %vm173, %v255
    %258 = vst.msk [vmem:[#allocation2 + $0x28] sm:$0xf] %vm173, %v256
    %259 = vset.pattern.permute.xlu0 5
    %260 = vperm.xlu0 %259, %v114
    %v261 = vpop.permute.xlu0 %260
    %263 = vset.pattern.permute.xlu0 5
    %264 = vperm.xlu0 %263, %v115
    %v265 = vpop.permute.xlu0 %264
    %v267 = vmul.f32 %v261, %v155
    %v268 = vmul.f32 %v265, %v157
    %v269 = vpack.c.bf16 %v267, %v267
    %v270 = vpack.c.bf16 %v268, %v268
    %273 = vrot.lane.b32.xlu0 %v269, 32
    %v274 = vpop.permute.xlu0 %273
    %275 = vrot.lane.b32.xlu0 %v270, 32
    %v276 = vpop.permute.xlu0 %275
    %279 = vst.msk [vmem:[#allocation2 + $0x4] sm:$0xf] %vm196, %v274
    %280 = vst.msk [vmem:[#allocation2 + $0x28] sm:$0xf] %vm196, %v276
    %281 = vset.pattern.permute.xlu0 6
    %282 = vperm.xlu0 %281, %v114
    %v283 = vpop.permute.xlu0 %282
    %285 = vset.pattern.permute.xlu0 6
    %286 = vperm.xlu0 %285, %v115
    %v287 = vpop.permute.xlu0 %286
    %v289 = vmul.f32 %v283, %v155
    %v290 = vmul.f32 %v287, %v157
    %v291 = vpack.c.bf16 %v289, %v289
    %v292 = vpack.c.bf16 %v290, %v290
    %295 = vrot.lane.b32.xlu0 %v291, 64
    %v296 = vpop.permute.xlu0 %295
    %297 = vrot.lane.b32.xlu0 %v292, 64
    %v298 = vpop.permute.xlu0 %297
    %301 = vst.msk [vmem:[#allocation2 + $0x4] sm:$0xf] %vm219, %v296
    %302 = vst.msk [vmem:[#allocation2 + $0x28] sm:$0xf] %vm219, %v298
    %303 = vset.pattern.permute.xlu0 7
    %304 = vperm.xlu0 %303, %v114
    %v305 = vpop.permute.xlu0 %304
    %307 = vset.pattern.permute.xlu0 7
    %308 = vperm.xlu0 %307, %v115
    %v309 = vpop.permute.xlu0 %308
    %v311 = vmul.f32 %v305, %v155
    %v312 = vmul.f32 %v309, %v157
    %v313 = vpack.c.bf16 %v311, %v311
    %v314 = vpack.c.bf16 %v312, %v312
    %317 = vrot.lane.b32.xlu0 %v313, 96
    %v318 = vpop.permute.xlu0 %317
    %319 = vrot.lane.b32.xlu0 %v314, 96
    %v320 = vpop.permute.xlu0 %319
    %323 = vst.msk [vmem:[#allocation2 + $0x4] sm:$0xf] %vm242, %v318
    %324 = vst.msk [vmem:[#allocation2 + $0x28] sm:$0xf] %vm242, %v320
    %325 = vset.pattern.permute.xlu0 8
    %326 = vperm.xlu0 %325, %v114
    %v327 = vpop.permute.xlu0 %326
    %329 = vset.pattern.permute.xlu0 8
    %330 = vperm.xlu0 %329, %v115
    %v331 = vpop.permute.xlu0 %330
    %v333 = vmul.f32 %v327, %v155
    %v334 = vmul.f32 %v331, %v157
    %v335 = vpack.c.bf16 %v333, %v333
    %v336 = vpack.c.bf16 %v334, %v334
    %337 = vst.msk [vmem:[#allocation2 + $0x8] sm:$0xf] %vm173, %v335
    %338 = vst.msk [vmem:[#allocation2 + $0x2c] sm:$0xf] %vm173, %v336
    %339 = vset.pattern.permute.xlu0 9
    %340 = vperm.xlu0 %339, %v114
    %v341 = vpop.permute.xlu0 %340
    %343 = vset.pattern.permute.xlu0 9
    %344 = vperm.xlu0 %343, %v115
    %v345 = vpop.permute.xlu0 %344
    %v347 = vmul.f32 %v341, %v155
    %v348 = vmul.f32 %v345, %v157
    %v349 = vpack.c.bf16 %v347, %v347
    %v350 = vpack.c.bf16 %v348, %v348
    %353 = vrot.lane.b32.xlu0 %v349, 32
    %v354 = vpop.permute.xlu0 %353
    %355 = vrot.lane.b32.xlu0 %v350, 32
    %v356 = vpop.permute.xlu0 %355
    %359 = vst.msk [vmem:[#allocation2 + $0x8] sm:$0xf] %vm196, %v354
    %360 = vst.msk [vmem:[#allocation2 + $0x2c] sm:$0xf] %vm196, %v356
    %361 = vset.pattern.permute.xlu0 10
    %362 = vperm.xlu0 %361, %v114
    %v363 = vpop.permute.xlu0 %362
    %365 = vset.pattern.permute.xlu0 10
    %366 = vperm.xlu0 %365, %v115
    %v367 = vpop.permute.xlu0 %366
    %v369 = vmul.f32 %v363, %v155
    %v370 = vmul.f32 %v367, %v157
    %v371 = vpack.c.bf16 %v369, %v369
    %v372 = vpack.c.bf16 %v370, %v370
    %375 = vrot.lane.b32.xlu0 %v371, 64
    %v376 = vpop.permute.xlu0 %375
    %377 = vrot.lane.b32.xlu0 %v372, 64
    %v378 = vpop.permute.xlu0 %377
    %381 = vst.msk [vmem:[#allocation2 + $0x8] sm:$0xf] %vm219, %v376
    %382 = vst.msk [vmem:[#allocation2 + $0x2c] sm:$0xf] %vm219, %v378
    %383 = vset.pattern.permute.xlu0 11
    %384 = vperm.xlu0 %383, %v114
    %v385 = vpop.permute.xlu0 %384
    %387 = vset.pattern.permute.xlu0 11
    %388 = vperm.xlu0 %387, %v115
    %v389 = vpop.permute.xlu0 %388
    %v391 = vmul.f32 %v385, %v155
    %v392 = vmul.f32 %v389, %v157
    %v393 = vpack.c.bf16 %v391, %v391
    %v394 = vpack.c.bf16 %v392, %v392
    %397 = vrot.lane.b32.xlu0 %v393, 96
    %v398 = vpop.permute.xlu0 %397
    %399 = vrot.lane.b32.xlu0 %v394, 96
    %v400 = vpop.permute.xlu0 %399
    %403 = vst.msk [vmem:[#allocation2 + $0x8] sm:$0xf] %vm242, %v398
    %404 = vst.msk [vmem:[#allocation2 + $0x2c] sm:$0xf] %vm242, %v400
    %405 = vset.pattern.permute.xlu0 12
    %406 = vperm.xlu0 %405, %v114
    %v407 = vpop.permute.xlu0 %406
    %409 = vset.pattern.permute.xlu0 12
    %410 = vperm.xlu0 %409, %v115
    %v411 = vpop.permute.xlu0 %410
    %v413 = vmul.f32 %v407, %v155
    %v414 = vmul.f32 %v411, %v157
    %v415 = vpack.c.bf16 %v413, %v413
    %v416 = vpack.c.bf16 %v414, %v414
    %417 = vst.msk [vmem:[#allocation2 + $0xc] sm:$0xf] %vm173, %v415
    %418 = vst.msk [vmem:[#allocation2 + $0x30] sm:$0xf] %vm173, %v416
    %419 = vset.pattern.permute.xlu0 13
    %420 = vperm.xlu0 %419, %v114
    %v421 = vpop.permute.xlu0 %420
    %423 = vset.pattern.permute.xlu0 13
    %424 = vperm.xlu0 %423, %v115
    %v425 = vpop.permute.xlu0 %424
    %v427 = vmul.f32 %v421, %v155
    %v428 = vmul.f32 %v425, %v157
    %v429 = vpack.c.bf16 %v427, %v427
    %v430 = vpack.c.bf16 %v428, %v428
    %433 = vrot.lane.b32.xlu0 %v429, 32
    %v434 = vpop.permute.xlu0 %433
    %435 = vrot.lane.b32.xlu0 %v430, 32
    %v436 = vpop.permute.xlu0 %435
    %439 = vst.msk [vmem:[#allocation2 + $0xc] sm:$0xf] %vm196, %v434
    %440 = vst.msk [vmem:[#allocation2 + $0x30] sm:$0xf] %vm196, %v436
    %441 = vset.pattern.permute.xlu0 14
    %442 = vperm.xlu0 %441, %v114
    %v443 = vpop.permute.xlu0 %442
    %445 = vset.pattern.permute.xlu0 14
    %446 = vperm.xlu0 %445, %v115
    %v447 = vpop.permute.xlu0 %446
    %v449 = vmul.f32 %v443, %v155
    %v450 = vmul.f32 %v447, %v157
    %v451 = vpack.c.bf16 %v449, %v449
    %v452 = vpack.c.bf16 %v450, %v450
    %455 = vrot.lane.b32.xlu0 %v451, 64
    %v456 = vpop.permute.xlu0 %455
    %457 = vrot.lane.b32.xlu0 %v452, 64
    %v458 = vpop.permute.xlu0 %457
    %461 = vst.msk [vmem:[#allocation2 + $0xc] sm:$0xf] %vm219, %v456
    %462 = vst.msk [vmem:[#allocation2 + $0x30] sm:$0xf] %vm219, %v458
    %463 = vset.pattern.permute.xlu0 15
    %464 = vperm.xlu0 %463, %v114
    %v465 = vpop.permute.xlu0 %464
    %467 = vset.pattern.permute.xlu0 15
    %468 = vperm.xlu0 %467, %v115
    %v469 = vpop.permute.xlu0 %468
    %v471 = vmul.f32 %v465, %v155
    %v472 = vmul.f32 %v469, %v157
    %v473 = vpack.c.bf16 %v471, %v471
    %v474 = vpack.c.bf16 %v472, %v472
    %477 = vrot.lane.b32.xlu0 %v473, 96
    %v478 = vpop.permute.xlu0 %477
    %479 = vrot.lane.b32.xlu0 %v474, 96
    %v480 = vpop.permute.xlu0 %479
    %483 = vst.msk [vmem:[#allocation2 + $0xc] sm:$0xf] %vm242, %v478
    %484 = vst.msk [vmem:[#allocation2 + $0x30] sm:$0xf] %vm242, %v480
    %485 = vset.pattern.permute.xlu0 16
    %486 = vperm.xlu0 %485, %v114
    %v487 = vpop.permute.xlu0 %486
    %489 = vset.pattern.permute.xlu0 16
    %490 = vperm.xlu0 %489, %v115
    %v491 = vpop.permute.xlu0 %490
    %v493 = vmul.f32 %v487, %v155
    %v494 = vmul.f32 %v491, %v157
    %v495 = vpack.c.bf16 %v493, %v493
    %v496 = vpack.c.bf16 %v494, %v494
    %497 = vst.msk [vmem:[#allocation2 + $0x10] sm:$0xf] %vm173, %v495
    %498 = vst.msk [vmem:[#allocation2 + $0x34] sm:$0xf] %vm173, %v496
    %499 = vset.pattern.permute.xlu0 17
    %500 = vperm.xlu0 %499, %v114
    %v501 = vpop.permute.xlu0 %500
    %503 = vset.pattern.permute.xlu0 17
    %504 = vperm.xlu0 %503, %v115
    %v505 = vpop.permute.xlu0 %504
    %v507 = vmul.f32 %v501, %v155
    %v508 = vmul.f32 %v505, %v157
    %v509 = vpack.c.bf16 %v507, %v507
    %v510 = vpack.c.bf16 %v508, %v508
    %513 = vrot.lane.b32.xlu0 %v509, 32
    %v514 = vpop.permute.xlu0 %513
    %515 = vrot.lane.b32.xlu0 %v510, 32
    %v516 = vpop.permute.xlu0 %515
    %519 = vst.msk [vmem:[#allocation2 + $0x10] sm:$0xf] %vm196, %v514
    %520 = vst.msk [vmem:[#allocation2 + $0x34] sm:$0xf] %vm196, %v516
    %521 = vset.pattern.permute.xlu0 18
    %522 = vperm.xlu0 %521, %v114
    %v523 = vpop.permute.xlu0 %522
    %525 = vset.pattern.permute.xlu0 18
    %526 = vperm.xlu0 %525, %v115
    %v527 = vpop.permute.xlu0 %526
    %v529 = vmul.f32 %v523, %v155
    %v530 = vmul.f32 %v527, %v157
    %v531 = vpack.c.bf16 %v529, %v529
    %v532 = vpack.c.bf16 %v530, %v530
    %535 = vrot.lane.b32.xlu0 %v531, 64
    %v536 = vpop.permute.xlu0 %535
    %537 = vrot.lane.b32.xlu0 %v532, 64
    %v538 = vpop.permute.xlu0 %537
    %541 = vst.msk [vmem:[#allocation2 + $0x10] sm:$0xf] %vm219, %v536
    %542 = vst.msk [vmem:[#allocation2 + $0x34] sm:$0xf] %vm219, %v538
    %543 = vset.pattern.permute.xlu0 19
    %544 = vperm.xlu0 %543, %v114
    %v545 = vpop.permute.xlu0 %544
    %547 = vset.pattern.permute.xlu0 19
    %548 = vperm.xlu0 %547, %v115
    %v549 = vpop.permute.xlu0 %548
    %v551 = vmul.f32 %v545, %v155
    %v552 = vmul.f32 %v549, %v157
    %v553 = vpack.c.bf16 %v551, %v551
    %v554 = vpack.c.bf16 %v552, %v552
    %557 = vrot.lane.b32.xlu0 %v553, 96
    %v558 = vpop.permute.xlu0 %557
    %559 = vrot.lane.b32.xlu0 %v554, 96
    %v560 = vpop.permute.xlu0 %559
    %563 = vst.msk [vmem:[#allocation2 + $0x10] sm:$0xf] %vm242, %v558
    %564 = vst.msk [vmem:[#allocation2 + $0x34] sm:$0xf] %vm242, %v560
    %565 = vset.pattern.permute.xlu0 20
    %566 = vperm.xlu0 %565, %v114
    %v567 = vpop.permute.xlu0 %566
    %569 = vset.pattern.permute.xlu0 20
    %570 = vperm.xlu0 %569, %v115
    %v571 = vpop.permute.xlu0 %570
    %v573 = vmul.f32 %v567, %v155
    %v574 = vmul.f32 %v571, %v157
    %v575 = vpack.c.bf16 %v573, %v573
    %v576 = vpack.c.bf16 %v574, %v574
    %577 = vst.msk [vmem:[#allocation2 + $0x14] sm:$0xf] %vm173, %v575
    %578 = vst.msk [vmem:[#allocation2 + $0x38] sm:$0xf] %vm173, %v576
    %579 = vset.pattern.permute.xlu0 21
    %580 = vperm.xlu0 %579, %v114
    %v581 = vpop.permute.xlu0 %580
    %583 = vset.pattern.permute.xlu0 21
    %584 = vperm.xlu0 %583, %v115
    %v585 = vpop.permute.xlu0 %584
    %v587 = vmul.f32 %v581, %v155
    %v588 = vmul.f32 %v585, %v157
    %v589 = vpack.c.bf16 %v587, %v587
    %v590 = vpack.c.bf16 %v588, %v588
    %593 = vrot.lane.b32.xlu0 %v589, 32
    %v594 = vpop.permute.xlu0 %593
    %595 = vrot.lane.b32.xlu0 %v590, 32
    %v596 = vpop.permute.xlu0 %595
    %599 = vst.msk [vmem:[#allocation2 + $0x14] sm:$0xf] %vm196, %v594
    %600 = vst.msk [vmem:[#allocation2 + $0x38] sm:$0xf] %vm196, %v596
    %601 = vset.pattern.permute.xlu0 22
    %602 = vperm.xlu0 %601, %v114
    %v603 = vpop.permute.xlu0 %602
    %605 = vset.pattern.permute.xlu0 22
    %606 = vperm.xlu0 %605, %v115
    %v607 = vpop.permute.xlu0 %606
    %v609 = vmul.f32 %v603, %v155
    %v610 = vmul.f32 %v607, %v157
    %v611 = vpack.c.bf16 %v609, %v609
    %v612 = vpack.c.bf16 %v610, %v610
    %615 = vrot.lane.b32.xlu0 %v611, 64
    %v616 = vpop.permute.xlu0 %615
    %617 = vrot.lane.b32.xlu0 %v612, 64
    %v618 = vpop.permute.xlu0 %617
    %621 = vst.msk [vmem:[#allocation2 + $0x14] sm:$0xf] %vm219, %v616
    %622 = vst.msk [vmem:[#allocation2 + $0x38] sm:$0xf] %vm219, %v618
    %623 = vset.pattern.permute.xlu0 23
    %624 = vperm.xlu0 %623, %v114
    %v625 = vpop.permute.xlu0 %624
    %627 = vset.pattern.permute.xlu0 23
    %628 = vperm.xlu0 %627, %v115
    %v629 = vpop.permute.xlu0 %628
    %v631 = vmul.f32 %v625, %v155
    %v632 = vmul.f32 %v629, %v157
    %v633 = vpack.c.bf16 %v631, %v631
    %v634 = vpack.c.bf16 %v632, %v632
    %637 = vrot.lane.b32.xlu0 %v633, 96
    %v638 = vpop.permute.xlu0 %637
    %639 = vrot.lane.b32.xlu0 %v634, 96
    %v640 = vpop.permute.xlu0 %639
    %643 = vst.msk [vmem:[#allocation2 + $0x14] sm:$0xf] %vm242, %v638
    %644 = vst.msk [vmem:[#allocation2 + $0x38] sm:$0xf] %vm242, %v640
    %645 = vset.pattern.permute.xlu0 24
    %646 = vperm.xlu0 %645, %v114
    %v647 = vpop.permute.xlu0 %646
    %649 = vset.pattern.permute.xlu0 24
    %650 = vperm.xlu0 %649, %v115
    %v651 = vpop.permute.xlu0 %650
    %v653 = vmul.f32 %v647, %v155
    %v654 = vmul.f32 %v651, %v157
    %v655 = vpack.c.bf16 %v653, %v653
    %v656 = vpack.c.bf16 %v654, %v654
    %657 = vst.msk [vmem:[#allocation2 + $0x18] sm:$0xf] %vm173, %v655
    %658 = vst.msk [vmem:[#allocation2 + $0x3c] sm:$0xf] %vm173, %v656
    %659 = vset.pattern.permute.xlu0 25
    %660 = vperm.xlu0 %659, %v114
    %v661 = vpop.permute.xlu0 %660
    %663 = vset.pattern.permute.xlu0 25
    %664 = vperm.xlu0 %663, %v115
    %v665 = vpop.permute.xlu0 %664
    %v667 = vmul.f32 %v661, %v155
    %v668 = vmul.f32 %v665, %v157
    %v669 = vpack.c.bf16 %v667, %v667
    %v670 = vpack.c.bf16 %v668, %v668
    %673 = vrot.lane.b32.xlu0 %v669, 32
    %v674 = vpop.permute.xlu0 %673
    %675 = vrot.lane.b32.xlu0 %v670, 32
    %v676 = vpop.permute.xlu0 %675
    %679 = vst.msk [vmem:[#allocation2 + $0x18] sm:$0xf] %vm196, %v674
    %680 = vst.msk [vmem:[#allocation2 + $0x3c] sm:$0xf] %vm196, %v676
    %681 = vset.pattern.permute.xlu0 26
    %682 = vperm.xlu0 %681, %v114
    %v683 = vpop.permute.xlu0 %682
    %685 = vset.pattern.permute.xlu0 26
    %686 = vperm.xlu0 %685, %v115
    %v687 = vpop.permute.xlu0 %686
    %v689 = vmul.f32 %v683, %v155
    %v690 = vmul.f32 %v687, %v157
    %v691 = vpack.c.bf16 %v689, %v689
    %v692 = vpack.c.bf16 %v690, %v690
    %695 = vrot.lane.b32.xlu0 %v691, 64
    %v696 = vpop.permute.xlu0 %695
    %697 = vrot.lane.b32.xlu0 %v692, 64
    %v698 = vpop.permute.xlu0 %697
    %701 = vst.msk [vmem:[#allocation2 + $0x18] sm:$0xf] %vm219, %v696
    %702 = vst.msk [vmem:[#allocation2 + $0x3c] sm:$0xf] %vm219, %v698
    %703 = vset.pattern.permute.xlu0 27
    %704 = vperm.xlu0 %703, %v114
    %v705 = vpop.permute.xlu0 %704
    %707 = vset.pattern.permute.xlu0 27
    %708 = vperm.xlu0 %707, %v115
    %v709 = vpop.permute.xlu0 %708
    %v711 = vmul.f32 %v705, %v155
    %v712 = vmul.f32 %v709, %v157
    %v713 = vpack.c.bf16 %v711, %v711
    %v714 = vpack.c.bf16 %v712, %v712
    %717 = vrot.lane.b32.xlu0 %v713, 96
    %v718 = vpop.permute.xlu0 %717
    %719 = vrot.lane.b32.xlu0 %v714, 96
    %v720 = vpop.permute.xlu0 %719
    %723 = vst.msk [vmem:[#allocation2 + $0x18] sm:$0xf] %vm242, %v718
    %724 = vst.msk [vmem:[#allocation2 + $0x3c] sm:$0xf] %vm242, %v720
    %725 = vset.pattern.permute.xlu0 28
    %726 = vperm.xlu0 %725, %v114
    %v727 = vpop.permute.xlu0 %726
    %729 = vset.pattern.permute.xlu0 28
    %730 = vperm.xlu0 %729, %v115
    %v731 = vpop.permute.xlu0 %730
    %v733 = vmul.f32 %v727, %v155
    %v734 = vmul.f32 %v731, %v157
    %v735 = vpack.c.bf16 %v733, %v733
    %v736 = vpack.c.bf16 %v734, %v734
    %737 = vst.msk [vmem:[#allocation2 + $0x1c] sm:$0xf] %vm173, %v735
    %738 = vst.msk [vmem:[#allocation2 + $0x40] sm:$0xf] %vm173, %v736
    %739 = vset.pattern.permute.xlu0 29
    %740 = vperm.xlu0 %739, %v114
    %v741 = vpop.permute.xlu0 %740
    %743 = vset.pattern.permute.xlu0 29
    %744 = vperm.xlu0 %743, %v115
    %v745 = vpop.permute.xlu0 %744
    %v747 = vmul.f32 %v741, %v155
    %v748 = vmul.f32 %v745, %v157
    %v749 = vpack.c.bf16 %v747, %v747
    %v750 = vpack.c.bf16 %v748, %v748
    %753 = vrot.lane.b32.xlu0 %v749, 32
    %v754 = vpop.permute.xlu0 %753
    %755 = vrot.lane.b32.xlu0 %v750, 32
    %v756 = vpop.permute.xlu0 %755
    %759 = vst.msk [vmem:[#allocation2 + $0x1c] sm:$0xf] %vm196, %v754
    %760 = vst.msk [vmem:[#allocation2 + $0x40] sm:$0xf] %vm196, %v756
    %761 = vset.pattern.permute.xlu0 30
    %762 = vperm.xlu0 %761, %v114
    %v763 = vpop.permute.xlu0 %762
    %765 = vset.pattern.permute.xlu0 30
    %766 = vperm.xlu0 %765, %v115
    %v767 = vpop.permute.xlu0 %766
    %v769 = vmul.f32 %v763, %v155
    %v770 = vmul.f32 %v767, %v157
    %v771 = vpack.c.bf16 %v769, %v769
    %v772 = vpack.c.bf16 %v770, %v770
    %775 = vrot.lane.b32.xlu0 %v771, 64
    %v776 = vpop.permute.xlu0 %775
    %777 = vrot.lane.b32.xlu0 %v772, 64
    %v778 = vpop.permute.xlu0 %777
    %781 = vst.msk [vmem:[#allocation2 + $0x1c] sm:$0xf] %vm219, %v776
    %782 = vst.msk [vmem:[#allocation2 + $0x40] sm:$0xf] %vm219, %v778
    %783 = vset.pattern.permute.xlu0 31
    %784 = vperm.xlu0 %783, %v114
    %v785 = vpop.permute.xlu0 %784
    %787 = vset.pattern.permute.xlu0 31
    %788 = vperm.xlu0 %787, %v115
    %v789 = vpop.permute.xlu0 %788
    %v791 = vmul.f32 %v785, %v155
    %v792 = vmul.f32 %v789, %v157
    %v793 = vpack.c.bf16 %v791, %v791
    %v794 = vpack.c.bf16 %v792, %v792
    %797 = vrot.lane.b32.xlu0 %v793, 96
    %v798 = vpop.permute.xlu0 %797
    %799 = vrot.lane.b32.xlu0 %v794, 96
    %v800 = vpop.permute.xlu0 %799
    %803 = vst.msk [vmem:[#allocation2 + $0x1c] sm:$0xf] %vm242, %v798
    %804 = vst.msk [vmem:[#allocation2 + $0x40] sm:$0xf] %vm242, %v800
    %v805 = vpack.c.bf16 %v155, %v155
    %v806 = vpack.c.bf16 %v157, %v157
    %807 = vst.msk [vmem:[#allocation2 + $0x20] sm:$0xf] %vm173, %v805
    %808 = vst.msk [vmem:[#allocation2 + $0x44] sm:$0xf] %vm173, %v806
    %v809 = vld [vmem:[#allocation2] sm:$0xff]
    %v810 = vld [vmem:[#allocation2 + $0x8] sm:$0xff]
    %v811 = vld [vmem:[#allocation2 + $0x10] sm:$0xff]
    %v812 = vld [vmem:[#allocation2 + $0x18] sm:$0xff]
    %v813 = vld [vmem:[#allocation2 + $0x20] sm:$0xf]
    %v814 = vld [vmem:[#allocation2 + $0x24] sm:$0xff]
    %v815 = vld [vmem:[#allocation2 + $0x2c] sm:$0xff]
    %v816 = vld [vmem:[#allocation2 + $0x34] sm:$0xff]
    %v817 = vld [vmem:[#allocation2 + $0x3c] sm:$0xff]
    %v818 = vld [vmem:[#allocation2 + $0x44] sm:$0xf]
    %v819 = vld [vmem:[%s8] sm:$0xf]
    %v820 = vld [vmem:[%s8 + $0x4] sm:$0xf]
    %v821 = vld [vmem:[%s8 + $0x8] sm:$0xf]
    %v822 = vld [vmem:[%s8 + $0xc] sm:$0xf]
    %v823 = vld [vmem:[%s8 + $0x10] sm:$0xf]
    %v824 = vld [vmem:[%s8 + $0x14] sm:$0xf]
    %v825 = vld [vmem:[%s8 + $0x18] sm:$0xf]
    %v826 = vld [vmem:[%s8 + $0x1c] sm:$0xf]
    %v827 = vld [vmem:[%s8 + $0x20] sm:$0xf]
    %v828 = vld [vmem:[%s8 + $0x24] sm:$0xf]
    %v829 = vld [vmem:[%s8 + $0x28] sm:$0xf]
    %v830 = vld [vmem:[%s8 + $0x2c] sm:$0xf]
    %v831 = vld [vmem:[%s8 + $0x30] sm:$0xf]
    %v832 = vld [vmem:[%s8 + $0x34] sm:$0xf]
    %v833 = vld [vmem:[%s8 + $0x38] sm:$0xf]
    %v834 = vld [vmem:[%s8 + $0x3c] sm:$0xf]
    %v835 = vld [vmem:[%s8 + $0x40] sm:$0xf]
    %v836 = vld [vmem:[%s8 + $0x44] sm:$0xf]
    %v837 = vld [vmem:[%s8 + $0x48] sm:$0xf]
    %v838 = vld [vmem:[%s8 + $0x4c] sm:$0xf]
    %v839 = vld [vmem:[%s8 + $0x50] sm:$0xf]
    %v840 = vld [vmem:[%s8 + $0x54] sm:$0xf]
    %v841 = vld [vmem:[%s8 + $0x58] sm:$0xf]
    %v842 = vld [vmem:[%s8 + $0x5c] sm:$0xf]
    %v843 = vld [vmem:[%s8 + $0x60] sm:$0xf]
    %v844 = vld [vmem:[%s8 + $0x64] sm:$0xf]
    %v845 = vld [vmem:[%s8 + $0x68] sm:$0xf]
    %v846 = vld [vmem:[%s8 + $0x6c] sm:$0xf]
    %v847 = vld [vmem:[%s8 + $0x70] sm:$0xf]
    %v848 = vld [vmem:[%s8 + $0x74] sm:$0xf]
    %v849 = vld [vmem:[%s8 + $0x78] sm:$0xf]
    %v850 = vld [vmem:[%s8 + $0x7c] sm:$0xf]
    %v851 = vld [vmem:[%s8 + $0x80] sm:$0xf]
    %v852 = vld [vmem:[%s8 + $0x84] sm:$0xf]
    %v853 = vld [vmem:[%s8 + $0x88] sm:$0xf]
    %v854 = vld [vmem:[%s8 + $0x8c] sm:$0xf]
    %v855 = vld [vmem:[%s8 + $0x90] sm:$0xf]
    %v856 = vld [vmem:[%s8 + $0x94] sm:$0xf]
    %v857 = vld [vmem:[%s8 + $0x98] sm:$0xf]
    %v858 = vld [vmem:[%s8 + $0x9c] sm:$0xf]
    %v859 = vld [vmem:[%s8 + $0xa0] sm:$0xf]
    %v860 = vld [vmem:[%s8 + $0xa4] sm:$0xf]
    %v861 = vld [vmem:[%s8 + $0xa8] sm:$0xf]
    %v862 = vld [vmem:[%s8 + $0xac] sm:$0xf]
    %v863 = vld [vmem:[%s8 + $0xb0] sm:$0xf]
    %v864 = vld [vmem:[%s8 + $0xb4] sm:$0xf]
    %v865 = vld [vmem:[%s8 + $0xb8] sm:$0xf]
    %v866 = vld [vmem:[%s8 + $0xbc] sm:$0xf]
    %v867 = vld [vmem:[%s8 + $0xc0] sm:$0xf]
    %v868 = vld [vmem:[%s8 + $0xc4] sm:$0xf]
    %v869 = vld [vmem:[%s8 + $0xc8] sm:$0xf]
    %v870 = vld [vmem:[%s8 + $0xcc] sm:$0xf]
    %v871 = vld [vmem:[%s8 + $0xd0] sm:$0xf]
    %v872 = vld [vmem:[%s8 + $0xd4] sm:$0xf]
    %v873 = vld [vmem:[%s8 + $0xd8] sm:$0xf]
    %v874 = vld [vmem:[%s8 + $0xdc] sm:$0xf]
    %v875 = vld [vmem:[%s8 + $0xe0] sm:$0xf]
    %v876 = vld [vmem:[%s8 + $0xe4] sm:$0xf]
    %v877 = vld [vmem:[%s8 + $0xe8] sm:$0xf]
    %v878 = vld [vmem:[%s8 + $0xec] sm:$0xf]
    %v879 = vld [vmem:[%s8 + $0xf0] sm:$0xf]
    %v880 = vld [vmem:[%s8 + $0xf4] sm:$0xf]
    %v881 = vld [vmem:[%s8 + $0xf8] sm:$0xf]
    %v882 = vld [vmem:[%s8 + $0xfc] sm:$0xf]
    %v883 = vld [vmem:[%s8 + $0x100] sm:$0xf]
    %v884 = vld [vmem:[%s8 + $0x104] sm:$0xf]
    %v885 = vld [vmem:[%s8 + $0x108] sm:$0xf]
    %v886 = vld [vmem:[%s8 + $0x10c] sm:$0xf]
    %v887 = vld [vmem:[%s8 + $0x110] sm:$0xf]
    %v888 = vld [vmem:[%s8 + $0x114] sm:$0xf]
    %v889 = vld [vmem:[%s8 + $0x118] sm:$0xf]
    %v890 = vld [vmem:[%s8 + $0x11c] sm:$0xf]
    %v891 = vld [vmem:[%s8 + $0x120] sm:$0xf]
    %v892 = vld [vmem:[%s8 + $0x124] sm:$0xf]
    %v893 = vld [vmem:[%s8 + $0x128] sm:$0xf]
    %v894 = vld [vmem:[%s8 + $0x12c] sm:$0xf]
    %v895 = vld [vmem:[%s8 + $0x130] sm:$0xf]
    %v896 = vld [vmem:[%s8 + $0x134] sm:$0xf]
    %v897 = vld [vmem:[%s8 + $0x138] sm:$0xf]
    %v898 = vld [vmem:[%s8 + $0x13c] sm:$0xf]
    %v899 = vld [vmem:[%s8 + $0x140] sm:$0xf]
    %v900 = vld [vmem:[%s8 + $0x144] sm:$0xf]
    %v901 = vld [vmem:[%s8 + $0x148] sm:$0xf]
    %v902 = vld [vmem:[%s8 + $0x14c] sm:$0xf]
    %v903 = vld [vmem:[%s8 + $0x150] sm:$0xf]
    %v904 = vld [vmem:[%s8 + $0x154] sm:$0xf]
    %v905 = vld [vmem:[%s8 + $0x158] sm:$0xf]
    %v906 = vld [vmem:[%s8 + $0x15c] sm:$0xf]
    %v907 = vld [vmem:[%s8 + $0x160] sm:$0xf]
    %v908 = vld [vmem:[%s8 + $0x164] sm:$0xf]
    %v909 = vld [vmem:[%s8 + $0x168] sm:$0xf]
    %v910 = vld [vmem:[%s8 + $0x16c] sm:$0xf]
    %v911 = vld [vmem:[%s8 + $0x170] sm:$0xf]
    %v912 = vld [vmem:[%s8 + $0x174] sm:$0xf]
    %v913 = vld [vmem:[%s8 + $0x178] sm:$0xf]
    %v914 = vld [vmem:[%s8 + $0x17c] sm:$0xf]
    %v915 = vld [vmem:[%s8 + $0x180] sm:$0xf]
    %v916 = vld [vmem:[%s8 + $0x184] sm:$0xf]
    %v917 = vld [vmem:[%s8 + $0x188] sm:$0xf]
    %v918 = vld [vmem:[%s8 + $0x18c] sm:$0xf]
    %v919 = vld [vmem:[%s8 + $0x190] sm:$0xf]
    %v920 = vld [vmem:[%s8 + $0x194] sm:$0xf]
    %v921 = vld [vmem:[%s8 + $0x198] sm:$0xf]
    %v922 = vld [vmem:[%s8 + $0x19c] sm:$0xf]
    %v923 = vld [vmem:[%s8 + $0x1a0] sm:$0xf]
    %v924 = vld [vmem:[%s8 + $0x1a4] sm:$0xf]
    %v925 = vld [vmem:[%s8 + $0x1a8] sm:$0xf]
    %v926 = vld [vmem:[%s8 + $0x1ac] sm:$0xf]
    %v927 = vld [vmem:[%s8 + $0x1b0] sm:$0xf]
    %v928 = vld [vmem:[%s8 + $0x1b4] sm:$0xf]
    %v929 = vld [vmem:[%s8 + $0x1b8] sm:$0xf]
    %v930 = vld [vmem:[%s8 + $0x1bc] sm:$0xf]
    %v931 = vld [vmem:[%s8 + $0x1c0] sm:$0xf]
    %v932 = vld [vmem:[%s8 + $0x1c4] sm:$0xf]
    %v933 = vld [vmem:[%s8 + $0x1c8] sm:$0xf]
    %v934 = vld [vmem:[%s8 + $0x1cc] sm:$0xf]
    %v935 = vld [vmem:[%s8 + $0x1d0] sm:$0xf]
    %v936 = vld [vmem:[%s8 + $0x1d4] sm:$0xf]
    %v937 = vld [vmem:[%s8 + $0x1d8] sm:$0xf]
    %v938 = vld [vmem:[%s8 + $0x1dc] sm:$0xf]
    %v939 = vld [vmem:[%s8 + $0x1e0] sm:$0xf]
    %v940 = vld [vmem:[%s8 + $0x1e4] sm:$0xf]
    %v941 = vld [vmem:[%s8 + $0x1e8] sm:$0xf]
    %v942 = vld [vmem:[%s8 + $0x1ec] sm:$0xf]
    %v943 = vld [vmem:[%s8 + $0x1f0] sm:$0xf]
    %v944 = vld [vmem:[%s8 + $0x1f4] sm:$0xf]
    %v945 = vld [vmem:[%s8 + $0x1f8] sm:$0xf]
    %v946 = vld [vmem:[%s8 + $0x1fc] sm:$0xf]
    %v947 = vld [vmem:[%s8 + $0x200] sm:$0xf]
    %v948 = vld [vmem:[%s8 + $0x204] sm:$0xf]
    %v949 = vld [vmem:[%s8 + $0x208] sm:$0xf]
    %v950 = vld [vmem:[%s8 + $0x20c] sm:$0xf]
    %v961 = vunpack.c.l.b16 %v809
    %v962 = vunpack.c.h.b16 %v809
    %v963 = vunpack.c.l.b16 %v810
    %v964 = vunpack.c.h.b16 %v810
    %v965 = vunpack.c.l.b16 %v811
    %v966 = vunpack.c.h.b16 %v811
    %v967 = vunpack.c.l.b16 %v812
    %v968 = vunpack.c.h.b16 %v812
    %v969 = vunpack.c.l.b16 %v813
    %v970 = vunpack.c.l.b16 %v814
    %v971 = vunpack.c.h.b16 %v814
    %v972 = vunpack.c.l.b16 %v815
    %v973 = vunpack.c.h.b16 %v815
    %v974 = vunpack.c.l.b16 %v816
    %v975 = vunpack.c.h.b16 %v816
    %v976 = vunpack.c.l.b16 %v817
    %v977 = vunpack.c.h.b16 %v817
    %v978 = vunpack.c.l.b16 %v818
    %v979 = vpack.c.b16 %v970, %v961
    %v980 = vpack.c.b16 %v971, %v962
    %v981 = vpack.c.b16 %v972, %v963
    %v982 = vpack.c.b16 %v973, %v964
    %v983 = vpack.c.b16 %v974, %v965
    %v984 = vpack.c.b16 %v975, %v966
    %v985 = vpack.c.b16 %v976, %v967
    %v986 = vpack.c.b16 %v977, %v968
    %v987 = vpack.c.b16 %v978, %v969
    %v1128 = vunpack.c.l.b16 %v819
    %v1129 = vunpack.c.l.b16 %v820
    %v1130 = vunpack.c.l.b16 %v821
    %v1131 = vunpack.c.l.b16 %v822
    %v1132 = vunpack.c.l.b16 %v823
    %v1133 = vunpack.c.l.b16 %v824
    %v1134 = vunpack.c.l.b16 %v825
    %v1135 = vunpack.c.l.b16 %v826
    %v1136 = vunpack.c.l.b16 %v827
    %v1137 = vunpack.c.l.b16 %v828
    %v1138 = vunpack.c.l.b16 %v829
    %v1139 = vunpack.c.l.b16 %v830
    %v1140 = vunpack.c.l.b16 %v831
    %v1141 = vunpack.c.l.b16 %v832
    %v1142 = vunpack.c.l.b16 %v833
    %v1143 = vunpack.c.l.b16 %v834
    %v1144 = vunpack.c.l.b16 %v835
    %v1145 = vunpack.c.l.b16 %v836
    %v1146 = vunpack.c.l.b16 %v837
    %v1147 = vunpack.c.l.b16 %v838
    %v1148 = vunpack.c.l.b16 %v839
    %v1149 = vunpack.c.l.b16 %v840
    %v1150 = vunpack.c.l.b16 %v841
    %v1151 = vunpack.c.l.b16 %v842
    %v1152 = vunpack.c.l.b16 %v843
    %v1153 = vunpack.c.l.b16 %v844
    %v1154 = vunpack.c.l.b16 %v845
    %v1155 = vunpack.c.l.b16 %v846
    %v1156 = vunpack.c.l.b16 %v847
    %v1157 = vunpack.c.l.b16 %v848
    %v1158 = vunpack.c.l.b16 %v849
    %v1159 = vunpack.c.l.b16 %v850
    %v1160 = vunpack.c.l.b16 %v851
    %v1161 = vunpack.c.l.b16 %v852
    %v1162 = vunpack.c.l.b16 %v853
    %v1163 = vunpack.c.l.b16 %v854
    %v1164 = vunpack.c.l.b16 %v855
    %v1165 = vunpack.c.l.b16 %v856
    %v1166 = vunpack.c.l.b16 %v857
    %v1167 = vunpack.c.l.b16 %v858
    %v1168 = vunpack.c.l.b16 %v859
    %v1169 = vunpack.c.l.b16 %v860
    %v1170 = vunpack.c.l.b16 %v861
    %v1171 = vunpack.c.l.b16 %v862
    %v1172 = vunpack.c.l.b16 %v863
    %v1173 = vunpack.c.l.b16 %v864
    %v1174 = vunpack.c.l.b16 %v865
    %v1175 = vunpack.c.l.b16 %v866
    %v1176 = vunpack.c.l.b16 %v867
    %v1177 = vunpack.c.l.b16 %v868
    %v1178 = vunpack.c.l.b16 %v869
    %v1179 = vunpack.c.l.b16 %v870
    %v1180 = vunpack.c.l.b16 %v871
    %v1181 = vunpack.c.l.b16 %v872
    %v1182 = vunpack.c.l.b16 %v873
    %v1183 = vunpack.c.l.b16 %v874
    %v1184 = vunpack.c.l.b16 %v875
    %v1185 = vunpack.c.l.b16 %v876
    %v1186 = vunpack.c.l.b16 %v877
    %v1187 = vunpack.c.l.b16 %v878
    %v1188 = vunpack.c.l.b16 %v879
    %v1189 = vunpack.c.l.b16 %v880
    %v1190 = vunpack.c.l.b16 %v881
    %v1191 = vunpack.c.l.b16 %v882
    %v1192 = vunpack.c.l.b16 %v883
    %v1193 = vunpack.c.l.b16 %v884
    %v1194 = vunpack.c.l.b16 %v885
    %v1195 = vunpack.c.l.b16 %v886
    %v1196 = vunpack.c.l.b16 %v887
    %v1197 = vunpack.c.l.b16 %v888
    %v1198 = vunpack.c.l.b16 %v889
    %v1199 = vunpack.c.l.b16 %v890
    %v1200 = vunpack.c.l.b16 %v891
    %v1201 = vunpack.c.l.b16 %v892
    %v1202 = vunpack.c.l.b16 %v893
    %v1203 = vunpack.c.l.b16 %v894
    %v1204 = vunpack.c.l.b16 %v895
    %v1205 = vunpack.c.l.b16 %v896
    %v1206 = vunpack.c.l.b16 %v897
    %v1207 = vunpack.c.l.b16 %v898
    %v1208 = vunpack.c.l.b16 %v899
    %v1209 = vunpack.c.l.b16 %v900
    %v1210 = vunpack.c.l.b16 %v901
    %v1211 = vunpack.c.l.b16 %v902
    %v1212 = vunpack.c.l.b16 %v903
    %v1213 = vunpack.c.l.b16 %v904
    %v1214 = vunpack.c.l.b16 %v905
    %v1215 = vunpack.c.l.b16 %v906
    %v1216 = vunpack.c.l.b16 %v907
    %v1217 = vunpack.c.l.b16 %v908
    %v1218 = vunpack.c.l.b16 %v909
    %v1219 = vunpack.c.l.b16 %v910
    %v1220 = vunpack.c.l.b16 %v911
    %v1221 = vunpack.c.l.b16 %v912
    %v1222 = vunpack.c.l.b16 %v913
    %v1223 = vunpack.c.l.b16 %v914
    %v1224 = vunpack.c.l.b16 %v915
    %v1225 = vunpack.c.l.b16 %v916
    %v1226 = vunpack.c.l.b16 %v917
    %v1227 = vunpack.c.l.b16 %v918
    %v1228 = vunpack.c.l.b16 %v919
    %v1229 = vunpack.c.l.b16 %v920
    %v1230 = vunpack.c.l.b16 %v921
    %v1231 = vunpack.c.l.b16 %v922
    %v1232 = vunpack.c.l.b16 %v923
    %v1233 = vunpack.c.l.b16 %v924
    %v1234 = vunpack.c.l.b16 %v925
    %v1235 = vunpack.c.l.b16 %v926
    %v1236 = vunpack.c.l.b16 %v927
    %v1237 = vunpack.c.l.b16 %v928
    %v1238 = vunpack.c.l.b16 %v929
    %v1239 = vunpack.c.l.b16 %v930
    %v1240 = vunpack.c.l.b16 %v931
    %v1241 = vunpack.c.l.b16 %v932
    %v1242 = vunpack.c.l.b16 %v933
    %v1243 = vunpack.c.l.b16 %v934
    %v1244 = vunpack.c.l.b16 %v935
    %v1245 = vunpack.c.l.b16 %v936
    %v1246 = vunpack.c.l.b16 %v937
    %v1247 = vunpack.c.l.b16 %v938
    %v1248 = vunpack.c.l.b16 %v939
    %v1249 = vunpack.c.l.b16 %v940
    %v1250 = vunpack.c.l.b16 %v941
    %v1251 = vunpack.c.l.b16 %v942
    %v1252 = vunpack.c.l.b16 %v943
    %v1253 = vunpack.c.l.b16 %v944
    %v1254 = vunpack.c.l.b16 %v945
    %v1255 = vunpack.c.l.b16 %v946
    %v1256 = vunpack.c.l.b16 %v947
    %v1257 = vunpack.c.l.b16 %v948
    %v1258 = vunpack.c.l.b16 %v949
    %v1259 = vunpack.c.l.b16 %v950
    %v1260 = vpack.c.b16 %v1129, %v1128
    %v1261 = vpack.c.b16 %v1131, %v1130
    %v1262 = vpack.c.b16 %v1133, %v1132
    %v1263 = vpack.c.b16 %v1135, %v1134
    %v1264 = vpack.c.b16 %v1137, %v1136
    %v1265 = vpack.c.b16 %v1139, %v1138
    %v1266 = vpack.c.b16 %v1141, %v1140
    %v1267 = vpack.c.b16 %v1143, %v1142
    %v1268 = vpack.c.b16 %v1145, %v1144
    %v1269 = vpack.c.b16 %v1147, %v1146
    %v1270 = vpack.c.b16 %v1149, %v1148
    %v1271 = vpack.c.b16 %v1151, %v1150
    %v1272 = vpack.c.b16 %v1153, %v1152
    %v1273 = vpack.c.b16 %v1155, %v1154
    %v1274 = vpack.c.b16 %v1157, %v1156
    %v1275 = vpack.c.b16 %v1159, %v1158
    %v1276 = vpack.c.b16 %v1161, %v1160
    %v1277 = vpack.c.b16 %v1163, %v1162
    %v1278 = vpack.c.b16 %v1165, %v1164
    %v1279 = vpack.c.b16 %v1167, %v1166
    %v1280 = vpack.c.b16 %v1169, %v1168
    %v1281 = vpack.c.b16 %v1171, %v1170
    %v1282 = vpack.c.b16 %v1173, %v1172
    %v1283 = vpack.c.b16 %v1175, %v1174
    %v1284 = vpack.c.b16 %v1177, %v1176
    %v1285 = vpack.c.b16 %v1179, %v1178
    %v1286 = vpack.c.b16 %v1181, %v1180
    %v1287 = vpack.c.b16 %v1183, %v1182
    %v1288 = vpack.c.b16 %v1185, %v1184
    %v1289 = vpack.c.b16 %v1187, %v1186
    %v1290 = vpack.c.b16 %v1189, %v1188
    %v1291 = vpack.c.b16 %v1191, %v1190
    %v1292 = vpack.c.b16 %v1193, %v1192
    %v1293 = vpack.c.b16 %v1195, %v1194
    %v1294 = vpack.c.b16 %v1197, %v1196
    %v1295 = vpack.c.b16 %v1199, %v1198
    %v1296 = vpack.c.b16 %v1201, %v1200
    %v1297 = vpack.c.b16 %v1203, %v1202
    %v1298 = vpack.c.b16 %v1205, %v1204
    %v1299 = vpack.c.b16 %v1207, %v1206
    %v1300 = vpack.c.b16 %v1209, %v1208
    %v1301 = vpack.c.b16 %v1211, %v1210
    %v1302 = vpack.c.b16 %v1213, %v1212
    %v1303 = vpack.c.b16 %v1215, %v1214
    %v1304 = vpack.c.b16 %v1217, %v1216
    %v1305 = vpack.c.b16 %v1219, %v1218
    %v1306 = vpack.c.b16 %v1221, %v1220
    %v1307 = vpack.c.b16 %v1223, %v1222
    %v1308 = vpack.c.b16 %v1225, %v1224
    %v1309 = vpack.c.b16 %v1227, %v1226
    %v1310 = vpack.c.b16 %v1229, %v1228
    %v1311 = vpack.c.b16 %v1231, %v1230
    %v1312 = vpack.c.b16 %v1233, %v1232
    %v1313 = vpack.c.b16 %v1235, %v1234
    %v1314 = vpack.c.b16 %v1237, %v1236
    %v1315 = vpack.c.b16 %v1239, %v1238
    %v1316 = vpack.c.b16 %v1241, %v1240
    %v1317 = vpack.c.b16 %v1243, %v1242
    %v1318 = vpack.c.b16 %v1245, %v1244
    %v1319 = vpack.c.b16 %v1247, %v1246
    %v1320 = vpack.c.b16 %v1249, %v1248
    %v1321 = vpack.c.b16 %v1251, %v1250
    %v1322 = vpack.c.b16 %v1253, %v1252
    %v1323 = vpack.c.b16 %v1255, %v1254
    %v1324 = vpack.c.b16 %v1257, %v1256
    %v1325 = vpack.c.b16 %v1259, %v1258
    %vm1392 = vcmask 261120
    %v1394 = vsel %vm1392, %v987, 0
    %1396 = vmatpush.bf16.msra.mxu0 %v1267
    %1397 = vmatpush.bf16.msra.mxu0 %v1266
    %1398 = vmatpush.bf16.msra.mxu0 %v1265
    %1399 = vmatpush.bf16.msra.mxu0 %v1264
    %1400 = vmatpush.bf16.msra.mxu0 %v1263
    %1401 = vmatpush.bf16.msra.mxu0 %v1262
    %1402 = vmatpush.bf16.msra.mxu0 %v1261
    %1403 = vmatpush.bf16.msra.mxu0 %v1260
    %1404 = vmatmul.bf16.gmra.mxu0 %v979
    %v1405 = vpop.f32.mrf.mxu0
    %v1406 = vadd.f32 0.0, %v1405
    %v1407 = vpop.f32.mrf.mxu0
    %v1408 = vadd.f32 0.0, %v1407
    %1409 = vdwg.mxu0
    %1410 = vmatpush.bf16.msra.mxu0 %v1275
    %1411 = vmatpush.bf16.msra.mxu0 %v1274
    %1412 = vmatpush.bf16.msra.mxu0 %v1273
    %1413 = vmatpush.bf16.msra.mxu0 %v1272
    %1414 = vmatpush.bf16.msra.mxu0 %v1271
    %1415 = vmatpush.bf16.msra.mxu0 %v1270
    %1416 = vmatpush.bf16.msra.mxu0 %v1269
    %1417 = vmatpush.bf16.msra.mxu0 %v1268
    %1418 = vmatmul.bf16.gmra.mxu0 %v980
    %v1419 = vpop.f32.mrf.mxu0
    %v1420 = vadd.f32 %v1406, %v1419
    %v1421 = vpop.f32.mrf.mxu0
    %v1422 = vadd.f32 %v1408, %v1421
    %1423 = vdwg.mxu0
    %1424 = vmatpush.bf16.msra.mxu0 %v1283
    %1425 = vmatpush.bf16.msra.mxu0 %v1282
    %1426 = vmatpush.bf16.msra.mxu0 %v1281
    %1427 = vmatpush.bf16.msra.mxu0 %v1280
    %1428 = vmatpush.bf16.msra.mxu0 %v1279
    %1429 = vmatpush.bf16.msra.mxu0 %v1278
    %1430 = vmatpush.bf16.msra.mxu0 %v1277
    %1431 = vmatpush.bf16.msra.mxu0 %v1276
    %1432 = vmatmul.bf16.gmra.mxu0 %v981
    %v1433 = vpop.f32.mrf.mxu0
    %v1434 = vadd.f32 %v1420, %v1433
    %v1435 = vpop.f32.mrf.mxu0
    %v1436 = vadd.f32 %v1422, %v1435
    %1437 = vdwg.mxu0
    %1438 = vmatpush.bf16.msra.mxu0 %v1291
    %1439 = vmatpush.bf16.msra.mxu0 %v1290
    %1440 = vmatpush.bf16.msra.mxu0 %v1289
    %1441 = vmatpush.bf16.msra.mxu0 %v1288
    %1442 = vmatpush.bf16.msra.mxu0 %v1287
    %1443 = vmatpush.bf16.msra.mxu0 %v1286
    %1444 = vmatpush.bf16.msra.mxu0 %v1285
    %1445 = vmatpush.bf16.msra.mxu0 %v1284
    %1446 = vmatmul.bf16.gmra.mxu0 %v982
    %v1447 = vpop.f32.mrf.mxu0
    %v1448 = vadd.f32 %v1434, %v1447
    %v1449 = vpop.f32.mrf.mxu0
    %v1450 = vadd.f32 %v1436, %v1449
    %1451 = vdwg.mxu0
    %1452 = vmatpush.bf16.msra.mxu0 %v1299
    %1453 = vmatpush.bf16.msra.mxu0 %v1298
    %1454 = vmatpush.bf16.msra.mxu0 %v1297
    %1455 = vmatpush.bf16.msra.mxu0 %v1296
    %1456 = vmatpush.bf16.msra.mxu0 %v1295
    %1457 = vmatpush.bf16.msra.mxu0 %v1294
    %1458 = vmatpush.bf16.msra.mxu0 %v1293
    %1459 = vmatpush.bf16.msra.mxu0 %v1292
    %1460 = vmatmul.bf16.gmra.mxu0 %v983
    %v1461 = vpop.f32.mrf.mxu0
    %v1462 = vadd.f32 %v1448, %v1461
    %v1463 = vpop.f32.mrf.mxu0
    %v1464 = vadd.f32 %v1450, %v1463
    %1465 = vdwg.mxu0
    %1466 = vmatpush.bf16.msra.mxu0 %v1307
    %1467 = vmatpush.bf16.msra.mxu0 %v1306
    %1468 = vmatpush.bf16.msra.mxu0 %v1305
    %1469 = vmatpush.bf16.msra.mxu0 %v1304
    %1470 = vmatpush.bf16.msra.mxu0 %v1303
    %1471 = vmatpush.bf16.msra.mxu0 %v1302
    %1472 = vmatpush.bf16.msra.mxu0 %v1301
    %1473 = vmatpush.bf16.msra.mxu0 %v1300
    %1474 = vmatmul.bf16.gmra.mxu0 %v984
    %v1475 = vpop.f32.mrf.mxu0
    %v1476 = vadd.f32 %v1462, %v1475
    %v1477 = vpop.f32.mrf.mxu0
    %v1478 = vadd.f32 %v1464, %v1477
    %1479 = vdwg.mxu0
    %1480 = vmatpush.bf16.msra.mxu0 %v1315
    %1481 = vmatpush.bf16.msra.mxu0 %v1314
    %1482 = vmatpush.bf16.msra.mxu0 %v1313
    %1483 = vmatpush.bf16.msra.mxu0 %v1312
    %1484 = vmatpush.bf16.msra.mxu0 %v1311
    %1485 = vmatpush.bf16.msra.mxu0 %v1310
    %1486 = vmatpush.bf16.msra.mxu0 %v1309
    %1487 = vmatpush.bf16.msra.mxu0 %v1308
    %1488 = vmatmul.bf16.gmra.mxu0 %v985
    %v1489 = vpop.f32.mrf.mxu0
    %v1490 = vadd.f32 %v1476, %v1489
    %v1491 = vpop.f32.mrf.mxu0
    %v1492 = vadd.f32 %v1478, %v1491
    %1493 = vdwg.mxu0
    %1494 = vmatpush.bf16.msra.mxu0 %v1323
    %1495 = vmatpush.bf16.msra.mxu0 %v1322
    %1496 = vmatpush.bf16.msra.mxu0 %v1321
    %1497 = vmatpush.bf16.msra.mxu0 %v1320
    %1498 = vmatpush.bf16.msra.mxu0 %v1319
    %1499 = vmatpush.bf16.msra.mxu0 %v1318
    %1500 = vmatpush.bf16.msra.mxu0 %v1317
    %1501 = vmatpush.bf16.msra.mxu0 %v1316
    %1502 = vmatmul.bf16.gmra.mxu0 %v986
    %v1503 = vpop.f32.mrf.mxu0
    %v1504 = vadd.f32 %v1490, %v1503
    %v1505 = vpop.f32.mrf.mxu0
    %v1506 = vadd.f32 %v1492, %v1505
    %1507 = vdwg.mxu0
    %1508 = vmatpush.bf16.msra.mxu0 0
    %1509 = vmatpush.bf16.msra.mxu0 0
    %1510 = vmatpush.bf16.msra.mxu0 0
    %1511 = vmatpush.bf16.msra.mxu0 0
    %1512 = vmatpush.bf16.msra.mxu0 0
    %1513 = vmatpush.bf16.msra.mxu0 0
    %1514 = vmatpush.bf16.msra.mxu0 %v1325
    %1515 = vmatpush.bf16.msra.mxu0 %v1324
    %1516 = vmatmul.bf16.gmra.mxu0 %v1394
    %v1517 = vpop.f32.mrf.mxu0
    %v1518 = vadd.f32 %v1504, %v1517
    %v1519 = vpop.f32.mrf.mxu0
    %v1520 = vadd.f32 %v1506, %v1519
    %1521 = vdwg.mxu0
    %v1522 = vpack.c.bf16 %v1520, %v1518
    %v1523 = vld [vmem:[%s9] sm:$0xf]
    %v1524 = vld [vmem:[%s9 + $0x4] sm:$0xf]
    %v1525 = vld [vmem:[%s9 + $0x8] sm:$0xf]
    %v1526 = vld [vmem:[%s9 + $0xc] sm:$0xf]
    %v1531 = vunpack.c.l.b16 %v1523
    %v1532 = vunpack.c.l.b16 %v1524
    %v1533 = vunpack.c.l.b16 %v1525
    %v1534 = vunpack.c.l.b16 %v1526
    %v1535 = vpack.c.b16 %v1532, %v1531
    %v1536 = vpack.c.b16 %v1534, %v1533
    %v1539 = vsel %vm1392, %v138, 0
    %1541 = vmatpush.bf16.msra.mxu0 0
    %1542 = vmatpush.bf16.msra.mxu0 0
    %1543 = vmatpush.bf16.msra.mxu0 0
    %1544 = vmatpush.bf16.msra.mxu0 0
    %1545 = vmatpush.bf16.msra.mxu0 0
    %1546 = vmatpush.bf16.msra.mxu0 0
    %1547 = vmatpush.bf16.msra.mxu0 %v1536
    %1548 = vmatpush.bf16.msra.mxu0 %v1535
    %1549 = vmatmul.bf16.gmra.mxu0 %v1539
    %v1550 = vpop.f32.mrf.mxu0
    %v1551 = vadd.f32 0.0, %v1550
    %v1552 = vpop.f32.mrf.mxu0
    %1553 = vdwg.mxu0
    %v1555 = vsel %vm62, %v137, 0
    %1557 = vmatpush.bf16.msra.mxu0 0
    %1558 = vmatpush.bf16.msra.mxu0 0
    %1559 = vmatpush.bf16.msra.mxu0 0
    %1560 = vmatpush.bf16.msra.mxu0 0
    %1561 = vmatpush.bf16.msra.mxu0 0
    %1562 = vmatpush.bf16.msra.mxu0 0
    %1563 = vmatpush.bf16.msra.mxu0 0
    %1564 = vmatpush.bf16.msra.mxu0 %v1522
    %1565 = vmatmul.bf16.gmra.mxu0 %v1555
    %v1566 = vpop.f32.mrf.mxu0
    %v1567 = vadd.f32 %v1551, %v1566
    %v1568 = vpop.f32.mrf.mxu0
    %1569 = vdwg.mxu0
    %v1570 = vld [vmem:[%s10] sm:$0x1]
    %v1572 = vperm.slane %v1570, 0
    %v1574 = vadd.f32 %v1567, %v1572
    %v1575 = vmax.f32 %v1574, 0.0
    %v1576 = vpack.c.bf16 %v1575, %v1575
    %v1577 = vld [vmem:[%s11] sm:$0xf]
    %v1578 = vld [vmem:[%s11 + $0x4] sm:$0xf]
    %v1579 = vld [vmem:[%s11 + $0x8] sm:$0xf]
    %v1580 = vld [vmem:[%s11 + $0xc] sm:$0xf]
    %v1581 = vld [vmem:[%s12] sm:$0xf]
    %v1582 = vld [vmem:[%s12 + $0x4] sm:$0xf]
    %v1583 = vld [vmem:[%s12 + $0x8] sm:$0xf]
    %v1584 = vld [vmem:[%s12 + $0xc] sm:$0xf]
    %v1589 = vunpack.c.l.b16 %v1581
    %v1590 = vunpack.c.l.b16 %v1582
    %v1591 = vunpack.c.l.b16 %v1583
    %v1592 = vunpack.c.l.b16 %v1584
    %v1593 = vpack.c.b16 %v1590, %v1589
    %v1594 = vpack.c.b16 %v1592, %v1591
    %1597 = vmatpush.bf16.msra.mxu0 0
    %1598 = vmatpush.bf16.msra.mxu0 0
    %1599 = vmatpush.bf16.msra.mxu0 0
    %1600 = vmatpush.bf16.msra.mxu0 0
    %1601 = vmatpush.bf16.msra.mxu0 0
    %1602 = vmatpush.bf16.msra.mxu0 0
    %1603 = vmatpush.bf16.msra.mxu0 %v1594
    %1604 = vmatpush.bf16.msra.mxu0 %v1593
    %1605 = vmatmul.bf16.gmra.mxu0 %v1539
    %v1606 = vpop.f32.mrf.mxu0
    %v1607 = vadd.f32 0.0, %v1606
    %v1608 = vpop.f32.mrf.mxu0
    %1609 = vdwg.mxu0
    %v1614 = vunpack.c.l.b16 %v1577
    %v1615 = vunpack.c.l.b16 %v1578
    %v1616 = vunpack.c.l.b16 %v1579
    %v1617 = vunpack.c.l.b16 %v1580
    %v1618 = vpack.c.b16 %v1615, %v1614
    %v1619 = vpack.c.b16 %v1617, %v1616
    %v1623 = vsel %vm1392, %v1576, 0
    %1625 = vmatpush.bf16.msra.mxu0 0
    %1626 = vmatpush.bf16.msra.mxu0 0
    %1627 = vmatpush.bf16.msra.mxu0 0
    %1628 = vmatpush.bf16.msra.mxu0 0
    %1629 = vmatpush.bf16.msra.mxu0 0
    %1630 = vmatpush.bf16.msra.mxu0 0
    %1631 = vmatpush.bf16.msra.mxu0 %v1619
    %1632 = vmatpush.bf16.msra.mxu0 %v1618
    %1633 = vmatmul.bf16.gmra.mxu0 %v1623
    %v1634 = vpop.f32.mrf.mxu0
    %v1635 = vadd.f32 %v1607, %v1634
    %v1636 = vpop.f32.mrf.mxu0
    %1637 = vdwg.mxu0
    %v1638 = vld [vmem:[%s13] sm:$0x1]
    %v1640 = vperm.slane %v1638, 0
    %v1642 = vadd.f32 %v1635, %v1640
    %v1643 = vxor.u32 %v1642, 2147483648
    %v1644 = vmul.f32 %v1643, 1.442695
    %v1645 = vpow.pop %v1644
    %v1646 = vadd.f32 %v1645, 1.0
    %v1647 = vrcp.pop %v1646
    %v1648 = vmul.f32 %v1646, %v1647
    %v1649 = vsub.f32 1.0, %v1648
    %v1650 = vmul.f32 %v1647, %v1649
    %v1651 = vadd.f32 %v1647, %v1650
    %vm1652 = vweird.f32 %v1646
    %vm1653 = vweird.f32 %v1647
    %vm1654 = vmor %vm1652, %vm1653
    %v1655 = vsel %vm1654, %v1647, %v1651
    %v1656 = vand.u32 2147483647, %v1646
    %vm1657 = vcmp.eq.f32.partialorder %v1656, 8.507059e+37
    %v1658 = vand.u32 %v1646, 2147483648
    %v1659 = vor.u32 1.1754944e-38, %v1658
    %v1660 = vsel %vm1657, %v1659, %v1655
    %v1661 = vmul.f32 1.0, %v1660
    %1663 = vrot.lane.b32.xlu0 %v1642, 32
    %v1664 = vpop.permute.xlu0 %1663
    %v1666 = vmul.f32 %v1661, %v1664
    %1668 = vrot.lane.b32.xlu0 %v1666, 64
    %v1669 = vpop.permute.xlu0 %1668
    %v1671 = vadd.f32 %v1642, %v1669
    %v1672 = vtanh.pop %v1671
    %v1673 = vsub.f32 1.0, %v1661
    %1675 = vrot.lane.b32.xlu0 %v1672, 96
    %v1676 = vpop.permute.xlu0 %1675
    %v1678 = vmul.f32 %v1673, %v1676
    %1680 = vrot.lane.b32.xlu0 %v79, 32
    %v1681 = vpop.permute.xlu0 %1680
    %v1683 = vmul.f32 %v1661, %v1681
    %v1684 = vadd.f32 %v1678, %v1683
    %v1685 = vpack.c.bf16 %v1684, %v1684
    %1687 = vrot.lane.b32.xlu0 %v1685, 96
    %v1688 = vpop.permute.xlu0 %1687
    %v1690 = vsel %vm96, %v1688, 0
    %1692 = vmatpush.bf16.msra.mxu0 0
    %1693 = vmatpush.bf16.msra.mxu0 0
    %1694 = vmatpush.bf16.msra.mxu0 0
    %1695 = vmatpush.bf16.msra.mxu0 0
    %1696 = vmatpush.bf16.msra.mxu0 0
    %1697 = vmatpush.bf16.msra.mxu0 0
    %1698 = vmatpush.bf16.msra.mxu0 0
    %1699 = vmatpush.bf16.msra.mxu0 %v1690
    %1700 = vmatmul.bf16.gmra.mxu0 %v140
    %v1701 = vpop.f32.mrf.mxu0
    %v1702 = vadd.f32 0.0, %v1701
    %v1703 = vpop.f32.mrf.mxu0
    %v1704 = vadd.f32 0.0, %v1703
    %1705 = vdwg.mxu0
    %v1706 = vmul.f32 %v162, %v1702
    %v1707 = vmul.f32 %v167, %v1704
    %v1708 = vpack.c.bf16 %v1706, %v1706
    %v1709 = vpack.c.bf16 %v1707, %v1707
    %1710 = vst.msk [vmem:[#allocation2] sm:$0xf] %vm173, %v1708
    %1711 = vst.msk [vmem:[#allocation2 + $0x24] sm:$0xf] %vm173, %v1709
    %v1712 = vmul.f32 %v178, %v1702
    %v1713 = vmul.f32 %v182, %v1704
    %v1714 = vpack.c.bf16 %v1712, %v1712
    %v1715 = vpack.c.bf16 %v1713, %v1713
    %1718 = vrot.lane.b32.xlu0 %v1714, 32
    %v1719 = vpop.permute.xlu0 %1718
    %1720 = vrot.lane.b32.xlu0 %v1715, 32
    %v1721 = vpop.permute.xlu0 %1720
    %1724 = vst.msk [vmem:[#allocation2] sm:$0xf] %vm196, %v1719
    %1725 = vst.msk [vmem:[#allocation2 + $0x24] sm:$0xf] %vm196, %v1721
    %v1726 = vmul.f32 %v201, %v1702
    %v1727 = vmul.f32 %v205, %v1704
    %v1728 = vpack.c.bf16 %v1726, %v1726
    %v1729 = vpack.c.bf16 %v1727, %v1727
    %1732 = vrot.lane.b32.xlu0 %v1728, 64
    %v1733 = vpop.permute.xlu0 %1732
    %1734 = vrot.lane.b32.xlu0 %v1729, 64
    %v1735 = vpop.permute.xlu0 %1734
    %1738 = vst.msk [vmem:[#allocation2] sm:$0xf] %vm219, %v1733
    %1739 = vst.msk [vmem:[#allocation2 + $0x24] sm:$0xf] %vm219, %v1735
    %v1740 = vmul.f32 %v224, %v1702
    %v1741 = vmul.f32 %v228, %v1704
    %v1742 = vpack.c.bf16 %v1740, %v1740
    %v1743 = vpack.c.bf16 %v1741, %v1741
    %1746 = vrot.lane.b32.xlu0 %v1742, 96
    %v1747 = vpop.permute.xlu0 %1746
    %1748 = vrot.lane.b32.xlu0 %v1743, 96
    %v1749 = vpop.permute.xlu0 %1748
    %1752 = vst.msk [vmem:[#allocation2] sm:$0xf] %vm242, %v1747
    %1753 = vst.msk [vmem:[#allocation2 + $0x24] sm:$0xf] %vm242, %v1749
    %v1754 = vmul.f32 %v247, %v1702
    %v1755 = vmul.f32 %v251, %v1704
    %v1756 = vpack.c.bf16 %v1754, %v1754
    %v1757 = vpack.c.bf16 %v1755, %v1755
    %1758 = vst.msk [vmem:[#allocation2 + $0x4] sm:$0xf] %vm173, %v1756
    %1759 = vst.msk [vmem:[#allocation2 + $0x28] sm:$0xf] %vm173, %v1757
    %v1760 = vmul.f32 %v261, %v1702
    %v1761 = vmul.f32 %v265, %v1704
    %v1762 = vpack.c.bf16 %v1760, %v1760
    %v1763 = vpack.c.bf16 %v1761, %v1761
    %1766 = vrot.lane.b32.xlu0 %v1762, 32
    %v1767 = vpop.permute.xlu0 %1766
    %1768 = vrot.lane.b32.xlu0 %v1763, 32
    %v1769 = vpop.permute.xlu0 %1768
    %1772 = vst.msk [vmem:[#allocation2 + $0x4] sm:$0xf] %vm196, %v1767
    %1773 = vst.msk [vmem:[#allocation2 + $0x28] sm:$0xf] %vm196, %v1769
    %v1774 = vmul.f32 %v283, %v1702
    %v1775 = vmul.f32 %v287, %v1704
    %v1776 = vpack.c.bf16 %v1774, %v1774
    %v1777 = vpack.c.bf16 %v1775, %v1775
    %1780 = vrot.lane.b32.xlu0 %v1776, 64
    %v1781 = vpop.permute.xlu0 %1780
    %1782 = vrot.lane.b32.xlu0 %v1777, 64
    %v1783 = vpop.permute.xlu0 %1782
    %1786 = vst.msk [vmem:[#allocation2 + $0x4] sm:$0xf] %vm219, %v1781
    %1787 = vst.msk [vmem:[#allocation2 + $0x28] sm:$0xf] %vm219, %v1783
    %v1788 = vmul.f32 %v305, %v1702
    %v1789 = vmul.f32 %v309, %v1704
    %v1790 = vpack.c.bf16 %v1788, %v1788
    %v1791 = vpack.c.bf16 %v1789, %v1789
    %1794 = vrot.lane.b32.xlu0 %v1790, 96
    %v1795 = vpop.permute.xlu0 %1794
    %1796 = vrot.lane.b32.xlu0 %v1791, 96
    %v1797 = vpop.permute.xlu0 %1796
    %1800 = vst.msk [vmem:[#allocation2 + $0x4] sm:$0xf] %vm242, %v1795
    %1801 = vst.msk [vmem:[#allocation2 + $0x28] sm:$0xf] %vm242, %v1797
    %v1802 = vmul.f32 %v327, %v1702
    %v1803 = vmul.f32 %v331, %v1704
    %v1804 = vpack.c.bf16 %v1802, %v1802
    %v1805 = vpack.c.bf16 %v1803, %v1803
    %1806 = vst.msk [vmem:[#allocation2 + $0x8] sm:$0xf] %vm173, %v1804
    %1807 = vst.msk [vmem:[#allocation2 + $0x2c] sm:$0xf] %vm173, %v1805
    %v1808 = vmul.f32 %v341, %v1702
    %v1809 = vmul.f32 %v345, %v1704
    %v1810 = vpack.c.bf16 %v1808, %v1808
    %v1811 = vpack.c.bf16 %v1809, %v1809
    %1814 = vrot.lane.b32.xlu0 %v1810, 32
    %v1815 = vpop.permute.xlu0 %1814
    %1816 = vrot.lane.b32.xlu0 %v1811, 32
    %v1817 = vpop.permute.xlu0 %1816
    %1820 = vst.msk [vmem:[#allocation2 + $0x8] sm:$0xf] %vm196, %v1815
    %1821 = vst.msk [vmem:[#allocation2 + $0x2c] sm:$0xf] %vm196, %v1817
    %v1822 = vmul.f32 %v363, %v1702
    %v1823 = vmul.f32 %v367, %v1704
    %v1824 = vpack.c.bf16 %v1822, %v1822
    %v1825 = vpack.c.bf16 %v1823, %v1823
    %1828 = vrot.lane.b32.xlu0 %v1824, 64
    %v1829 = vpop.permute.xlu0 %1828
    %1830 = vrot.lane.b32.xlu0 %v1825, 64
    %v1831 = vpop.permute.xlu0 %1830
    %1834 = vst.msk [vmem:[#allocation2 + $0x8] sm:$0xf] %vm219, %v1829
    %1835 = vst.msk [vmem:[#allocation2 + $0x2c] sm:$0xf] %vm219, %v1831
    %v1836 = vmul.f32 %v385, %v1702
    %v1837 = vmul.f32 %v389, %v1704
    %v1838 = vpack.c.bf16 %v1836, %v1836
    %v1839 = vpack.c.bf16 %v1837, %v1837
    %1842 = vrot.lane.b32.xlu0 %v1838, 96
    %v1843 = vpop.permute.xlu0 %1842
    %1844 = vrot.lane.b32.xlu0 %v1839, 96
    %v1845 = vpop.permute.xlu0 %1844
    %1848 = vst.msk [vmem:[#allocation2 + $0x8] sm:$0xf] %vm242, %v1843
    %1849 = vst.msk [vmem:[#allocation2 + $0x2c] sm:$0xf] %vm242, %v1845
    %v1850 = vmul.f32 %v407, %v1702
    %v1851 = vmul.f32 %v411, %v1704
    %v1852 = vpack.c.bf16 %v1850, %v1850
    %v1853 = vpack.c.bf16 %v1851, %v1851
    %1854 = vst.msk [vmem:[#allocation2 + $0xc] sm:$0xf] %vm173, %v1852
    %1855 = vst.msk [vmem:[#allocation2 + $0x30] sm:$0xf] %vm173, %v1853
    %v1856 = vmul.f32 %v421, %v1702
    %v1857 = vmul.f32 %v425, %v1704
    %v1858 = vpack.c.bf16 %v1856, %v1856
    %v1859 = vpack.c.bf16 %v1857, %v1857
    %1862 = vrot.lane.b32.xlu0 %v1858, 32
    %v1863 = vpop.permute.xlu0 %1862
    %1864 = vrot.lane.b32.xlu0 %v1859, 32
    %v1865 = vpop.permute.xlu0 %1864
    %1868 = vst.msk [vmem:[#allocation2 + $0xc] sm:$0xf] %vm196, %v1863
    %1869 = vst.msk [vmem:[#allocation2 + $0x30] sm:$0xf] %vm196, %v1865
    %v1870 = vmul.f32 %v443, %v1702
    %v1871 = vmul.f32 %v447, %v1704
    %v1872 = vpack.c.bf16 %v1870, %v1870
    %v1873 = vpack.c.bf16 %v1871, %v1871
    %1876 = vrot.lane.b32.xlu0 %v1872, 64
    %v1877 = vpop.permute.xlu0 %1876
    %1878 = vrot.lane.b32.xlu0 %v1873, 64
    %v1879 = vpop.permute.xlu0 %1878
    %1882 = vst.msk [vmem:[#allocation2 + $0xc] sm:$0xf] %vm219, %v1877
    %1883 = vst.msk [vmem:[#allocation2 + $0x30] sm:$0xf] %vm219, %v1879
    %v1884 = vmul.f32 %v465, %v1702
    %v1885 = vmul.f32 %v469, %v1704
    %v1886 = vpack.c.bf16 %v1884, %v1884
    %v1887 = vpack.c.bf16 %v1885, %v1885
    %1890 = vrot.lane.b32.xlu0 %v1886, 96
    %v1891 = vpop.permute.xlu0 %1890
    %1892 = vrot.lane.b32.xlu0 %v1887, 96
    %v1893 = vpop.permute.xlu0 %1892
    %1896 = vst.msk [vmem:[#allocation2 + $0xc] sm:$0xf] %vm242, %v1891
    %1897 = vst.msk [vmem:[#allocation2 + $0x30] sm:$0xf] %vm242, %v1893
    %v1898 = vmul.f32 %v487, %v1702
    %v1899 = vmul.f32 %v491, %v1704
    %v1900 = vpack.c.bf16 %v1898, %v1898
    %v1901 = vpack.c.bf16 %v1899, %v1899
    %1902 = vst.msk [vmem:[#allocation2 + $0x10] sm:$0xf] %vm173, %v1900
    %1903 = vst.msk [vmem:[#allocation2 + $0x34] sm:$0xf] %vm173, %v1901
    %v1904 = vmul.f32 %v501, %v1702
    %v1905 = vmul.f32 %v505, %v1704
    %v1906 = vpack.c.bf16 %v1904, %v1904
    %v1907 = vpack.c.bf16 %v1905, %v1905
    %1910 = vrot.lane.b32.xlu0 %v1906, 32
    %v1911 = vpop.permute.xlu0 %1910
    %1912 = vrot.lane.b32.xlu0 %v1907, 32
    %v1913 = vpop.permute.xlu0 %1912
    %1916 = vst.msk [vmem:[#allocation2 + $0x10] sm:$0xf] %vm196, %v1911
    %1917 = vst.msk [vmem:[#allocation2 + $0x34] sm:$0xf] %vm196, %v1913
    %v1918 = vmul.f32 %v523, %v1702
    %v1919 = vmul.f32 %v527, %v1704
    %v1920 = vpack.c.bf16 %v1918, %v1918
    %v1921 = vpack.c.bf16 %v1919, %v1919
    %1924 = vrot.lane.b32.xlu0 %v1920, 64
    %v1925 = vpop.permute.xlu0 %1924
    %1926 = vrot.lane.b32.xlu0 %v1921, 64
    %v1927 = vpop.permute.xlu0 %1926
    %1930 = vst.msk [vmem:[#allocation2 + $0x10] sm:$0xf] %vm219, %v1925
    %1931 = vst.msk [vmem:[#allocation2 + $0x34] sm:$0xf] %vm219, %v1927
    %v1932 = vmul.f32 %v545, %v1702
    %v1933 = vmul.f32 %v549, %v1704
    %v1934 = vpack.c.bf16 %v1932, %v1932
    %v1935 = vpack.c.bf16 %v1933, %v1933
    %1938 = vrot.lane.b32.xlu0 %v1934, 96
    %v1939 = vpop.permute.xlu0 %1938
    %1940 = vrot.lane.b32.xlu0 %v1935, 96
    %v1941 = vpop.permute.xlu0 %1940
    %1944 = vst.msk [vmem:[#allocation2 + $0x10] sm:$0xf] %vm242, %v1939
    %1945 = vst.msk [vmem:[#allocation2 + $0x34] sm:$0xf] %vm242, %v1941
    %v1946 = vmul.f32 %v567, %v1702
    %v1947 = vmul.f32 %v571, %v1704
    %v1948 = vpack.c.bf16 %v1946, %v1946
    %v1949 = vpack.c.bf16 %v1947, %v1947
    %1950 = vst.msk [vmem:[#allocation2 + $0x14] sm:$0xf] %vm173, %v1948
    %1951 = vst.msk [vmem:[#allocation2 + $0x38] sm:$0xf] %vm173, %v1949
    %v1952 = vmul.f32 %v581, %v1702
    %v1953 = vmul.f32 %v585, %v1704
    %v1954 = vpack.c.bf16 %v1952, %v1952
    %v1955 = vpack.c.bf16 %v1953, %v1953
    %1958 = vrot.lane.b32.xlu0 %v1954, 32
    %v1959 = vpop.permute.xlu0 %1958
    %1960 = vrot.lane.b32.xlu0 %v1955, 32
    %v1961 = vpop.permute.xlu0 %1960
    %1964 = vst.msk [vmem:[#allocation2 + $0x14] sm:$0xf] %vm196, %v1959
    %1965 = vst.msk [vmem:[#allocation2 + $0x38] sm:$0xf] %vm196, %v1961
    %v1966 = vmul.f32 %v603, %v1702
    %v1967 = vmul.f32 %v607, %v1704
    %v1968 = vpack.c.bf16 %v1966, %v1966
    %v1969 = vpack.c.bf16 %v1967, %v1967
    %1972 = vrot.lane.b32.xlu0 %v1968, 64
    %v1973 = vpop.permute.xlu0 %1972
    %1974 = vrot.lane.b32.xlu0 %v1969, 64
    %v1975 = vpop.permute.xlu0 %1974
    %1978 = vst.msk [vmem:[#allocation2 + $0x14] sm:$0xf] %vm219, %v1973
    %1979 = vst.msk [vmem:[#allocation2 + $0x38] sm:$0xf] %vm219, %v1975
    %v1980 = vmul.f32 %v625, %v1702
    %v1981 = vmul.f32 %v629, %v1704
    %v1982 = vpack.c.bf16 %v1980, %v1980
    %v1983 = vpack.c.bf16 %v1981, %v1981
    %1986 = vrot.lane.b32.xlu0 %v1982, 96
    %v1987 = vpop.permute.xlu0 %1986
    %1988 = vrot.lane.b32.xlu0 %v1983, 96
    %v1989 = vpop.permute.xlu0 %1988
    %1992 = vst.msk [vmem:[#allocation2 + $0x14] sm:$0xf] %vm242, %v1987
    %1993 = vst.msk [vmem:[#allocation2 + $0x38] sm:$0xf] %vm242, %v1989
    %v1994 = vmul.f32 %v647, %v1702
    %v1995 = vmul.f32 %v651, %v1704
    %v1996 = vpack.c.bf16 %v1994, %v1994
    %v1997 = vpack.c.bf16 %v1995, %v1995
    %1998 = vst.msk [vmem:[#allocation2 + $0x18] sm:$0xf] %vm173, %v1996
    %1999 = vst.msk [vmem:[#allocation2 + $0x3c] sm:$0xf] %vm173, %v1997
    %v2000 = vmul.f32 %v661, %v1702
    %v2001 = vmul.f32 %v665, %v1704
    %v2002 = vpack.c.bf16 %v2000, %v2000
    %v2003 = vpack.c.bf16 %v2001, %v2001
    %2006 = vrot.lane.b32.xlu0 %v2002, 32
    %v2007 = vpop.permute.xlu0 %2006
    %2008 = vrot.lane.b32.xlu0 %v2003, 32
    %v2009 = vpop.permute.xlu0 %2008
    %2012 = vst.msk [vmem:[#allocation2 + $0x18] sm:$0xf] %vm196, %v2007
    %2013 = vst.msk [vmem:[#allocation2 + $0x3c] sm:$0xf] %vm196, %v2009
    %v2014 = vmul.f32 %v683, %v1702
    %v2015 = vmul.f32 %v687, %v1704
    %v2016 = vpack.c.bf16 %v2014, %v2014
    %v2017 = vpack.c.bf16 %v2015, %v2015
    %2020 = vrot.lane.b32.xlu0 %v2016, 64
    %v2021 = vpop.permute.xlu0 %2020
    %2022 = vrot.lane.b32.xlu0 %v2017, 64
    %v2023 = vpop.permute.xlu0 %2022
    %2026 = vst.msk [vmem:[#allocation2 + $0x18] sm:$0xf] %vm219, %v2021
    %2027 = vst.msk [vmem:[#allocation2 + $0x3c] sm:$0xf] %vm219, %v2023
    %v2028 = vmul.f32 %v705, %v1702
    %v2029 = vmul.f32 %v709, %v1704
    %v2030 = vpack.c.bf16 %v2028, %v2028
    %v2031 = vpack.c.bf16 %v2029, %v2029
    %2034 = vrot.lane.b32.xlu0 %v2030, 96
    %v2035 = vpop.permute.xlu0 %2034
    %2036 = vrot.lane.b32.xlu0 %v2031, 96
    %v2037 = vpop.permute.xlu0 %2036
    %2040 = vst.msk [vmem:[#allocation2 + $0x18] sm:$0xf] %vm242, %v2035
    %2041 = vst.msk [vmem:[#allocation2 + $0x3c] sm:$0xf] %vm242, %v2037
    %v2042 = vmul.f32 %v727, %v1702
    %v2043 = vmul.f32 %v731, %v1704
    %v2044 = vpack.c.bf16 %v2042, %v2042
    %v2045 = vpack.c.bf16 %v2043, %v2043
    %2046 = vst.msk [vmem:[#allocation2 + $0x1c] sm:$0xf] %vm173, %v2044
    %2047 = vst.msk [vmem:[#allocation2 + $0x40] sm:$0xf] %vm173, %v2045
    %v2048 = vmul.f32 %v741, %v1702
    %v2049 = vmul.f32 %v745, %v1704
    %v2050 = vpack.c.bf16 %v2048, %v2048
    %v2051 = vpack.c.bf16 %v2049, %v2049
    %2054 = vrot.lane.b32.xlu0 %v2050, 32
    %v2055 = vpop.permute.xlu0 %2054
    %2056 = vrot.lane.b32.xlu0 %v2051, 32
    %v2057 = vpop.permute.xlu0 %2056
    %2060 = vst.msk [vmem:[#allocation2 + $0x1c] sm:$0xf] %vm196, %v2055
    %2061 = vst.msk [vmem:[#allocation2 + $0x40] sm:$0xf] %vm196, %v2057
    %v2062 = vmul.f32 %v763, %v1702
    %v2063 = vmul.f32 %v767, %v1704
    %v2064 = vpack.c.bf16 %v2062, %v2062
    %v2065 = vpack.c.bf16 %v2063, %v2063
    %2068 = vrot.lane.b32.xlu0 %v2064, 64
    %v2069 = vpop.permute.xlu0 %2068
    %2070 = vrot.lane.b32.xlu0 %v2065, 64
    %v2071 = vpop.permute.xlu0 %2070
    %2074 = vst.msk [vmem:[#allocation2 + $0x1c] sm:$0xf] %vm219, %v2069
    %2075 = vst.msk [vmem:[#allocation2 + $0x40] sm:$0xf] %vm219, %v2071
    %v2076 = vmul.f32 %v785, %v1702
    %v2077 = vmul.f32 %v789, %v1704
    %v2078 = vpack.c.bf16 %v2076, %v2076
    %v2079 = vpack.c.bf16 %v2077, %v2077
    %2082 = vrot.lane.b32.xlu0 %v2078, 96
    %v2083 = vpop.permute.xlu0 %2082
    %2084 = vrot.lane.b32.xlu0 %v2079, 96
    %v2085 = vpop.permute.xlu0 %2084
    %2088 = vst.msk [vmem:[#allocation2 + $0x1c] sm:$0xf] %vm242, %v2083
    %2089 = vst.msk [vmem:[#allocation2 + $0x40] sm:$0xf] %vm242, %v2085
    %v2090 = vpack.c.bf16 %v1702, %v1702
    %v2091 = vpack.c.bf16 %v1704, %v1704
    %2092 = vst.msk [vmem:[#allocation2 + $0x20] sm:$0xf] %vm173, %v2090
    %2093 = vst.msk [vmem:[#allocation2 + $0x44] sm:$0xf] %vm173, %v2091
    %v2094 = vld [vmem:[#allocation2] sm:$0xff]
    %v2095 = vld [vmem:[#allocation2 + $0x8] sm:$0xff]
    %v2096 = vld [vmem:[#allocation2 + $0x10] sm:$0xff]
    %v2097 = vld [vmem:[#allocation2 + $0x18] sm:$0xff]
    %v2098 = vld [vmem:[#allocation2 + $0x20] sm:$0xf]
    %v2099 = vld [vmem:[#allocation2 + $0x24] sm:$0xff]
    %v2100 = vld [vmem:[#allocation2 + $0x2c] sm:$0xff]
    %v2101 = vld [vmem:[#allocation2 + $0x34] sm:$0xff]
    %v2102 = vld [vmem:[#allocation2 + $0x3c] sm:$0xff]
    %v2103 = vld [vmem:[#allocation2 + $0x44] sm:$0xf]
    %v2104 = vld [vmem:[%s8] sm:$0xf]
    %v2105 = vld [vmem:[%s8 + $0x4] sm:$0xf]
    %v2106 = vld [vmem:[%s8 + $0x8] sm:$0xf]
    %v2107 = vld [vmem:[%s8 + $0xc] sm:$0xf]
    %v2108 = vld [vmem:[%s8 + $0x10] sm:$0xf]
    %v2109 = vld [vmem:[%s8 + $0x14] sm:$0xf]
    %v2110 = vld [vmem:[%s8 + $0x18] sm:$0xf]
    %v2111 = vld [vmem:[%s8 + $0x1c] sm:$0xf]
    %v2112 = vld [vmem:[%s8 + $0x20] sm:$0xf]
    %v2113 = vld [vmem:[%s8 + $0x24] sm:$0xf]
    %v2114 = vld [vmem:[%s8 + $0x28] sm:$0xf]
    %v2115 = vld [vmem:[%s8 + $0x2c] sm:$0xf]
    %v2116 = vld [vmem:[%s8 + $0x30] sm:$0xf]
    %v2117 = vld [vmem:[%s8 + $0x34] sm:$0xf]
    %v2118 = vld [vmem:[%s8 + $0x38] sm:$0xf]
    %v2119 = vld [vmem:[%s8 + $0x3c] sm:$0xf]
    %v2120 = vld [vmem:[%s8 + $0x40] sm:$0xf]
    %v2121 = vld [vmem:[%s8 + $0x44] sm:$0xf]
    %v2122 = vld [vmem:[%s8 + $0x48] sm:$0xf]
    %v2123 = vld [vmem:[%s8 + $0x4c] sm:$0xf]
    %v2124 = vld [vmem:[%s8 + $0x50] sm:$0xf]
    %v2125 = vld [vmem:[%s8 + $0x54] sm:$0xf]
    %v2126 = vld [vmem:[%s8 + $0x58] sm:$0xf]
    %v2127 = vld [vmem:[%s8 + $0x5c] sm:$0xf]
    %v2128 = vld [vmem:[%s8 + $0x60] sm:$0xf]
    %v2129 = vld [vmem:[%s8 + $0x64] sm:$0xf]
    %v2130 = vld [vmem:[%s8 + $0x68] sm:$0xf]
    %v2131 = vld [vmem:[%s8 + $0x6c] sm:$0xf]
    %v2132 = vld [vmem:[%s8 + $0x70] sm:$0xf]
    %v2133 = vld [vmem:[%s8 + $0x74] sm:$0xf]
    %v2134 = vld [vmem:[%s8 + $0x78] sm:$0xf]
    %v2135 = vld [vmem:[%s8 + $0x7c] sm:$0xf]
    %v2136 = vld [vmem:[%s8 + $0x80] sm:$0xf]
    %v2137 = vld [vmem:[%s8 + $0x84] sm:$0xf]
    %v2138 = vld [vmem:[%s8 + $0x88] sm:$0xf]
    %v2139 = vld [vmem:[%s8 + $0x8c] sm:$0xf]
    %v2140 = vld [vmem:[%s8 + $0x90] sm:$0xf]
    %v2141 = vld [vmem:[%s8 + $0x94] sm:$0xf]
    %v2142 = vld [vmem:[%s8 + $0x98] sm:$0xf]
    %v2143 = vld [vmem:[%s8 + $0x9c] sm:$0xf]
    %v2144 = vld [vmem:[%s8 + $0xa0] sm:$0xf]
    %v2145 = vld [vmem:[%s8 + $0xa4] sm:$0xf]
    %v2146 = vld [vmem:[%s8 + $0xa8] sm:$0xf]
    %v2147 = vld [vmem:[%s8 + $0xac] sm:$0xf]
    %v2148 = vld [vmem:[%s8 + $0xb0] sm:$0xf]
    %v2149 = vld [vmem:[%s8 + $0xb4] sm:$0xf]
    %v2150 = vld [vmem:[%s8 + $0xb8] sm:$0xf]
    %v2151 = vld [vmem:[%s8 + $0xbc] sm:$0xf]
    %v2152 = vld [vmem:[%s8 + $0xc0] sm:$0xf]
    %v2153 = vld [vmem:[%s8 + $0xc4] sm:$0xf]
    %v2154 = vld [vmem:[%s8 + $0xc8] sm:$0xf]
    %v2155 = vld [vmem:[%s8 + $0xcc] sm:$0xf]
    %v2156 = vld [vmem:[%s8 + $0xd0] sm:$0xf]
    %v2157 = vld [vmem:[%s8 + $0xd4] sm:$0xf]
    %v2158 = vld [vmem:[%s8 + $0xd8] sm:$0xf]
    %v2159 = vld [vmem:[%s8 + $0xdc] sm:$0xf]
    %v2160 = vld [vmem:[%s8 + $0xe0] sm:$0xf]
    %v2161 = vld [vmem:[%s8 + $0xe4] sm:$0xf]
    %v2162 = vld [vmem:[%s8 + $0xe8] sm:$0xf]
    %v2163 = vld [vmem:[%s8 + $0xec] sm:$0xf]
    %v2164 = vld [vmem:[%s8 + $0xf0] sm:$0xf]
    %v2165 = vld [vmem:[%s8 + $0xf4] sm:$0xf]
    %v2166 = vld [vmem:[%s8 + $0xf8] sm:$0xf]
    %v2167 = vld [vmem:[%s8 + $0xfc] sm:$0xf]
    %v2168 = vld [vmem:[%s8 + $0x100] sm:$0xf]
    %v2169 = vld [vmem:[%s8 + $0x104] sm:$0xf]
    %v2170 = vld [vmem:[%s8 + $0x108] sm:$0xf]
    %v2171 = vld [vmem:[%s8 + $0x10c] sm:$0xf]
    %v2172 = vld [vmem:[%s8 + $0x110] sm:$0xf]
    %v2173 = vld [vmem:[%s8 + $0x114] sm:$0xf]
    %v2174 = vld [vmem:[%s8 + $0x118] sm:$0xf]
    %v2175 = vld [vmem:[%s8 + $0x11c] sm:$0xf]
    %v2176 = vld [vmem:[%s8 + $0x120] sm:$0xf]
    %v2177 = vld [vmem:[%s8 + $0x124] sm:$0xf]
    %v2178 = vld [vmem:[%s8 + $0x128] sm:$0xf]
    %v2179 = vld [vmem:[%s8 + $0x12c] sm:$0xf]
    %v2180 = vld [vmem:[%s8 + $0x130] sm:$0xf]
    %v2181 = vld [vmem:[%s8 + $0x134] sm:$0xf]
    %v2182 = vld [vmem:[%s8 + $0x138] sm:$0xf]
    %v2183 = vld [vmem:[%s8 + $0x13c] sm:$0xf]
    %v2184 = vld [vmem:[%s8 + $0x140] sm:$0xf]
    %v2185 = vld [vmem:[%s8 + $0x144] sm:$0xf]
    %v2186 = vld [vmem:[%s8 + $0x148] sm:$0xf]
    %v2187 = vld [vmem:[%s8 + $0x14c] sm:$0xf]
    %v2188 = vld [vmem:[%s8 + $0x150] sm:$0xf]
    %v2189 = vld [vmem:[%s8 + $0x154] sm:$0xf]
    %v2190 = vld [vmem:[%s8 + $0x158] sm:$0xf]
    %v2191 = vld [vmem:[%s8 + $0x15c] sm:$0xf]
    %v2192 = vld [vmem:[%s8 + $0x160] sm:$0xf]
    %v2193 = vld [vmem:[%s8 + $0x164] sm:$0xf]
    %v2194 = vld [vmem:[%s8 + $0x168] sm:$0xf]
    %v2195 = vld [vmem:[%s8 + $0x16c] sm:$0xf]
    %v2196 = vld [vmem:[%s8 + $0x170] sm:$0xf]
    %v2197 = vld [vmem:[%s8 + $0x174] sm:$0xf]
    %v2198 = vld [vmem:[%s8 + $0x178] sm:$0xf]
    %v2199 = vld [vmem:[%s8 + $0x17c] sm:$0xf]
    %v2200 = vld [vmem:[%s8 + $0x180] sm:$0xf]
    %v2201 = vld [vmem:[%s8 + $0x184] sm:$0xf]
    %v2202 = vld [vmem:[%s8 + $0x188] sm:$0xf]
    %v2203 = vld [vmem:[%s8 + $0x18c] sm:$0xf]
    %v2204 = vld [vmem:[%s8 + $0x190] sm:$0xf]
    %v2205 = vld [vmem:[%s8 + $0x194] sm:$0xf]
    %v2206 = vld [vmem:[%s8 + $0x198] sm:$0xf]
    %v2207 = vld [vmem:[%s8 + $0x19c] sm:$0xf]
    %v2208 = vld [vmem:[%s8 + $0x1a0] sm:$0xf]
    %v2209 = vld [vmem:[%s8 + $0x1a4] sm:$0xf]
    %v2210 = vld [vmem:[%s8 + $0x1a8] sm:$0xf]
    %v2211 = vld [vmem:[%s8 + $0x1ac] sm:$0xf]
    %v2212 = vld [vmem:[%s8 + $0x1b0] sm:$0xf]
    %v2213 = vld [vmem:[%s8 + $0x1b4] sm:$0xf]
    %v2214 = vld [vmem:[%s8 + $0x1b8] sm:$0xf]
    %v2215 = vld [vmem:[%s8 + $0x1bc] sm:$0xf]
    %v2216 = vld [vmem:[%s8 + $0x1c0] sm:$0xf]
    %v2217 = vld [vmem:[%s8 + $0x1c4] sm:$0xf]
    %v2218 = vld [vmem:[%s8 + $0x1c8] sm:$0xf]
    %v2219 = vld [vmem:[%s8 + $0x1cc] sm:$0xf]
    %v2220 = vld [vmem:[%s8 + $0x1d0] sm:$0xf]
    %v2221 = vld [vmem:[%s8 + $0x1d4] sm:$0xf]
    %v2222 = vld [vmem:[%s8 + $0x1d8] sm:$0xf]
    %v2223 = vld [vmem:[%s8 + $0x1dc] sm:$0xf]
    %v2224 = vld [vmem:[%s8 + $0x1e0] sm:$0xf]
    %v2225 = vld [vmem:[%s8 + $0x1e4] sm:$0xf]
    %v2226 = vld [vmem:[%s8 + $0x1e8] sm:$0xf]
    %v2227 = vld [vmem:[%s8 + $0x1ec] sm:$0xf]
    %v2228 = vld [vmem:[%s8 + $0x1f0] sm:$0xf]
    %v2229 = vld [vmem:[%s8 + $0x1f4] sm:$0xf]
    %v2230 = vld [vmem:[%s8 + $0x1f8] sm:$0xf]
    %v2231 = vld [vmem:[%s8 + $0x1fc] sm:$0xf]
    %v2232 = vld [vmem:[%s8 + $0x200] sm:$0xf]
    %v2233 = vld [vmem:[%s8 + $0x204] sm:$0xf]
    %v2234 = vld [vmem:[%s8 + $0x208] sm:$0xf]
    %v2235 = vld [vmem:[%s8 + $0x20c] sm:$0xf]
    %v2246 = vunpack.c.l.b16 %v2094
    %v2247 = vunpack.c.h.b16 %v2094
    %v2248 = vunpack.c.l.b16 %v2095
    %v2249 = vunpack.c.h.b16 %v2095
    %v2250 = vunpack.c.l.b16 %v2096
    %v2251 = vunpack.c.h.b16 %v2096
    %v2252 = vunpack.c.l.b16 %v2097
    %v2253 = vunpack.c.h.b16 %v2097
    %v2254 = vunpack.c.l.b16 %v2098
    %v2255 = vunpack.c.l.b16 %v2099
    %v2256 = vunpack.c.h.b16 %v2099
    %v2257 = vunpack.c.l.b16 %v2100
    %v2258 = vunpack.c.h.b16 %v2100
    %v2259 = vunpack.c.l.b16 %v2101
    %v2260 = vunpack.c.h.b16 %v2101
    %v2261 = vunpack.c.l.b16 %v2102
    %v2262 = vunpack.c.h.b16 %v2102
    %v2263 = vunpack.c.l.b16 %v2103
    %v2264 = vpack.c.b16 %v2255, %v2246
    %v2265 = vpack.c.b16 %v2256, %v2247
    %v2266 = vpack.c.b16 %v2257, %v2248
    %v2267 = vpack.c.b16 %v2258, %v2249
    %v2268 = vpack.c.b16 %v2259, %v2250
    %v2269 = vpack.c.b16 %v2260, %v2251
    %v2270 = vpack.c.b16 %v2261, %v2252
    %v2271 = vpack.c.b16 %v2262, %v2253
    %v2272 = vpack.c.b16 %v2263, %v2254
    %v2413 = vunpack.c.l.b16 %v2104
    %v2414 = vunpack.c.l.b16 %v2105
    %v2415 = vunpack.c.l.b16 %v2106
    %v2416 = vunpack.c.l.b16 %v2107
    %v2417 = vunpack.c.l.b16 %v2108
    %v2418 = vunpack.c.l.b16 %v2109
    %v2419 = vunpack.c.l.b16 %v2110
    %v2420 = vunpack.c.l.b16 %v2111
    %v2421 = vunpack.c.l.b16 %v2112
    %v2422 = vunpack.c.l.b16 %v2113
    %v2423 = vunpack.c.l.b16 %v2114
    %v2424 = vunpack.c.l.b16 %v2115
    %v2425 = vunpack.c.l.b16 %v2116
    %v2426 = vunpack.c.l.b16 %v2117
    %v2427 = vunpack.c.l.b16 %v2118
    %v2428 = vunpack.c.l.b16 %v2119
    %v2429 = vunpack.c.l.b16 %v2120
    %v2430 = vunpack.c.l.b16 %v2121
    %v2431 = vunpack.c.l.b16 %v2122
    %v2432 = vunpack.c.l.b16 %v2123
    %v2433 = vunpack.c.l.b16 %v2124
    %v2434 = vunpack.c.l.b16 %v2125
    %v2435 = vunpack.c.l.b16 %v2126
    %v2436 = vunpack.c.l.b16 %v2127
    %v2437 = vunpack.c.l.b16 %v2128
    %v2438 = vunpack.c.l.b16 %v2129
    %v2439 = vunpack.c.l.b16 %v2130
    %v2440 = vunpack.c.l.b16 %v2131
    %v2441 = vunpack.c.l.b16 %v2132
    %v2442 = vunpack.c.l.b16 %v2133
    %v2443 = vunpack.c.l.b16 %v2134
    %v2444 = vunpack.c.l.b16 %v2135
    %v2445 = vunpack.c.l.b16 %v2136
    %v2446 = vunpack.c.l.b16 %v2137
    %v2447 = vunpack.c.l.b16 %v2138
    %v2448 = vunpack.c.l.b16 %v2139
    %v2449 = vunpack.c.l.b16 %v2140
    %v2450 = vunpack.c.l.b16 %v2141
    %v2451 = vunpack.c.l.b16 %v2142
    %v2452 = vunpack.c.l.b16 %v2143
    %v2453 = vunpack.c.l.b16 %v2144
    %v2454 = vunpack.c.l.b16 %v2145
    %v2455 = vunpack.c.l.b16 %v2146
    %v2456 = vunpack.c.l.b16 %v2147
    %v2457 = vunpack.c.l.b16 %v2148
    %v2458 = vunpack.c.l.b16 %v2149
    %v2459 = vunpack.c.l.b16 %v2150
    %v2460 = vunpack.c.l.b16 %v2151
    %v2461 = vunpack.c.l.b16 %v2152
    %v2462 = vunpack.c.l.b16 %v2153
    %v2463 = vunpack.c.l.b16 %v2154
    %v2464 = vunpack.c.l.b16 %v2155
    %v2465 = vunpack.c.l.b16 %v2156
    %v2466 = vunpack.c.l.b16 %v2157
    %v2467 = vunpack.c.l.b16 %v2158
    %v2468 = vunpack.c.l.b16 %v2159
    %v2469 = vunpack.c.l.b16 %v2160
    %v2470 = vunpack.c.l.b16 %v2161
    %v2471 = vunpack.c.l.b16 %v2162
    %v2472 = vunpack.c.l.b16 %v2163
    %v2473 = vunpack.c.l.b16 %v2164
    %v2474 = vunpack.c.l.b16 %v2165
    %v2475 = vunpack.c.l.b16 %v2166
    %v2476 = vunpack.c.l.b16 %v2167
    %v2477 = vunpack.c.l.b16 %v2168
    %v2478 = vunpack.c.l.b16 %v2169
    %v2479 = vunpack.c.l.b16 %v2170
    %v2480 = vunpack.c.l.b16 %v2171
    %v2481 = vunpack.c.l.b16 %v2172
    %v2482 = vunpack.c.l.b16 %v2173
    %v2483 = vunpack.c.l.b16 %v2174
    %v2484 = vunpack.c.l.b16 %v2175
    %v2485 = vunpack.c.l.b16 %v2176
    %v2486 = vunpack.c.l.b16 %v2177
    %v2487 = vunpack.c.l.b16 %v2178
    %v2488 = vunpack.c.l.b16 %v2179
    %v2489 = vunpack.c.l.b16 %v2180
    %v2490 = vunpack.c.l.b16 %v2181
    %v2491 = vunpack.c.l.b16 %v2182
    %v2492 = vunpack.c.l.b16 %v2183
    %v2493 = vunpack.c.l.b16 %v2184
    %v2494 = vunpack.c.l.b16 %v2185
    %v2495 = vunpack.c.l.b16 %v2186
    %v2496 = vunpack.c.l.b16 %v2187
    %v2497 = vunpack.c.l.b16 %v2188
    %v2498 = vunpack.c.l.b16 %v2189
    %v2499 = vunpack.c.l.b16 %v2190
    %v2500 = vunpack.c.l.b16 %v2191
    %v2501 = vunpack.c.l.b16 %v2192
    %v2502 = vunpack.c.l.b16 %v2193
    %v2503 = vunpack.c.l.b16 %v2194
    %v2504 = vunpack.c.l.b16 %v2195
    %v2505 = vunpack.c.l.b16 %v2196
    %v2506 = vunpack.c.l.b16 %v2197
    %v2507 = vunpack.c.l.b16 %v2198
    %v2508 = vunpack.c.l.b16 %v2199
    %v2509 = vunpack.c.l.b16 %v2200
    %v2510 = vunpack.c.l.b16 %v2201
    %v2511 = vunpack.c.l.b16 %v2202
    %v2512 = vunpack.c.l.b16 %v2203
    %v2513 = vunpack.c.l.b16 %v2204
    %v2514 = vunpack.c.l.b16 %v2205
    %v2515 = vunpack.c.l.b16 %v2206
    %v2516 = vunpack.c.l.b16 %v2207
    %v2517 = vunpack.c.l.b16 %v2208
    %v2518 = vunpack.c.l.b16 %v2209
    %v2519 = vunpack.c.l.b16 %v2210
    %v2520 = vunpack.c.l.b16 %v2211
    %v2521 = vunpack.c.l.b16 %v2212
    %v2522 = vunpack.c.l.b16 %v2213
    %v2523 = vunpack.c.l.b16 %v2214
    %v2524 = vunpack.c.l.b16 %v2215
    %v2525 = vunpack.c.l.b16 %v2216
    %v2526 = vunpack.c.l.b16 %v2217
    %v2527 = vunpack.c.l.b16 %v2218
    %v2528 = vunpack.c.l.b16 %v2219
    %v2529 = vunpack.c.l.b16 %v2220
    %v2530 = vunpack.c.l.b16 %v2221
    %v2531 = vunpack.c.l.b16 %v2222
    %v2532 = vunpack.c.l.b16 %v2223
    %v2533 = vunpack.c.l.b16 %v2224
    %v2534 = vunpack.c.l.b16 %v2225
    %v2535 = vunpack.c.l.b16 %v2226
    %v2536 = vunpack.c.l.b16 %v2227
    %v2537 = vunpack.c.l.b16 %v2228
    %v2538 = vunpack.c.l.b16 %v2229
    %v2539 = vunpack.c.l.b16 %v2230
    %v2540 = vunpack.c.l.b16 %v2231
    %v2541 = vunpack.c.l.b16 %v2232
    %v2542 = vunpack.c.l.b16 %v2233
    %v2543 = vunpack.c.l.b16 %v2234
    %v2544 = vunpack.c.l.b16 %v2235
    %v2545 = vpack.c.b16 %v2414, %v2413
    %v2546 = vpack.c.b16 %v2416, %v2415
    %v2547 = vpack.c.b16 %v2418, %v2417
    %v2548 = vpack.c.b16 %v2420, %v2419
    %v2549 = vpack.c.b16 %v2422, %v2421
    %v2550 = vpack.c.b16 %v2424, %v2423
    %v2551 = vpack.c.b16 %v2426, %v2425
    %v2552 = vpack.c.b16 %v2428, %v2427
    %v2553 = vpack.c.b16 %v2430, %v2429
    %v2554 = vpack.c.b16 %v2432, %v2431
    %v2555 = vpack.c.b16 %v2434, %v2433
    %v2556 = vpack.c.b16 %v2436, %v2435
    %v2557 = vpack.c.b16 %v2438, %v2437
    %v2558 = vpack.c.b16 %v2440, %v2439
    %v2559 = vpack.c.b16 %v2442, %v2441
    %v2560 = vpack.c.b16 %v2444, %v2443
    %v2561 = vpack.c.b16 %v2446, %v2445
    %v2562 = vpack.c.b16 %v2448, %v2447
    %v2563 = vpack.c.b16 %v2450, %v2449
    %v2564 = vpack.c.b16 %v2452, %v2451
    %v2565 = vpack.c.b16 %v2454, %v2453
    %v2566 = vpack.c.b16 %v2456, %v2455
    %v2567 = vpack.c.b16 %v2458, %v2457
    %v2568 = vpack.c.b16 %v2460, %v2459
    %v2569 = vpack.c.b16 %v2462, %v2461
    %v2570 = vpack.c.b16 %v2464, %v2463
    %v2571 = vpack.c.b16 %v2466, %v2465
    %v2572 = vpack.c.b16 %v2468, %v2467
    %v2573 = vpack.c.b16 %v2470, %v2469
    %v2574 = vpack.c.b16 %v2472, %v2471
    %v2575 = vpack.c.b16 %v2474, %v2473
    %v2576 = vpack.c.b16 %v2476, %v2475
    %v2577 = vpack.c.b16 %v2478, %v2477
    %v2578 = vpack.c.b16 %v2480, %v2479
    %v2579 = vpack.c.b16 %v2482, %v2481
    %v2580 = vpack.c.b16 %v2484, %v2483
    %v2581 = vpack.c.b16 %v2486, %v2485
    %v2582 = vpack.c.b16 %v2488, %v2487
    %v2583 = vpack.c.b16 %v2490, %v2489
    %v2584 = vpack.c.b16 %v2492, %v2491
    %v2585 = vpack.c.b16 %v2494, %v2493
    %v2586 = vpack.c.b16 %v2496, %v2495
    %v2587 = vpack.c.b16 %v2498, %v2497
    %v2588 = vpack.c.b16 %v2500, %v2499
    %v2589 = vpack.c.b16 %v2502, %v2501
    %v2590 = vpack.c.b16 %v2504, %v2503
    %v2591 = vpack.c.b16 %v2506, %v2505
    %v2592 = vpack.c.b16 %v2508, %v2507
    %v2593 = vpack.c.b16 %v2510, %v2509
    %v2594 = vpack.c.b16 %v2512, %v2511
    %v2595 = vpack.c.b16 %v2514, %v2513
    %v2596 = vpack.c.b16 %v2516, %v2515
    %v2597 = vpack.c.b16 %v2518, %v2517
    %v2598 = vpack.c.b16 %v2520, %v2519
    %v2599 = vpack.c.b16 %v2522, %v2521
    %v2600 = vpack.c.b16 %v2524, %v2523
    %v2601 = vpack.c.b16 %v2526, %v2525
    %v2602 = vpack.c.b16 %v2528, %v2527
    %v2603 = vpack.c.b16 %v2530, %v2529
    %v2604 = vpack.c.b16 %v2532, %v2531
    %v2605 = vpack.c.b16 %v2534, %v2533
    %v2606 = vpack.c.b16 %v2536, %v2535
    %v2607 = vpack.c.b16 %v2538, %v2537
    %v2608 = vpack.c.b16 %v2540, %v2539
    %v2609 = vpack.c.b16 %v2542, %v2541
    %v2610 = vpack.c.b16 %v2544, %v2543
    %v2678 = vsel %vm1392, %v2272, 0
    %2680 = vmatpush.bf16.msra.mxu0 %v2552
    %2681 = vmatpush.bf16.msra.mxu0 %v2551
    %2682 = vmatpush.bf16.msra.mxu0 %v2550
    %2683 = vmatpush.bf16.msra.mxu0 %v2549
    %2684 = vmatpush.bf16.msra.mxu0 %v2548
    %2685 = vmatpush.bf16.msra.mxu0 %v2547
    %2686 = vmatpush.bf16.msra.mxu0 %v2546
    %2687 = vmatpush.bf16.msra.mxu0 %v2545
    %2688 = vmatmul.bf16.gmra.mxu0 %v2264
    %v2689 = vpop.f32.mrf.mxu0
    %v2690 = vadd.f32 0.0, %v2689
    %v2691 = vpop.f32.mrf.mxu0
    %v2692 = vadd.f32 0.0, %v2691
    %2693 = vdwg.mxu0
    %2694 = vmatpush.bf16.msra.mxu0 %v2560
    %2695 = vmatpush.bf16.msra.mxu0 %v2559
    %2696 = vmatpush.bf16.msra.mxu0 %v2558
    %2697 = vmatpush.bf16.msra.mxu0 %v2557
    %2698 = vmatpush.bf16.msra.mxu0 %v2556
    %2699 = vmatpush.bf16.msra.mxu0 %v2555
    %2700 = vmatpush.bf16.msra.mxu0 %v2554
    %2701 = vmatpush.bf16.msra.mxu0 %v2553
    %2702 = vmatmul.bf16.gmra.mxu0 %v2265
    %v2703 = vpop.f32.mrf.mxu0
    %v2704 = vadd.f32 %v2690, %v2703
    %v2705 = vpop.f32.mrf.mxu0
    %v2706 = vadd.f32 %v2692, %v2705
    %2707 = vdwg.mxu0
    %2708 = vmatpush.bf16.msra.mxu0 %v2568
    %2709 = vmatpush.bf16.msra.mxu0 %v2567
    %2710 = vmatpush.bf16.msra.mxu0 %v2566
    %2711 = vmatpush.bf16.msra.mxu0 %v2565
    %2712 = vmatpush.bf16.msra.mxu0 %v2564
    %2713 = vmatpush.bf16.msra.mxu0 %v2563
    %2714 = vmatpush.bf16.msra.mxu0 %v2562
    %2715 = vmatpush.bf16.msra.mxu0 %v2561
    %2716 = vmatmul.bf16.gmra.mxu0 %v2266
    %v2717 = vpop.f32.mrf.mxu0
    %v2718 = vadd.f32 %v2704, %v2717
    %v2719 = vpop.f32.mrf.mxu0
    %v2720 = vadd.f32 %v2706, %v2719
    %2721 = vdwg.mxu0
    %2722 = vmatpush.bf16.msra.mxu0 %v2576
    %2723 = vmatpush.bf16.msra.mxu0 %v2575
    %2724 = vmatpush.bf16.msra.mxu0 %v2574
    %2725 = vmatpush.bf16.msra.mxu0 %v2573
    %2726 = vmatpush.bf16.msra.mxu0 %v2572
    %2727 = vmatpush.bf16.msra.mxu0 %v2571
    %2728 = vmatpush.bf16.msra.mxu0 %v2570
    %2729 = vmatpush.bf16.msra.mxu0 %v2569
    %2730 = vmatmul.bf16.gmra.mxu0 %v2267
    %v2731 = vpop.f32.mrf.mxu0
    %v2732 = vadd.f32 %v2718, %v2731
    %v2733 = vpop.f32.mrf.mxu0
    %v2734 = vadd.f32 %v2720, %v2733
    %2735 = vdwg.mxu0
    %2736 = vmatpush.bf16.msra.mxu0 %v2584
    %2737 = vmatpush.bf16.msra.mxu0 %v2583
    %2738 = vmatpush.bf16.msra.mxu0 %v2582
    %2739 = vmatpush.bf16.msra.mxu0 %v2581
    %2740 = vmatpush.bf16.msra.mxu0 %v2580
    %2741 = vmatpush.bf16.msra.mxu0 %v2579
    %2742 = vmatpush.bf16.msra.mxu0 %v2578
    %2743 = vmatpush.bf16.msra.mxu0 %v2577
    %2744 = vmatmul.bf16.gmra.mxu0 %v2268
    %v2745 = vpop.f32.mrf.mxu0
    %v2746 = vadd.f32 %v2732, %v2745
    %v2747 = vpop.f32.mrf.mxu0
    %v2748 = vadd.f32 %v2734, %v2747
    %2749 = vdwg.mxu0
    %2750 = vmatpush.bf16.msra.mxu0 %v2592
    %2751 = vmatpush.bf16.msra.mxu0 %v2591
    %2752 = vmatpush.bf16.msra.mxu0 %v2590
    %2753 = vmatpush.bf16.msra.mxu0 %v2589
    %2754 = vmatpush.bf16.msra.mxu0 %v2588
    %2755 = vmatpush.bf16.msra.mxu0 %v2587
    %2756 = vmatpush.bf16.msra.mxu0 %v2586
    %2757 = vmatpush.bf16.msra.mxu0 %v2585
    %2758 = vmatmul.bf16.gmra.mxu0 %v2269
    %v2759 = vpop.f32.mrf.mxu0
    %v2760 = vadd.f32 %v2746, %v2759
    %v2761 = vpop.f32.mrf.mxu0
    %v2762 = vadd.f32 %v2748, %v2761
    %2763 = vdwg.mxu0
    %2764 = vmatpush.bf16.msra.mxu0 %v2600
    %2765 = vmatpush.bf16.msra.mxu0 %v2599
    %2766 = vmatpush.bf16.msra.mxu0 %v2598
    %2767 = vmatpush.bf16.msra.mxu0 %v2597
    %2768 = vmatpush.bf16.msra.mxu0 %v2596
    %2769 = vmatpush.bf16.msra.mxu0 %v2595
    %2770 = vmatpush.bf16.msra.mxu0 %v2594
    %2771 = vmatpush.bf16.msra.mxu0 %v2593
    %2772 = vmatmul.bf16.gmra.mxu0 %v2270
    %v2773 = vpop.f32.mrf.mxu0
    %v2774 = vadd.f32 %v2760, %v2773
    %v2775 = vpop.f32.mrf.mxu0
    %v2776 = vadd.f32 %v2762, %v2775
    %2777 = vdwg.mxu0
    %2778 = vmatpush.bf16.msra.mxu0 %v2608
    %2779 = vmatpush.bf16.msra.mxu0 %v2607
    %2780 = vmatpush.bf16.msra.mxu0 %v2606
    %2781 = vmatpush.bf16.msra.mxu0 %v2605
    %2782 = vmatpush.bf16.msra.mxu0 %v2604
    %2783 = vmatpush.bf16.msra.mxu0 %v2603
    %2784 = vmatpush.bf16.msra.mxu0 %v2602
    %2785 = vmatpush.bf16.msra.mxu0 %v2601
    %2786 = vmatmul.bf16.gmra.mxu0 %v2271
    %v2787 = vpop.f32.mrf.mxu0
    %v2788 = vadd.f32 %v2774, %v2787
    %v2789 = vpop.f32.mrf.mxu0
    %v2790 = vadd.f32 %v2776, %v2789
    %2791 = vdwg.mxu0
    %2792 = vmatpush.bf16.msra.mxu0 0
    %2793 = vmatpush.bf16.msra.mxu0 0
    %2794 = vmatpush.bf16.msra.mxu0 0
    %2795 = vmatpush.bf16.msra.mxu0 0
    %2796 = vmatpush.bf16.msra.mxu0 0
    %2797 = vmatpush.bf16.msra.mxu0 0
    %2798 = vmatpush.bf16.msra.mxu0 %v2610
    %2799 = vmatpush.bf16.msra.mxu0 %v2609
    %2800 = vmatmul.bf16.gmra.mxu0 %v2678
    %v2801 = vpop.f32.mrf.mxu0
    %v2802 = vadd.f32 %v2788, %v2801
    %v2803 = vpop.f32.mrf.mxu0
    %v2804 = vadd.f32 %v2790, %v2803
    %2805 = vdwg.mxu0
    %v2806 = vpack.c.bf16 %v2804, %v2802
    %v2807 = vld [vmem:[%s9] sm:$0xf]
    %v2808 = vld [vmem:[%s9 + $0x4] sm:$0xf]
    %v2809 = vld [vmem:[%s9 + $0x8] sm:$0xf]
    %v2810 = vld [vmem:[%s9 + $0xc] sm:$0xf]
    %v2815 = vunpack.c.l.b16 %v2807
    %v2816 = vunpack.c.l.b16 %v2808
    %v2817 = vunpack.c.l.b16 %v2809
    %v2818 = vunpack.c.l.b16 %v2810
    %v2819 = vpack.c.b16 %v2816, %v2815
    %v2820 = vpack.c.b16 %v2818, %v2817
    %v2823 = vsel %vm1392, %v1688, 0
    %2825 = vmatpush.bf16.msra.mxu0 0
    %2826 = vmatpush.bf16.msra.mxu0 0
    %2827 = vmatpush.bf16.msra.mxu0 0
    %2828 = vmatpush.bf16.msra.mxu0 0
    %2829 = vmatpush.bf16.msra.mxu0 0
    %2830 = vmatpush.bf16.msra.mxu0 0
    %2831 = vmatpush.bf16.msra.mxu0 %v2820
    %2832 = vmatpush.bf16.msra.mxu0 %v2819
    %2833 = vmatmul.bf16.gmra.mxu0 %v2823
    %v2834 = vpop.f32.mrf.mxu0
    %v2835 = vadd.f32 0.0, %v2834
    %v2836 = vpop.f32.mrf.mxu0
    %2837 = vdwg.mxu0
    %2838 = vmatpush.bf16.msra.mxu0 0
    %2839 = vmatpush.bf16.msra.mxu0 0
    %2840 = vmatpush.bf16.msra.mxu0 0
    %2841 = vmatpush.bf16.msra.mxu0 0
    %2842 = vmatpush.bf16.msra.mxu0 0
    %2843 = vmatpush.bf16.msra.mxu0 0
    %2844 = vmatpush.bf16.msra.mxu0 0
    %2845 = vmatpush.bf16.msra.mxu0 %v2806
    %2846 = vmatmul.bf16.gmra.mxu0 %v1555
    %v2847 = vpop.f32.mrf.mxu0
    %v2848 = vadd.f32 %v2835, %v2847
    %v2849 = vpop.f32.mrf.mxu0
    %2850 = vdwg.mxu0
    %v2851 = vld [vmem:[%s10] sm:$0x1]
    %v2853 = vperm.slane %v2851, 0
    %v2855 = vadd.f32 %v2848, %v2853
    %v2856 = vmax.f32 %v2855, 0.0
    %v2857 = vpack.c.bf16 %v2856, %v2856
    %v2858 = vld [vmem:[%s11] sm:$0xf]
    %v2859 = vld [vmem:[%s11 + $0x4] sm:$0xf]
    %v2860 = vld [vmem:[%s11 + $0x8] sm:$0xf]
    %v2861 = vld [vmem:[%s11 + $0xc] sm:$0xf]
    %v2862 = vld [vmem:[%s12] sm:$0xf]
    %v2863 = vld [vmem:[%s12 + $0x4] sm:$0xf]
    %v2864 = vld [vmem:[%s12 + $0x8] sm:$0xf]
    %v2865 = vld [vmem:[%s12 + $0xc] sm:$0xf]
    %v2870 = vunpack.c.l.b16 %v2862
    %v2871 = vunpack.c.l.b16 %v2863
    %v2872 = vunpack.c.l.b16 %v2864
    %v2873 = vunpack.c.l.b16 %v2865
    %v2874 = vpack.c.b16 %v2871, %v2870
    %v2875 = vpack.c.b16 %v2873, %v2872
    %2878 = vmatpush.bf16.msra.mxu0 0
    %2879 = vmatpush.bf16.msra.mxu0 0
    %2880 = vmatpush.bf16.msra.mxu0 0
    %2881 = vmatpush.bf16.msra.mxu0 0
    %2882 = vmatpush.bf16.msra.mxu0 0
    %2883 = vmatpush.bf16.msra.mxu0 0
    %2884 = vmatpush.bf16.msra.mxu0 %v2875
    %2885 = vmatpush.bf16.msra.mxu0 %v2874
    %2886 = vmatmul.bf16.gmra.mxu0 %v2823
    %v2887 = vpop.f32.mrf.mxu0
    %v2888 = vadd.f32 0.0, %v2887
    %v2889 = vpop.f32.mrf.mxu0
    %2890 = vdwg.mxu0
    %v2895 = vunpack.c.l.b16 %v2858
    %v2896 = vunpack.c.l.b16 %v2859
    %v2897 = vunpack.c.l.b16 %v2860
    %v2898 = vunpack.c.l.b16 %v2861
    %v2899 = vpack.c.b16 %v2896, %v2895
    %v2900 = vpack.c.b16 %v2898, %v2897
    %v2904 = vsel %vm1392, %v2857, 0
    %2906 = vmatpush.bf16.msra.mxu0 0
    %2907 = vmatpush.bf16.msra.mxu0 0
    %2908 = vmatpush.bf16.msra.mxu0 0
    %2909 = vmatpush.bf16.msra.mxu0 0
    %2910 = vmatpush.bf16.msra.mxu0 0
    %2911 = vmatpush.bf16.msra.mxu0 0
    %2912 = vmatpush.bf16.msra.mxu0 %v2900
    %2913 = vmatpush.bf16.msra.mxu0 %v2899
    %2914 = vmatmul.bf16.gmra.mxu0 %v2904
    %v2915 = vpop.f32.mrf.mxu0
    %v2916 = vadd.f32 %v2888, %v2915
    %v2917 = vpop.f32.mrf.mxu0
    %2918 = vdwg.mxu0
    %v2919 = vld [vmem:[%s13] sm:$0x1]
    %v2921 = vperm.slane %v2919, 0
    %v2923 = vadd.f32 %v2916, %v2921
    %v2924 = vxor.u32 %v2923, 2147483648
    %v2925 = vmul.f32 %v2924, 1.442695
    %v2926 = vpow.pop %v2925
    %v2927 = vadd.f32 %v2926, 1.0
    %v2928 = vrcp.pop %v2927
    %v2929 = vmul.f32 %v2927, %v2928
    %v2930 = vsub.f32 1.0, %v2929
    %v2931 = vmul.f32 %v2928, %v2930
    %v2932 = vadd.f32 %v2928, %v2931
    %vm2933 = vweird.f32 %v2927
    %vm2934 = vweird.f32 %v2928
    %vm2935 = vmor %vm2933, %vm2934
    %v2936 = vsel %vm2935, %v2928, %v2932
    %v2937 = vand.u32 2147483647, %v2927
    %vm2938 = vcmp.eq.f32.partialorder %v2937, 8.507059e+37
    %v2939 = vand.u32 %v2927, 2147483648
    %v2940 = vor.u32 1.1754944e-38, %v2939
    %v2941 = vsel %vm2938, %v2940, %v2936
    %v2942 = vmul.f32 1.0, %v2941
    %2944 = vrot.lane.b32.xlu0 %v2923, 32
    %v2945 = vpop.permute.xlu0 %2944
    %v2947 = vmul.f32 %v2942, %v2945
    %2949 = vrot.lane.b32.xlu0 %v2947, 64
    %v2950 = vpop.permute.xlu0 %2949
    %v2952 = vadd.f32 %v2923, %v2950
    %v2953 = vtanh.pop %v2952
    %v2954 = vsub.f32 1.0, %v2942
    %2956 = vrot.lane.b32.xlu0 %v2953, 96
    %v2957 = vpop.permute.xlu0 %2956
    %v2959 = vmul.f32 %v2954, %v2957
    %v2960 = vmul.f32 %v2942, %v1684
    %v2961 = vadd.f32 %v2959, %v2960
    %v2962 = vpack.c.bf16 %v2961, %v2961
    %2964 = vrot.lane.b32.xlu0 %v2962, 96
    %v2965 = vpop.permute.xlu0 %2964
    %v2967 = vsel %vm96, %v2965, 0
    %2969 = vmatpush.bf16.msra.mxu0 0
    %2970 = vmatpush.bf16.msra.mxu0 0
    %2971 = vmatpush.bf16.msra.mxu0 0
    %2972 = vmatpush.bf16.msra.mxu0 0
    %2973 = vmatpush.bf16.msra.mxu0 0
    %2974 = vmatpush.bf16.msra.mxu0 0
    %2975 = vmatpush.bf16.msra.mxu0 0
    %2976 = vmatpush.bf16.msra.mxu0 %v2967
    %2977 = vmatmul.bf16.gmra.mxu0 %v140
    %v2978 = vpop.f32.mrf.mxu0
    %v2979 = vadd.f32 0.0, %v2978
    %v2980 = vpop.f32.mrf.mxu0
    %v2981 = vadd.f32 0.0, %v2980
    %2982 = vdwg.mxu0
    %v2983 = vmul.f32 %v162, %v2979
    %v2984 = vmul.f32 %v167, %v2981
    %v2985 = vpack.c.bf16 %v2983, %v2983
    %v2986 = vpack.c.bf16 %v2984, %v2984
    %2987 = vst.msk [vmem:[#allocation2] sm:$0xf] %vm173, %v2985
    %2988 = vst.msk [vmem:[#allocation2 + $0x24] sm:$0xf] %vm173, %v2986
    %v2989 = vmul.f32 %v178, %v2979
    %v2990 = vmul.f32 %v182, %v2981
    %v2991 = vpack.c.bf16 %v2989, %v2989
    %v2992 = vpack.c.bf16 %v2990, %v2990
    %2995 = vrot.lane.b32.xlu0 %v2991, 32
    %v2996 = vpop.permute.xlu0 %2995
    %2997 = vrot.lane.b32.xlu0 %v2992, 32
    %v2998 = vpop.permute.xlu0 %2997
    %3001 = vst.msk [vmem:[#allocation2] sm:$0xf] %vm196, %v2996
    %3002 = vst.msk [vmem:[#allocation2 + $0x24] sm:$0xf] %vm196, %v2998
    %v3003 = vmul.f32 %v201, %v2979
    %v3004 = vmul.f32 %v205, %v2981
    %v3005 = vpack.c.bf16 %v3003, %v3003
    %v3006 = vpack.c.bf16 %v3004, %v3004
    %3009 = vrot.lane.b32.xlu0 %v3005, 64
    %v3010 = vpop.permute.xlu0 %3009
    %3011 = vrot.lane.b32.xlu0 %v3006, 64
    %v3012 = vpop.permute.xlu0 %3011
    %3015 = vst.msk [vmem:[#allocation2] sm:$0xf] %vm219, %v3010
    %3016 = vst.msk [vmem:[#allocation2 + $0x24] sm:$0xf] %vm219, %v3012
    %v3017 = vmul.f32 %v224, %v2979
    %v3018 = vmul.f32 %v228, %v2981
    %v3019 = vpack.c.bf16 %v3017, %v3017
    %v3020 = vpack.c.bf16 %v3018, %v3018
    %3023 = vrot.lane.b32.xlu0 %v3019, 96
    %v3024 = vpop.permute.xlu0 %3023
    %3025 = vrot.lane.b32.xlu0 %v3020, 96
    %v3026 = vpop.permute.xlu0 %3025
    %3029 = vst.msk [vmem:[#allocation2] sm:$0xf] %vm242, %v3024
    %3030 = vst.msk [vmem:[#allocation2 + $0x24] sm:$0xf] %vm242, %v3026
    %v3031 = vmul.f32 %v247, %v2979
    %v3032 = vmul.f32 %v251, %v2981
    %v3033 = vpack.c.bf16 %v3031, %v3031
    %v3034 = vpack.c.bf16 %v3032, %v3032
    %3035 = vst.msk [vmem:[#allocation2 + $0x4] sm:$0xf] %vm173, %v3033
    %3036 = vst.msk [vmem:[#allocation2 + $0x28] sm:$0xf] %vm173, %v3034
    %v3037 = vmul.f32 %v261, %v2979
    %v3038 = vmul.f32 %v265, %v2981
    %v3039 = vpack.c.bf16 %v3037, %v3037
    %v3040 = vpack.c.bf16 %v3038, %v3038
    %3043 = vrot.lane.b32.xlu0 %v3039, 32
    %v3044 = vpop.permute.xlu0 %3043
    %3045 = vrot.lane.b32.xlu0 %v3040, 32
    %v3046 = vpop.permute.xlu0 %3045
    %3049 = vst.msk [vmem:[#allocation2 + $0x4] sm:$0xf] %vm196, %v3044
    %3050 = vst.msk [vmem:[#allocation2 + $0x28] sm:$0xf] %vm196, %v3046
    %v3051 = vmul.f32 %v283, %v2979
    %v3052 = vmul.f32 %v287, %v2981
    %v3053 = vpack.c.bf16 %v3051, %v3051
    %v3054 = vpack.c.bf16 %v3052, %v3052
    %3057 = vrot.lane.b32.xlu0 %v3053, 64
    %v3058 = vpop.permute.xlu0 %3057
    %3059 = vrot.lane.b32.xlu0 %v3054, 64
    %v3060 = vpop.permute.xlu0 %3059
    %3063 = vst.msk [vmem:[#allocation2 + $0x4] sm:$0xf] %vm219, %v3058
    %3064 = vst.msk [vmem:[#allocation2 + $0x28] sm:$0xf] %vm219, %v3060
    %v3065 = vmul.f32 %v305, %v2979
    %v3066 = vmul.f32 %v309, %v2981
    %v3067 = vpack.c.bf16 %v3065, %v3065
    %v3068 = vpack.c.bf16 %v3066, %v3066
    %3071 = vrot.lane.b32.xlu0 %v3067, 96
    %v3072 = vpop.permute.xlu0 %3071
    %3073 = vrot.lane.b32.xlu0 %v3068, 96
    %v3074 = vpop.permute.xlu0 %3073
    %3077 = vst.msk [vmem:[#allocation2 + $0x4] sm:$0xf] %vm242, %v3072
    %3078 = vst.msk [vmem:[#allocation2 + $0x28] sm:$0xf] %vm242, %v3074
    %v3079 = vmul.f32 %v327, %v2979
    %v3080 = vmul.f32 %v331, %v2981
    %v3081 = vpack.c.bf16 %v3079, %v3079
    %v3082 = vpack.c.bf16 %v3080, %v3080
    %3083 = vst.msk [vmem:[#allocation2 + $0x8] sm:$0xf] %vm173, %v3081
    %3084 = vst.msk [vmem:[#allocation2 + $0x2c] sm:$0xf] %vm173, %v3082
    %v3085 = vmul.f32 %v341, %v2979
    %v3086 = vmul.f32 %v345, %v2981
    %v3087 = vpack.c.bf16 %v3085, %v3085
    %v3088 = vpack.c.bf16 %v3086, %v3086
    %3091 = vrot.lane.b32.xlu0 %v3087, 32
    %v3092 = vpop.permute.xlu0 %3091
    %3093 = vrot.lane.b32.xlu0 %v3088, 32
    %v3094 = vpop.permute.xlu0 %3093
    %3097 = vst.msk [vmem:[#allocation2 + $0x8] sm:$0xf] %vm196, %v3092
    %3098 = vst.msk [vmem:[#allocation2 + $0x2c] sm:$0xf] %vm196, %v3094
    %v3099 = vmul.f32 %v363, %v2979
    %v3100 = vmul.f32 %v367, %v2981
    %v3101 = vpack.c.bf16 %v3099, %v3099
    %v3102 = vpack.c.bf16 %v3100, %v3100
    %3105 = vrot.lane.b32.xlu0 %v3101, 64
    %v3106 = vpop.permute.xlu0 %3105
    %3107 = vrot.lane.b32.xlu0 %v3102, 64
    %v3108 = vpop.permute.xlu0 %3107
    %3111 = vst.msk [vmem:[#allocation2 + $0x8] sm:$0xf] %vm219, %v3106
    %3112 = vst.msk [vmem:[#allocation2 + $0x2c] sm:$0xf] %vm219, %v3108
    %v3113 = vmul.f32 %v385, %v2979
    %v3114 = vmul.f32 %v389, %v2981
    %v3115 = vpack.c.bf16 %v3113, %v3113
    %v3116 = vpack.c.bf16 %v3114, %v3114
    %3119 = vrot.lane.b32.xlu0 %v3115, 96
    %v3120 = vpop.permute.xlu0 %3119
    %3121 = vrot.lane.b32.xlu0 %v3116, 96
    %v3122 = vpop.permute.xlu0 %3121
    %3125 = vst.msk [vmem:[#allocation2 + $0x8] sm:$0xf] %vm242, %v3120
    %3126 = vst.msk [vmem:[#allocation2 + $0x2c] sm:$0xf] %vm242, %v3122
    %v3127 = vmul.f32 %v407, %v2979
    %v3128 = vmul.f32 %v411, %v2981
    %v3129 = vpack.c.bf16 %v3127, %v3127
    %v3130 = vpack.c.bf16 %v3128, %v3128
    %3131 = vst.msk [vmem:[#allocation2 + $0xc] sm:$0xf] %vm173, %v3129
    %3132 = vst.msk [vmem:[#allocation2 + $0x30] sm:$0xf] %vm173, %v3130
    %v3133 = vmul.f32 %v421, %v2979
    %v3134 = vmul.f32 %v425, %v2981
    %v3135 = vpack.c.bf16 %v3133, %v3133
    %v3136 = vpack.c.bf16 %v3134, %v3134
    %3139 = vrot.lane.b32.xlu0 %v3135, 32
    %v3140 = vpop.permute.xlu0 %3139
    %3141 = vrot.lane.b32.xlu0 %v3136, 32
    %v3142 = vpop.permute.xlu0 %3141
    %3145 = vst.msk [vmem:[#allocation2 + $0xc] sm:$0xf] %vm196, %v3140
    %3146 = vst.msk [vmem:[#allocation2 + $0x30] sm:$0xf] %vm196, %v3142
    %v3147 = vmul.f32 %v443, %v2979
    %v3148 = vmul.f32 %v447, %v2981
    %v3149 = vpack.c.bf16 %v3147, %v3147
    %v3150 = vpack.c.bf16 %v3148, %v3148
    %3153 = vrot.lane.b32.xlu0 %v3149, 64
    %v3154 = vpop.permute.xlu0 %3153
    %3155 = vrot.lane.b32.xlu0 %v3150, 64
    %v3156 = vpop.permute.xlu0 %3155
    %3159 = vst.msk [vmem:[#allocation2 + $0xc] sm:$0xf] %vm219, %v3154
    %3160 = vst.msk [vmem:[#allocation2 + $0x30] sm:$0xf] %vm219, %v3156
    %v3161 = vmul.f32 %v465, %v2979
    %v3162 = vmul.f32 %v469, %v2981
    %v3163 = vpack.c.bf16 %v3161, %v3161
    %v3164 = vpack.c.bf16 %v3162, %v3162
    %3167 = vrot.lane.b32.xlu0 %v3163, 96
    %v3168 = vpop.permute.xlu0 %3167
    %3169 = vrot.lane.b32.xlu0 %v3164, 96
    %v3170 = vpop.permute.xlu0 %3169
    %3173 = vst.msk [vmem:[#allocation2 + $0xc] sm:$0xf] %vm242, %v3168
    %3174 = vst.msk [vmem:[#allocation2 + $0x30] sm:$0xf] %vm242, %v3170
    %v3175 = vmul.f32 %v487, %v2979
    %v3176 = vmul.f32 %v491, %v2981
    %v3177 = vpack.c.bf16 %v3175, %v3175
    %v3178 = vpack.c.bf16 %v3176, %v3176
    %3179 = vst.msk [vmem:[#allocation2 + $0x10] sm:$0xf] %vm173, %v3177
    %3180 = vst.msk [vmem:[#allocation2 + $0x34] sm:$0xf] %vm173, %v3178
    %v3181 = vmul.f32 %v501, %v2979
    %v3182 = vmul.f32 %v505, %v2981
    %v3183 = vpack.c.bf16 %v3181, %v3181
    %v3184 = vpack.c.bf16 %v3182, %v3182
    %3187 = vrot.lane.b32.xlu0 %v3183, 32
    %v3188 = vpop.permute.xlu0 %3187
    %3189 = vrot.lane.b32.xlu0 %v3184, 32
    %v3190 = vpop.permute.xlu0 %3189
    %3193 = vst.msk [vmem:[#allocation2 + $0x10] sm:$0xf] %vm196, %v3188
    %3194 = vst.msk [vmem:[#allocation2 + $0x34] sm:$0xf] %vm196, %v3190
    %v3195 = vmul.f32 %v523, %v2979
    %v3196 = vmul.f32 %v527, %v2981
    %v3197 = vpack.c.bf16 %v3195, %v3195
    %v3198 = vpack.c.bf16 %v3196, %v3196
    %3201 = vrot.lane.b32.xlu0 %v3197, 64
    %v3202 = vpop.permute.xlu0 %3201
    %3203 = vrot.lane.b32.xlu0 %v3198, 64
    %v3204 = vpop.permute.xlu0 %3203
    %3207 = vst.msk [vmem:[#allocation2 + $0x10] sm:$0xf] %vm219, %v3202
    %3208 = vst.msk [vmem:[#allocation2 + $0x34] sm:$0xf] %vm219, %v3204
    %v3209 = vmul.f32 %v545, %v2979
    %v3210 = vmul.f32 %v549, %v2981
    %v3211 = vpack.c.bf16 %v3209, %v3209
    %v3212 = vpack.c.bf16 %v3210, %v3210
    %3215 = vrot.lane.b32.xlu0 %v3211, 96
    %v3216 = vpop.permute.xlu0 %3215
    %3217 = vrot.lane.b32.xlu0 %v3212, 96
    %v3218 = vpop.permute.xlu0 %3217
    %3221 = vst.msk [vmem:[#allocation2 + $0x10] sm:$0xf] %vm242, %v3216
    %3222 = vst.msk [vmem:[#allocation2 + $0x34] sm:$0xf] %vm242, %v3218
    %v3223 = vmul.f32 %v567, %v2979
    %v3224 = vmul.f32 %v571, %v2981
    %v3225 = vpack.c.bf16 %v3223, %v3223
    %v3226 = vpack.c.bf16 %v3224, %v3224
    %3227 = vst.msk [vmem:[#allocation2 + $0x14] sm:$0xf] %vm173, %v3225
    %3228 = vst.msk [vmem:[#allocation2 + $0x38] sm:$0xf] %vm173, %v3226
    %v3229 = vmul.f32 %v581, %v2979
    %v3230 = vmul.f32 %v585, %v2981
    %v3231 = vpack.c.bf16 %v3229, %v3229
    %v3232 = vpack.c.bf16 %v3230, %v3230
    %3235 = vrot.lane.b32.xlu0 %v3231, 32
    %v3236 = vpop.permute.xlu0 %3235
    %3237 = vrot.lane.b32.xlu0 %v3232, 32
    %v3238 = vpop.permute.xlu0 %3237
    %3241 = vst.msk [vmem:[#allocation2 + $0x14] sm:$0xf] %vm196, %v3236
    %3242 = vst.msk [vmem:[#allocation2 + $0x38] sm:$0xf] %vm196, %v3238
    %v3243 = vmul.f32 %v603, %v2979
    %v3244 = vmul.f32 %v607, %v2981
    %v3245 = vpack.c.bf16 %v3243, %v3243
    %v3246 = vpack.c.bf16 %v3244, %v3244
    %3249 = vrot.lane.b32.xlu0 %v3245, 64
    %v3250 = vpop.permute.xlu0 %3249
    %3251 = vrot.lane.b32.xlu0 %v3246, 64
    %v3252 = vpop.permute.xlu0 %3251
    %3255 = vst.msk [vmem:[#allocation2 + $0x14] sm:$0xf] %vm219, %v3250
    %3256 = vst.msk [vmem:[#allocation2 + $0x38] sm:$0xf] %vm219, %v3252
    %v3257 = vmul.f32 %v625, %v2979
    %v3258 = vmul.f32 %v629, %v2981
    %v3259 = vpack.c.bf16 %v3257, %v3257
    %v3260 = vpack.c.bf16 %v3258, %v3258
    %3263 = vrot.lane.b32.xlu0 %v3259, 96
    %v3264 = vpop.permute.xlu0 %3263
    %3265 = vrot.lane.b32.xlu0 %v3260, 96
    %v3266 = vpop.permute.xlu0 %3265
    %3269 = vst.msk [vmem:[#allocation2 + $0x14] sm:$0xf] %vm242, %v3264
    %3270 = vst.msk [vmem:[#allocation2 + $0x38] sm:$0xf] %vm242, %v3266
    %v3271 = vmul.f32 %v647, %v2979
    %v3272 = vmul.f32 %v651, %v2981
    %v3273 = vpack.c.bf16 %v3271, %v3271
    %v3274 = vpack.c.bf16 %v3272, %v3272
    %3275 = vst.msk [vmem:[#allocation2 + $0x18] sm:$0xf] %vm173, %v3273
    %3276 = vst.msk [vmem:[#allocation2 + $0x3c] sm:$0xf] %vm173, %v3274
    %v3277 = vmul.f32 %v661, %v2979
    %v3278 = vmul.f32 %v665, %v2981
    %v3279 = vpack.c.bf16 %v3277, %v3277
    %v3280 = vpack.c.bf16 %v3278, %v3278
    %3283 = vrot.lane.b32.xlu0 %v3279, 32
    %v3284 = vpop.permute.xlu0 %3283
    %3285 = vrot.lane.b32.xlu0 %v3280, 32
    %v3286 = vpop.permute.xlu0 %3285
    %3289 = vst.msk [vmem:[#allocation2 + $0x18] sm:$0xf] %vm196, %v3284
    %3290 = vst.msk [vmem:[#allocation2 + $0x3c] sm:$0xf] %vm196, %v3286
    %v3291 = vmul.f32 %v683, %v2979
    %v3292 = vmul.f32 %v687, %v2981
    %v3293 = vpack.c.bf16 %v3291, %v3291
    %v3294 = vpack.c.bf16 %v3292, %v3292
    %3297 = vrot.lane.b32.xlu0 %v3293, 64
    %v3298 = vpop.permute.xlu0 %3297
    %3299 = vrot.lane.b32.xlu0 %v3294, 64
    %v3300 = vpop.permute.xlu0 %3299
    %3303 = vst.msk [vmem:[#allocation2 + $0x18] sm:$0xf] %vm219, %v3298
    %3304 = vst.msk [vmem:[#allocation2 + $0x3c] sm:$0xf] %vm219, %v3300
    %v3305 = vmul.f32 %v705, %v2979
    %v3306 = vmul.f32 %v709, %v2981
    %v3307 = vpack.c.bf16 %v3305, %v3305
    %v3308 = vpack.c.bf16 %v3306, %v3306
    %3311 = vrot.lane.b32.xlu0 %v3307, 96
    %v3312 = vpop.permute.xlu0 %3311
    %3313 = vrot.lane.b32.xlu0 %v3308, 96
    %v3314 = vpop.permute.xlu0 %3313
    %3317 = vst.msk [vmem:[#allocation2 + $0x18] sm:$0xf] %vm242, %v3312
    %3318 = vst.msk [vmem:[#allocation2 + $0x3c] sm:$0xf] %vm242, %v3314
    %v3319 = vmul.f32 %v727, %v2979
    %v3320 = vmul.f32 %v731, %v2981
    %v3321 = vpack.c.bf16 %v3319, %v3319
    %v3322 = vpack.c.bf16 %v3320, %v3320
    %3323 = vst.msk [vmem:[#allocation2 + $0x1c] sm:$0xf] %vm173, %v3321
    %3324 = vst.msk [vmem:[#allocation2 + $0x40] sm:$0xf] %vm173, %v3322
    %v3325 = vmul.f32 %v741, %v2979
    %v3326 = vmul.f32 %v745, %v2981
    %v3327 = vpack.c.bf16 %v3325, %v3325
    %v3328 = vpack.c.bf16 %v3326, %v3326
    %3331 = vrot.lane.b32.xlu0 %v3327, 32
    %v3332 = vpop.permute.xlu0 %3331
    %3333 = vrot.lane.b32.xlu0 %v3328, 32
    %v3334 = vpop.permute.xlu0 %3333
    %3337 = vst.msk [vmem:[#allocation2 + $0x1c] sm:$0xf] %vm196, %v3332
    %3338 = vst.msk [vmem:[#allocation2 + $0x40] sm:$0xf] %vm196, %v3334
    %v3339 = vmul.f32 %v763, %v2979
    %v3340 = vmul.f32 %v767, %v2981
    %v3341 = vpack.c.bf16 %v3339, %v3339
    %v3342 = vpack.c.bf16 %v3340, %v3340
    %3345 = vrot.lane.b32.xlu0 %v3341, 64
    %v3346 = vpop.permute.xlu0 %3345
    %3347 = vrot.lane.b32.xlu0 %v3342, 64
    %v3348 = vpop.permute.xlu0 %3347
    %3351 = vst.msk [vmem:[#allocation2 + $0x1c] sm:$0xf] %vm219, %v3346
    %3352 = vst.msk [vmem:[#allocation2 + $0x40] sm:$0xf] %vm219, %v3348
    %v3353 = vmul.f32 %v785, %v2979
    %v3354 = vmul.f32 %v789, %v2981
    %v3355 = vpack.c.bf16 %v3353, %v3353
    %v3356 = vpack.c.bf16 %v3354, %v3354
    %3359 = vrot.lane.b32.xlu0 %v3355, 96
    %v3360 = vpop.permute.xlu0 %3359
    %3361 = vrot.lane.b32.xlu0 %v3356, 96
    %v3362 = vpop.permute.xlu0 %3361
    %3365 = vst.msk [vmem:[#allocation2 + $0x1c] sm:$0xf] %vm242, %v3360
    %3366 = vst.msk [vmem:[#allocation2 + $0x40] sm:$0xf] %vm242, %v3362
    %v3367 = vpack.c.bf16 %v2979, %v2979
    %v3368 = vpack.c.bf16 %v2981, %v2981
    %3369 = vst.msk [vmem:[#allocation2 + $0x20] sm:$0xf] %vm173, %v3367
    %3370 = vst.msk [vmem:[#allocation2 + $0x44] sm:$0xf] %vm173, %v3368
    %v3371 = vld [vmem:[#allocation2] sm:$0xff]
    %v3372 = vld [vmem:[#allocation2 + $0x8] sm:$0xff]
    %v3373 = vld [vmem:[#allocation2 + $0x10] sm:$0xff]
    %v3374 = vld [vmem:[#allocation2 + $0x18] sm:$0xff]
    %v3375 = vld [vmem:[#allocation2 + $0x20] sm:$0xf]
    %v3376 = vld [vmem:[#allocation2 + $0x24] sm:$0xff]
    %v3377 = vld [vmem:[#allocation2 + $0x2c] sm:$0xff]
    %v3378 = vld [vmem:[#allocation2 + $0x34] sm:$0xff]
    %v3379 = vld [vmem:[#allocation2 + $0x3c] sm:$0xff]
    %v3380 = vld [vmem:[#allocation2 + $0x44] sm:$0xf]
    %v3381 = vld [vmem:[%s8] sm:$0xf]
    %v3382 = vld [vmem:[%s8 + $0x4] sm:$0xf]
    %v3383 = vld [vmem:[%s8 + $0x8] sm:$0xf]
    %v3384 = vld [vmem:[%s8 + $0xc] sm:$0xf]
    %v3385 = vld [vmem:[%s8 + $0x10] sm:$0xf]
    %v3386 = vld [vmem:[%s8 + $0x14] sm:$0xf]
    %v3387 = vld [vmem:[%s8 + $0x18] sm:$0xf]
    %v3388 = vld [vmem:[%s8 + $0x1c] sm:$0xf]
    %v3389 = vld [vmem:[%s8 + $0x20] sm:$0xf]
    %v3390 = vld [vmem:[%s8 + $0x24] sm:$0xf]
    %v3391 = vld [vmem:[%s8 + $0x28] sm:$0xf]
    %v3392 = vld [vmem:[%s8 + $0x2c] sm:$0xf]
    %v3393 = vld [vmem:[%s8 + $0x30] sm:$0xf]
    %v3394 = vld [vmem:[%s8 + $0x34] sm:$0xf]
    %v3395 = vld [vmem:[%s8 + $0x38] sm:$0xf]
    %v3396 = vld [vmem:[%s8 + $0x3c] sm:$0xf]
    %v3397 = vld [vmem:[%s8 + $0x40] sm:$0xf]
    %v3398 = vld [vmem:[%s8 + $0x44] sm:$0xf]
    %v3399 = vld [vmem:[%s8 + $0x48] sm:$0xf]
    %v3400 = vld [vmem:[%s8 + $0x4c] sm:$0xf]
    %v3401 = vld [vmem:[%s8 + $0x50] sm:$0xf]
    %v3402 = vld [vmem:[%s8 + $0x54] sm:$0xf]
    %v3403 = vld [vmem:[%s8 + $0x58] sm:$0xf]
    %v3404 = vld [vmem:[%s8 + $0x5c] sm:$0xf]
    %v3405 = vld [vmem:[%s8 + $0x60] sm:$0xf]
    %v3406 = vld [vmem:[%s8 + $0x64] sm:$0xf]
    %v3407 = vld [vmem:[%s8 + $0x68] sm:$0xf]
    %v3408 = vld [vmem:[%s8 + $0x6c] sm:$0xf]
    %v3409 = vld [vmem:[%s8 + $0x70] sm:$0xf]
    %v3410 = vld [vmem:[%s8 + $0x74] sm:$0xf]
    %v3411 = vld [vmem:[%s8 + $0x78] sm:$0xf]
    %v3412 = vld [vmem:[%s8 + $0x7c] sm:$0xf]
    %v3413 = vld [vmem:[%s8 + $0x80] sm:$0xf]
    %v3414 = vld [vmem:[%s8 + $0x84] sm:$0xf]
    %v3415 = vld [vmem:[%s8 + $0x88] sm:$0xf]
    %v3416 = vld [vmem:[%s8 + $0x8c] sm:$0xf]
    %v3417 = vld [vmem:[%s8 + $0x90] sm:$0xf]
    %v3418 = vld [vmem:[%s8 + $0x94] sm:$0xf]
    %v3419 = vld [vmem:[%s8 + $0x98] sm:$0xf]
    %v3420 = vld [vmem:[%s8 + $0x9c] sm:$0xf]
    %v3421 = vld [vmem:[%s8 + $0xa0] sm:$0xf]
    %v3422 = vld [vmem:[%s8 + $0xa4] sm:$0xf]
    %v3423 = vld [vmem:[%s8 + $0xa8] sm:$0xf]
    %v3424 = vld [vmem:[%s8 + $0xac] sm:$0xf]
    %v3425 = vld [vmem:[%s8 + $0xb0] sm:$0xf]
    %v3426 = vld [vmem:[%s8 + $0xb4] sm:$0xf]
    %v3427 = vld [vmem:[%s8 + $0xb8] sm:$0xf]
    %v3428 = vld [vmem:[%s8 + $0xbc] sm:$0xf]
    %v3429 = vld [vmem:[%s8 + $0xc0] sm:$0xf]
    %v3430 = vld [vmem:[%s8 + $0xc4] sm:$0xf]
    %v3431 = vld [vmem:[%s8 + $0xc8] sm:$0xf]
    %v3432 = vld [vmem:[%s8 + $0xcc] sm:$0xf]
    %v3433 = vld [vmem:[%s8 + $0xd0] sm:$0xf]
    %v3434 = vld [vmem:[%s8 + $0xd4] sm:$0xf]
    %v3435 = vld [vmem:[%s8 + $0xd8] sm:$0xf]
    %v3436 = vld [vmem:[%s8 + $0xdc] sm:$0xf]
    %v3437 = vld [vmem:[%s8 + $0xe0] sm:$0xf]
    %v3438 = vld [vmem:[%s8 + $0xe4] sm:$0xf]
    %v3439 = vld [vmem:[%s8 + $0xe8] sm:$0xf]
    %v3440 = vld [vmem:[%s8 + $0xec] sm:$0xf]
    %v3441 = vld [vmem:[%s8 + $0xf0] sm:$0xf]
    %v3442 = vld [vmem:[%s8 + $0xf4] sm:$0xf]
    %v3443 = vld [vmem:[%s8 + $0xf8] sm:$0xf]
    %v3444 = vld [vmem:[%s8 + $0xfc] sm:$0xf]
    %v3445 = vld [vmem:[%s8 + $0x100] sm:$0xf]
    %v3446 = vld [vmem:[%s8 + $0x104] sm:$0xf]
    %v3447 = vld [vmem:[%s8 + $0x108] sm:$0xf]
    %v3448 = vld [vmem:[%s8 + $0x10c] sm:$0xf]
    %v3449 = vld [vmem:[%s8 + $0x110] sm:$0xf]
    %v3450 = vld [vmem:[%s8 + $0x114] sm:$0xf]
    %v3451 = vld [vmem:[%s8 + $0x118] sm:$0xf]
    %v3452 = vld [vmem:[%s8 + $0x11c] sm:$0xf]
    %v3453 = vld [vmem:[%s8 + $0x120] sm:$0xf]
    %v3454 = vld [vmem:[%s8 + $0x124] sm:$0xf]
    %v3455 = vld [vmem:[%s8 + $0x128] sm:$0xf]
    %v3456 = vld [vmem:[%s8 + $0x12c] sm:$0xf]
    %v3457 = vld [vmem:[%s8 + $0x130] sm:$0xf]
    %v3458 = vld [vmem:[%s8 + $0x134] sm:$0xf]
    %v3459 = vld [vmem:[%s8 + $0x138] sm:$0xf]
    %v3460 = vld [vmem:[%s8 + $0x13c] sm:$0xf]
    %v3461 = vld [vmem:[%s8 + $0x140] sm:$0xf]
    %v3462 = vld [vmem:[%s8 + $0x144] sm:$0xf]
    %v3463 = vld [vmem:[%s8 + $0x148] sm:$0xf]
    %v3464 = vld [vmem:[%s8 + $0x14c] sm:$0xf]
    %v3465 = vld [vmem:[%s8 + $0x150] sm:$0xf]
    %v3466 = vld [vmem:[%s8 + $0x154] sm:$0xf]
    %v3467 = vld [vmem:[%s8 + $0x158] sm:$0xf]
    %v3468 = vld [vmem:[%s8 + $0x15c] sm:$0xf]
    %v3469 = vld [vmem:[%s8 + $0x160] sm:$0xf]
    %v3470 = vld [vmem:[%s8 + $0x164] sm:$0xf]
    %v3471 = vld [vmem:[%s8 + $0x168] sm:$0xf]
    %v3472 = vld [vmem:[%s8 + $0x16c] sm:$0xf]
    %v3473 = vld [vmem:[%s8 + $0x170] sm:$0xf]
    %v3474 = vld [vmem:[%s8 + $0x174] sm:$0xf]
    %v3475 = vld [vmem:[%s8 + $0x178] sm:$0xf]
    %v3476 = vld [vmem:[%s8 + $0x17c] sm:$0xf]
    %v3477 = vld [vmem:[%s8 + $0x180] sm:$0xf]
    %v3478 = vld [vmem:[%s8 + $0x184] sm:$0xf]
    %v3479 = vld [vmem:[%s8 + $0x188] sm:$0xf]
    %v3480 = vld [vmem:[%s8 + $0x18c] sm:$0xf]
    %v3481 = vld [vmem:[%s8 + $0x190] sm:$0xf]
    %v3482 = vld [vmem:[%s8 + $0x194] sm:$0xf]
    %v3483 = vld [vmem:[%s8 + $0x198] sm:$0xf]
    %v3484 = vld [vmem:[%s8 + $0x19c] sm:$0xf]
    %v3485 = vld [vmem:[%s8 + $0x1a0] sm:$0xf]
    %v3486 = vld [vmem:[%s8 + $0x1a4] sm:$0xf]
    %v3487 = vld [vmem:[%s8 + $0x1a8] sm:$0xf]
    %v3488 = vld [vmem:[%s8 + $0x1ac] sm:$0xf]
    %v3489 = vld [vmem:[%s8 + $0x1b0] sm:$0xf]
    %v3490 = vld [vmem:[%s8 + $0x1b4] sm:$0xf]
    %v3491 = vld [vmem:[%s8 + $0x1b8] sm:$0xf]
    %v3492 = vld [vmem:[%s8 + $0x1bc] sm:$0xf]
    %v3493 = vld [vmem:[%s8 + $0x1c0] sm:$0xf]
    %v3494 = vld [vmem:[%s8 + $0x1c4] sm:$0xf]
    %v3495 = vld [vmem:[%s8 + $0x1c8] sm:$0xf]
    %v3496 = vld [vmem:[%s8 + $0x1cc] sm:$0xf]
    %v3497 = vld [vmem:[%s8 + $0x1d0] sm:$0xf]
    %v3498 = vld [vmem:[%s8 + $0x1d4] sm:$0xf]
    %v3499 = vld [vmem:[%s8 + $0x1d8] sm:$0xf]
    %v3500 = vld [vmem:[%s8 + $0x1dc] sm:$0xf]
    %v3501 = vld [vmem:[%s8 + $0x1e0] sm:$0xf]
    %v3502 = vld [vmem:[%s8 + $0x1e4] sm:$0xf]
    %v3503 = vld [vmem:[%s8 + $0x1e8] sm:$0xf]
    %v3504 = vld [vmem:[%s8 + $0x1ec] sm:$0xf]
    %v3505 = vld [vmem:[%s8 + $0x1f0] sm:$0xf]
    %v3506 = vld [vmem:[%s8 + $0x1f4] sm:$0xf]
    %v3507 = vld [vmem:[%s8 + $0x1f8] sm:$0xf]
    %v3508 = vld [vmem:[%s8 + $0x1fc] sm:$0xf]
    %v3509 = vld [vmem:[%s8 + $0x200] sm:$0xf]
    %v3510 = vld [vmem:[%s8 + $0x204] sm:$0xf]
    %v3511 = vld [vmem:[%s8 + $0x208] sm:$0xf]
    %v3512 = vld [vmem:[%s8 + $0x20c] sm:$0xf]
    %v3523 = vunpack.c.l.b16 %v3371
    %v3524 = vunpack.c.h.b16 %v3371
    %v3525 = vunpack.c.l.b16 %v3372
    %v3526 = vunpack.c.h.b16 %v3372
    %v3527 = vunpack.c.l.b16 %v3373
    %v3528 = vunpack.c.h.b16 %v3373
    %v3529 = vunpack.c.l.b16 %v3374
    %v3530 = vunpack.c.h.b16 %v3374
    %v3531 = vunpack.c.l.b16 %v3375
    %v3532 = vunpack.c.l.b16 %v3376
    %v3533 = vunpack.c.h.b16 %v3376
    %v3534 = vunpack.c.l.b16 %v3377
    %v3535 = vunpack.c.h.b16 %v3377
    %v3536 = vunpack.c.l.b16 %v3378
    %v3537 = vunpack.c.h.b16 %v3378
    %v3538 = vunpack.c.l.b16 %v3379
    %v3539 = vunpack.c.h.b16 %v3379
    %v3540 = vunpack.c.l.b16 %v3380
    %v3541 = vpack.c.b16 %v3532, %v3523
    %v3542 = vpack.c.b16 %v3533, %v3524
    %v3543 = vpack.c.b16 %v3534, %v3525
    %v3544 = vpack.c.b16 %v3535, %v3526
    %v3545 = vpack.c.b16 %v3536, %v3527
    %v3546 = vpack.c.b16 %v3537, %v3528
    %v3547 = vpack.c.b16 %v3538, %v3529
    %v3548 = vpack.c.b16 %v3539, %v3530
    %v3549 = vpack.c.b16 %v3540, %v3531
    %v3690 = vunpack.c.l.b16 %v3381
    %v3691 = vunpack.c.l.b16 %v3382
    %v3692 = vunpack.c.l.b16 %v3383
    %v3693 = vunpack.c.l.b16 %v3384
    %v3694 = vunpack.c.l.b16 %v3385
    %v3695 = vunpack.c.l.b16 %v3386
    %v3696 = vunpack.c.l.b16 %v3387
    %v3697 = vunpack.c.l.b16 %v3388
    %v3698 = vunpack.c.l.b16 %v3389
    %v3699 = vunpack.c.l.b16 %v3390
    %v3700 = vunpack.c.l.b16 %v3391
    %v3701 = vunpack.c.l.b16 %v3392
    %v3702 = vunpack.c.l.b16 %v3393
    %v3703 = vunpack.c.l.b16 %v3394
    %v3704 = vunpack.c.l.b16 %v3395
    %v3705 = vunpack.c.l.b16 %v3396
    %v3706 = vunpack.c.l.b16 %v3397
    %v3707 = vunpack.c.l.b16 %v3398
    %v3708 = vunpack.c.l.b16 %v3399
    %v3709 = vunpack.c.l.b16 %v3400
    %v3710 = vunpack.c.l.b16 %v3401
    %v3711 = vunpack.c.l.b16 %v3402
    %v3712 = vunpack.c.l.b16 %v3403
    %v3713 = vunpack.c.l.b16 %v3404
    %v3714 = vunpack.c.l.b16 %v3405
    %v3715 = vunpack.c.l.b16 %v3406
    %v3716 = vunpack.c.l.b16 %v3407
    %v3717 = vunpack.c.l.b16 %v3408
    %v3718 = vunpack.c.l.b16 %v3409
    %v3719 = vunpack.c.l.b16 %v3410
    %v3720 = vunpack.c.l.b16 %v3411
    %v3721 = vunpack.c.l.b16 %v3412
    %v3722 = vunpack.c.l.b16 %v3413
    %v3723 = vunpack.c.l.b16 %v3414
    %v3724 = vunpack.c.l.b16 %v3415
    %v3725 = vunpack.c.l.b16 %v3416
    %v3726 = vunpack.c.l.b16 %v3417
    %v3727 = vunpack.c.l.b16 %v3418
    %v3728 = vunpack.c.l.b16 %v3419
    %v3729 = vunpack.c.l.b16 %v3420
    %v3730 = vunpack.c.l.b16 %v3421
    %v3731 = vunpack.c.l.b16 %v3422
    %v3732 = vunpack.c.l.b16 %v3423
    %v3733 = vunpack.c.l.b16 %v3424
    %v3734 = vunpack.c.l.b16 %v3425
    %v3735 = vunpack.c.l.b16 %v3426
    %v3736 = vunpack.c.l.b16 %v3427
    %v3737 = vunpack.c.l.b16 %v3428
    %v3738 = vunpack.c.l.b16 %v3429
    %v3739 = vunpack.c.l.b16 %v3430
    %v3740 = vunpack.c.l.b16 %v3431
    %v3741 = vunpack.c.l.b16 %v3432
    %v3742 = vunpack.c.l.b16 %v3433
    %v3743 = vunpack.c.l.b16 %v3434
    %v3744 = vunpack.c.l.b16 %v3435
    %v3745 = vunpack.c.l.b16 %v3436
    %v3746 = vunpack.c.l.b16 %v3437
    %v3747 = vunpack.c.l.b16 %v3438
    %v3748 = vunpack.c.l.b16 %v3439
    %v3749 = vunpack.c.l.b16 %v3440
    %v3750 = vunpack.c.l.b16 %v3441
    %v3751 = vunpack.c.l.b16 %v3442
    %v3752 = vunpack.c.l.b16 %v3443
    %v3753 = vunpack.c.l.b16 %v3444
    %v3754 = vunpack.c.l.b16 %v3445
    %v3755 = vunpack.c.l.b16 %v3446
    %v3756 = vunpack.c.l.b16 %v3447
    %v3757 = vunpack.c.l.b16 %v3448
    %v3758 = vunpack.c.l.b16 %v3449
    %v3759 = vunpack.c.l.b16 %v3450
    %v3760 = vunpack.c.l.b16 %v3451
    %v3761 = vunpack.c.l.b16 %v3452
    %v3762 = vunpack.c.l.b16 %v3453
    %v3763 = vunpack.c.l.b16 %v3454
    %v3764 = vunpack.c.l.b16 %v3455
    %v3765 = vunpack.c.l.b16 %v3456
    %v3766 = vunpack.c.l.b16 %v3457
    %v3767 = vunpack.c.l.b16 %v3458
    %v3768 = vunpack.c.l.b16 %v3459
    %v3769 = vunpack.c.l.b16 %v3460
    %v3770 = vunpack.c.l.b16 %v3461
    %v3771 = vunpack.c.l.b16 %v3462
    %v3772 = vunpack.c.l.b16 %v3463
    %v3773 = vunpack.c.l.b16 %v3464
    %v3774 = vunpack.c.l.b16 %v3465
    %v3775 = vunpack.c.l.b16 %v3466
    %v3776 = vunpack.c.l.b16 %v3467
    %v3777 = vunpack.c.l.b16 %v3468
    %v3778 = vunpack.c.l.b16 %v3469
    %v3779 = vunpack.c.l.b16 %v3470
    %v3780 = vunpack.c.l.b16 %v3471
    %v3781 = vunpack.c.l.b16 %v3472
    %v3782 = vunpack.c.l.b16 %v3473
    %v3783 = vunpack.c.l.b16 %v3474
    %v3784 = vunpack.c.l.b16 %v3475
    %v3785 = vunpack.c.l.b16 %v3476
    %v3786 = vunpack.c.l.b16 %v3477
    %v3787 = vunpack.c.l.b16 %v3478
    %v3788 = vunpack.c.l.b16 %v3479
    %v3789 = vunpack.c.l.b16 %v3480
    %v3790 = vunpack.c.l.b16 %v3481
    %v3791 = vunpack.c.l.b16 %v3482
    %v3792 = vunpack.c.l.b16 %v3483
    %v3793 = vunpack.c.l.b16 %v3484
    %v3794 = vunpack.c.l.b16 %v3485
    %v3795 = vunpack.c.l.b16 %v3486
    %v3796 = vunpack.c.l.b16 %v3487
    %v3797 = vunpack.c.l.b16 %v3488
    %v3798 = vunpack.c.l.b16 %v3489
    %v3799 = vunpack.c.l.b16 %v3490
    %v3800 = vunpack.c.l.b16 %v3491
    %v3801 = vunpack.c.l.b16 %v3492
    %v3802 = vunpack.c.l.b16 %v3493
    %v3803 = vunpack.c.l.b16 %v3494
    %v3804 = vunpack.c.l.b16 %v3495
    %v3805 = vunpack.c.l.b16 %v3496
    %v3806 = vunpack.c.l.b16 %v3497
    %v3807 = vunpack.c.l.b16 %v3498
    %v3808 = vunpack.c.l.b16 %v3499
    %v3809 = vunpack.c.l.b16 %v3500
    %v3810 = vunpack.c.l.b16 %v3501
    %v3811 = vunpack.c.l.b16 %v3502
    %v3812 = vunpack.c.l.b16 %v3503
    %v3813 = vunpack.c.l.b16 %v3504
    %v3814 = vunpack.c.l.b16 %v3505
    %v3815 = vunpack.c.l.b16 %v3506
    %v3816 = vunpack.c.l.b16 %v3507
    %v3817 = vunpack.c.l.b16 %v3508
    %v3818 = vunpack.c.l.b16 %v3509
    %v3819 = vunpack.c.l.b16 %v3510
    %v3820 = vunpack.c.l.b16 %v3511
    %v3821 = vunpack.c.l.b16 %v3512
    %v3822 = vpack.c.b16 %v3691, %v3690
    %v3823 = vpack.c.b16 %v3693, %v3692
    %v3824 = vpack.c.b16 %v3695, %v3694
    %v3825 = vpack.c.b16 %v3697, %v3696
    %v3826 = vpack.c.b16 %v3699, %v3698
    %v3827 = vpack.c.b16 %v3701, %v3700
    %v3828 = vpack.c.b16 %v3703, %v3702
    %v3829 = vpack.c.b16 %v3705, %v3704
    %v3830 = vpack.c.b16 %v3707, %v3706
    %v3831 = vpack.c.b16 %v3709, %v3708
    %v3832 = vpack.c.b16 %v3711, %v3710
    %v3833 = vpack.c.b16 %v3713, %v3712
    %v3834 = vpack.c.b16 %v3715, %v3714
    %v3835 = vpack.c.b16 %v3717, %v3716
    %v3836 = vpack.c.b16 %v3719, %v3718
    %v3837 = vpack.c.b16 %v3721, %v3720
    %v3838 = vpack.c.b16 %v3723, %v3722
    %v3839 = vpack.c.b16 %v3725, %v3724
    %v3840 = vpack.c.b16 %v3727, %v3726
    %v3841 = vpack.c.b16 %v3729, %v3728
    %v3842 = vpack.c.b16 %v3731, %v3730
    %v3843 = vpack.c.b16 %v3733, %v3732
    %v3844 = vpack.c.b16 %v3735, %v3734
    %v3845 = vpack.c.b16 %v3737, %v3736
    %v3846 = vpack.c.b16 %v3739, %v3738
    %v3847 = vpack.c.b16 %v3741, %v3740
    %v3848 = vpack.c.b16 %v3743, %v3742
    %v3849 = vpack.c.b16 %v3745, %v3744
    %v3850 = vpack.c.b16 %v3747, %v3746
    %v3851 = vpack.c.b16 %v3749, %v3748
    %v3852 = vpack.c.b16 %v3751, %v3750
    %v3853 = vpack.c.b16 %v3753, %v3752
    %v3854 = vpack.c.b16 %v3755, %v3754
    %v3855 = vpack.c.b16 %v3757, %v3756
    %v3856 = vpack.c.b16 %v3759, %v3758
    %v3857 = vpack.c.b16 %v3761, %v3760
    %v3858 = vpack.c.b16 %v3763, %v3762
    %v3859 = vpack.c.b16 %v3765, %v3764
    %v3860 = vpack.c.b16 %v3767, %v3766
    %v3861 = vpack.c.b16 %v3769, %v3768
    %v3862 = vpack.c.b16 %v3771, %v3770
    %v3863 = vpack.c.b16 %v3773, %v3772
    %v3864 = vpack.c.b16 %v3775, %v3774
    %v3865 = vpack.c.b16 %v3777, %v3776
    %v3866 = vpack.c.b16 %v3779, %v3778
    %v3867 = vpack.c.b16 %v3781, %v3780
    %v3868 = vpack.c.b16 %v3783, %v3782
    %v3869 = vpack.c.b16 %v3785, %v3784
    %v3870 = vpack.c.b16 %v3787, %v3786
    %v3871 = vpack.c.b16 %v3789, %v3788
    %v3872 = vpack.c.b16 %v3791, %v3790
    %v3873 = vpack.c.b16 %v3793, %v3792
    %v3874 = vpack.c.b16 %v3795, %v3794
    %v3875 = vpack.c.b16 %v3797, %v3796
    %v3876 = vpack.c.b16 %v3799, %v3798
    %v3877 = vpack.c.b16 %v3801, %v3800
    %v3878 = vpack.c.b16 %v3803, %v3802
    %v3879 = vpack.c.b16 %v3805, %v3804
    %v3880 = vpack.c.b16 %v3807, %v3806
    %v3881 = vpack.c.b16 %v3809, %v3808
    %v3882 = vpack.c.b16 %v3811, %v3810
    %v3883 = vpack.c.b16 %v3813, %v3812
    %v3884 = vpack.c.b16 %v3815, %v3814
    %v3885 = vpack.c.b16 %v3817, %v3816
    %v3886 = vpack.c.b16 %v3819, %v3818
    %v3887 = vpack.c.b16 %v3821, %v3820
    %v3955 = vsel %vm1392, %v3549, 0
    %3957 = vmatpush.bf16.msra.mxu0 %v3829
    %3958 = vmatpush.bf16.msra.mxu0 %v3828
    %3959 = vmatpush.bf16.msra.mxu0 %v3827
    %3960 = vmatpush.bf16.msra.mxu0 %v3826
    %3961 = vmatpush.bf16.msra.mxu0 %v3825
    %3962 = vmatpush.bf16.msra.mxu0 %v3824
    %3963 = vmatpush.bf16.msra.mxu0 %v3823
    %3964 = vmatpush.bf16.msra.mxu0 %v3822
    %3965 = vmatmul.bf16.gmra.mxu0 %v3541
    %v3966 = vpop.f32.mrf.mxu0
    %v3967 = vadd.f32 0.0, %v3966
    %v3968 = vpop.f32.mrf.mxu0
    %v3969 = vadd.f32 0.0, %v3968
    %3970 = vdwg.mxu0
    %3971 = vmatpush.bf16.msra.mxu0 %v3837
    %3972 = vmatpush.bf16.msra.mxu0 %v3836
    %3973 = vmatpush.bf16.msra.mxu0 %v3835
    %3974 = vmatpush.bf16.msra.mxu0 %v3834
    %3975 = vmatpush.bf16.msra.mxu0 %v3833
    %3976 = vmatpush.bf16.msra.mxu0 %v3832
    %3977 = vmatpush.bf16.msra.mxu0 %v3831
    %3978 = vmatpush.bf16.msra.mxu0 %v3830
    %3979 = vmatmul.bf16.gmra.mxu0 %v3542
    %v3980 = vpop.f32.mrf.mxu0
    %v3981 = vadd.f32 %v3967, %v3980
    %v3982 = vpop.f32.mrf.mxu0
    %v3983 = vadd.f32 %v3969, %v3982
    %3984 = vdwg.mxu0
    %3985 = vmatpush.bf16.msra.mxu0 %v3845
    %3986 = vmatpush.bf16.msra.mxu0 %v3844
    %3987 = vmatpush.bf16.msra.mxu0 %v3843
    %3988 = vmatpush.bf16.msra.mxu0 %v3842
    %3989 = vmatpush.bf16.msra.mxu0 %v3841
    %3990 = vmatpush.bf16.msra.mxu0 %v3840
    %3991 = vmatpush.bf16.msra.mxu0 %v3839
    %3992 = vmatpush.bf16.msra.mxu0 %v3838
    %3993 = vmatmul.bf16.gmra.mxu0 %v3543
    %v3994 = vpop.f32.mrf.mxu0
    %v3995 = vadd.f32 %v3981, %v3994
    %v3996 = vpop.f32.mrf.mxu0
    %v3997 = vadd.f32 %v3983, %v3996
    %3998 = vdwg.mxu0
    %3999 = vmatpush.bf16.msra.mxu0 %v3853
    %4000 = vmatpush.bf16.msra.mxu0 %v3852
    %4001 = vmatpush.bf16.msra.mxu0 %v3851
    %4002 = vmatpush.bf16.msra.mxu0 %v3850
    %4003 = vmatpush.bf16.msra.mxu0 %v3849
    %4004 = vmatpush.bf16.msra.mxu0 %v3848
    %4005 = vmatpush.bf16.msra.mxu0 %v3847
    %4006 = vmatpush.bf16.msra.mxu0 %v3846
    %4007 = vmatmul.bf16.gmra.mxu0 %v3544
    %v4008 = vpop.f32.mrf.mxu0
    %v4009 = vadd.f32 %v3995, %v4008
    %v4010 = vpop.f32.mrf.mxu0
    %v4011 = vadd.f32 %v3997, %v4010
    %4012 = vdwg.mxu0
    %4013 = vmatpush.bf16.msra.mxu0 %v3861
    %4014 = vmatpush.bf16.msra.mxu0 %v3860
    %4015 = vmatpush.bf16.msra.mxu0 %v3859
    %4016 = vmatpush.bf16.msra.mxu0 %v3858
    %4017 = vmatpush.bf16.msra.mxu0 %v3857
    %4018 = vmatpush.bf16.msra.mxu0 %v3856
    %4019 = vmatpush.bf16.msra.mxu0 %v3855
    %4020 = vmatpush.bf16.msra.mxu0 %v3854
    %4021 = vmatmul.bf16.gmra.mxu0 %v3545
    %v4022 = vpop.f32.mrf.mxu0
    %v4023 = vadd.f32 %v4009, %v4022
    %v4024 = vpop.f32.mrf.mxu0
    %v4025 = vadd.f32 %v4011, %v4024
    %4026 = vdwg.mxu0
    %4027 = vmatpush.bf16.msra.mxu0 %v3869
    %4028 = vmatpush.bf16.msra.mxu0 %v3868
    %4029 = vmatpush.bf16.msra.mxu0 %v3867
    %4030 = vmatpush.bf16.msra.mxu0 %v3866
    %4031 = vmatpush.bf16.msra.mxu0 %v3865
    %4032 = vmatpush.bf16.msra.mxu0 %v3864
    %4033 = vmatpush.bf16.msra.mxu0 %v3863
    %4034 = vmatpush.bf16.msra.mxu0 %v3862
    %4035 = vmatmul.bf16.gmra.mxu0 %v3546
    %v4036 = vpop.f32.mrf.mxu0
    %v4037 = vadd.f32 %v4023, %v4036
    %v4038 = vpop.f32.mrf.mxu0
    %v4039 = vadd.f32 %v4025, %v4038
    %4040 = vdwg.mxu0
    %4041 = vmatpush.bf16.msra.mxu0 %v3877
    %4042 = vmatpush.bf16.msra.mxu0 %v3876
    %4043 = vmatpush.bf16.msra.mxu0 %v3875
    %4044 = vmatpush.bf16.msra.mxu0 %v3874
    %4045 = vmatpush.bf16.msra.mxu0 %v3873
    %4046 = vmatpush.bf16.msra.mxu0 %v3872
    %4047 = vmatpush.bf16.msra.mxu0 %v3871
    %4048 = vmatpush.bf16.msra.mxu0 %v3870
    %4049 = vmatmul.bf16.gmra.mxu0 %v3547
    %v4050 = vpop.f32.mrf.mxu0
    %v4051 = vadd.f32 %v4037, %v4050
    %v4052 = vpop.f32.mrf.mxu0
    %v4053 = vadd.f32 %v4039, %v4052
    %4054 = vdwg.mxu0
    %4055 = vmatpush.bf16.msra.mxu0 %v3885
    %4056 = vmatpush.bf16.msra.mxu0 %v3884
    %4057 = vmatpush.bf16.msra.mxu0 %v3883
    %4058 = vmatpush.bf16.msra.mxu0 %v3882
    %4059 = vmatpush.bf16.msra.mxu0 %v3881
    %4060 = vmatpush.bf16.msra.mxu0 %v3880
    %4061 = vmatpush.bf16.msra.mxu0 %v3879
    %4062 = vmatpush.bf16.msra.mxu0 %v3878
    %4063 = vmatmul.bf16.gmra.mxu0 %v3548
    %v4064 = vpop.f32.mrf.mxu0
    %v4065 = vadd.f32 %v4051, %v4064
    %v4066 = vpop.f32.mrf.mxu0
    %v4067 = vadd.f32 %v4053, %v4066
    %4068 = vdwg.mxu0
    %4069 = vmatpush.bf16.msra.mxu0 0
    %4070 = vmatpush.bf16.msra.mxu0 0
    %4071 = vmatpush.bf16.msra.mxu0 0
    %4072 = vmatpush.bf16.msra.mxu0 0
    %4073 = vmatpush.bf16.msra.mxu0 0
    %4074 = vmatpush.bf16.msra.mxu0 0
    %4075 = vmatpush.bf16.msra.mxu0 %v3887
    %4076 = vmatpush.bf16.msra.mxu0 %v3886
    %4077 = vmatmul.bf16.gmra.mxu0 %v3955
    %v4078 = vpop.f32.mrf.mxu0
    %v4079 = vadd.f32 %v4065, %v4078
    %v4080 = vpop.f32.mrf.mxu0
    %v4081 = vadd.f32 %v4067, %v4080
    %4082 = vdwg.mxu0
    %v4083 = vpack.c.bf16 %v4081, %v4079
    %v4084 = vld [vmem:[%s9] sm:$0xf]
    %v4085 = vld [vmem:[%s9 + $0x4] sm:$0xf]
    %v4086 = vld [vmem:[%s9 + $0x8] sm:$0xf]
    %v4087 = vld [vmem:[%s9 + $0xc] sm:$0xf]
    %v4092 = vunpack.c.l.b16 %v4084
    %v4093 = vunpack.c.l.b16 %v4085
    %v4094 = vunpack.c.l.b16 %v4086
    %v4095 = vunpack.c.l.b16 %v4087
    %v4096 = vpack.c.b16 %v4093, %v4092
    %v4097 = vpack.c.b16 %v4095, %v4094
    %v4100 = vsel %vm1392, %v2965, 0
    %4102 = vmatpush.bf16.msra.mxu0 0
    %4103 = vmatpush.bf16.msra.mxu0 0
    %4104 = vmatpush.bf16.msra.mxu0 0
    %4105 = vmatpush.bf16.msra.mxu0 0
    %4106 = vmatpush.bf16.msra.mxu0 0
    %4107 = vmatpush.bf16.msra.mxu0 0
    %4108 = vmatpush.bf16.msra.mxu0 %v4097
    %4109 = vmatpush.bf16.msra.mxu0 %v4096
    %4110 = vmatmul.bf16.gmra.mxu0 %v4100
    %v4111 = vpop.f32.mrf.mxu0
    %v4112 = vadd.f32 0.0, %v4111
    %v4113 = vpop.f32.mrf.mxu0
    %4114 = vdwg.mxu0
    %4115 = vmatpush.bf16.msra.mxu0 0
    %4116 = vmatpush.bf16.msra.mxu0 0
    %4117 = vmatpush.bf16.msra.mxu0 0
    %4118 = vmatpush.bf16.msra.mxu0 0
    %4119 = vmatpush.bf16.msra.mxu0 0
    %4120 = vmatpush.bf16.msra.mxu0 0
    %4121 = vmatpush.bf16.msra.mxu0 0
    %4122 = vmatpush.bf16.msra.mxu0 %v4083
    %4123 = vmatmul.bf16.gmra.mxu0 %v1555
    %v4124 = vpop.f32.mrf.mxu0
    %v4125 = vadd.f32 %v4112, %v4124
    %v4126 = vpop.f32.mrf.mxu0
    %4127 = vdwg.mxu0
    %v4128 = vld [vmem:[%s10] sm:$0x1]
    %v4130 = vperm.slane %v4128, 0
    %v4132 = vadd.f32 %v4125, %v4130
    %v4133 = vmax.f32 %v4132, 0.0
    %v4134 = vpack.c.bf16 %v4133, %v4133
    %v4135 = vld [vmem:[%s11] sm:$0xf]
    %v4136 = vld [vmem:[%s11 + $0x4] sm:$0xf]
    %v4137 = vld [vmem:[%s11 + $0x8] sm:$0xf]
    %v4138 = vld [vmem:[%s11 + $0xc] sm:$0xf]
    %v4139 = vld [vmem:[%s12] sm:$0xf]
    %v4140 = vld [vmem:[%s12 + $0x4] sm:$0xf]
    %v4141 = vld [vmem:[%s12 + $0x8] sm:$0xf]
    %v4142 = vld [vmem:[%s12 + $0xc] sm:$0xf]
    %v4147 = vunpack.c.l.b16 %v4139
    %v4148 = vunpack.c.l.b16 %v4140
    %v4149 = vunpack.c.l.b16 %v4141
    %v4150 = vunpack.c.l.b16 %v4142
    %v4151 = vpack.c.b16 %v4148, %v4147
    %v4152 = vpack.c.b16 %v4150, %v4149
    %4155 = vmatpush.bf16.msra.mxu0 0
    %4156 = vmatpush.bf16.msra.mxu0 0
    %4157 = vmatpush.bf16.msra.mxu0 0
    %4158 = vmatpush.bf16.msra.mxu0 0
    %4159 = vmatpush.bf16.msra.mxu0 0
    %4160 = vmatpush.bf16.msra.mxu0 0
    %4161 = vmatpush.bf16.msra.mxu0 %v4152
    %4162 = vmatpush.bf16.msra.mxu0 %v4151
    %4163 = vmatmul.bf16.gmra.mxu0 %v4100
    %v4164 = vpop.f32.mrf.mxu0
    %v4165 = vadd.f32 0.0, %v4164
    %v4166 = vpop.f32.mrf.mxu0
    %4167 = vdwg.mxu0
    %v4172 = vunpack.c.l.b16 %v4135
    %v4173 = vunpack.c.l.b16 %v4136
    %v4174 = vunpack.c.l.b16 %v4137
    %v4175 = vunpack.c.l.b16 %v4138
    %v4176 = vpack.c.b16 %v4173, %v4172
    %v4177 = vpack.c.b16 %v4175, %v4174
    %v4181 = vsel %vm1392, %v4134, 0
    %4183 = vmatpush.bf16.msra.mxu0 0
    %4184 = vmatpush.bf16.msra.mxu0 0
    %4185 = vmatpush.bf16.msra.mxu0 0
    %4186 = vmatpush.bf16.msra.mxu0 0
    %4187 = vmatpush.bf16.msra.mxu0 0
    %4188 = vmatpush.bf16.msra.mxu0 0
    %4189 = vmatpush.bf16.msra.mxu0 %v4177
    %4190 = vmatpush.bf16.msra.mxu0 %v4176
    %4191 = vmatmul.bf16.gmra.mxu0 %v4181
    %v4192 = vpop.f32.mrf.mxu0
    %v4193 = vadd.f32 %v4165, %v4192
    %v4194 = vpop.f32.mrf.mxu0
    %4195 = vdwg.mxu0
    %v4196 = vld [vmem:[%s13] sm:$0x1]
    %v4198 = vperm.slane %v4196, 0
    %v4200 = vadd.f32 %v4193, %v4198
    %v4201 = vxor.u32 %v4200, 2147483648
    %v4202 = vmul.f32 %v4201, 1.442695
    %v4203 = vpow.pop %v4202
    %v4204 = vadd.f32 %v4203, 1.0
    %v4205 = vrcp.pop %v4204
    %v4206 = vmul.f32 %v4204, %v4205
    %v4207 = vsub.f32 1.0, %v4206
    %v4208 = vmul.f32 %v4205, %v4207
    %v4209 = vadd.f32 %v4205, %v4208
    %vm4210 = vweird.f32 %v4204
    %vm4211 = vweird.f32 %v4205
    %vm4212 = vmor %vm4210, %vm4211
    %v4213 = vsel %vm4212, %v4205, %v4209
    %v4214 = vand.u32 2147483647, %v4204
    %vm4215 = vcmp.eq.f32.partialorder %v4214, 8.507059e+37
    %v4216 = vand.u32 %v4204, 2147483648
    %v4217 = vor.u32 1.1754944e-38, %v4216
    %v4218 = vsel %vm4215, %v4217, %v4213
    %v4219 = vmul.f32 1.0, %v4218
    %4221 = vrot.lane.b32.xlu0 %v4200, 32
    %v4222 = vpop.permute.xlu0 %4221
    %v4224 = vmul.f32 %v4219, %v4222
    %4226 = vrot.lane.b32.xlu0 %v4224, 64
    %v4227 = vpop.permute.xlu0 %4226
    %v4229 = vadd.f32 %v4200, %v4227
    %v4230 = vtanh.pop %v4229
    %v4231 = vsub.f32 1.0, %v4219
    %4233 = vrot.lane.b32.xlu0 %v4230, 96
    %v4234 = vpop.permute.xlu0 %4233
    %v4236 = vmul.f32 %v4231, %v4234
    %v4237 = vmul.f32 %v4219, %v2961
    %v4238 = vadd.f32 %v4236, %v4237
    %4240 = vrot.lane.b32.xlu0 %v4238, 96
    %v4241 = vpop.permute.xlu0 %4240
    %4243 = vst.msk [vmem:[#allocation3] sm:$0xff] %vm1392, %v4241
    // Predicated region
    $region58: #{tpu_custom_call.1} parent=1 // pred_check
      _
    $region59: #{tpu_custom_call.1} parent=1 // pred_check_branch
      %4245 = sbr.rel (0) target = $region61
    $region60: #{tpu_custom_call.1} parent=1 // pred_region
      %4247 = vsyncadd [#allocation4], 0
      %s4249 = sshll.u32 [#allocation3], 4
      %s4250 = int_to_ptr.vmem [resolvable:$true] %s4249
      %s4251 = sshll.u32 %s14, 4
      %s4252 = int_to_ptr.hbm [resolvable:$true] %s4251
      %4254 = dma.vmem_to_hbm [thread:$0]  %s4250, 128, %s4252, [#allocation4]
    $region61: #{tpu_custom_call.1} parent=1 // pred_fallthru
      _
    // Predicated region
    $region62: #{tpu_custom_call.1} parent=1 // pred_check
      _
    $region63: #{tpu_custom_call.1} parent=1 // pred_check_branch
      %4256 = sbr.rel (0) target = $region65
    $region64: #{tpu_custom_call.1} parent=1 // pred_region
      %4258 = dma.done [#allocation4], 128
    $region65: #{tpu_custom_call.1} parent=1 // pred_fallthru
      _
    %4259 = vsyncpa [#allocation4], 1

</llo_original>
